<compile_context>
chip_gen: v7x
topology: tpu7x:2x2x1
jax: 0.10.0
libtpu: 0.0.40
codegen_flags: <defaults>
</compile_context>

<pallas_src>
import jax
import jax.numpy as jnp
from jax.experimental import pallas as pl
from jax.experimental.pallas import tpu as pltpu


def _round_up(a, b):
    return (a + b - 1) // b * b


# ---------------------------------------------------------------------------
# Kernel 1: Linear(bias=False) -> ReLU -> BN1d(eval) -> Dropout(id)
#           -> global_mean_pool, fused.
# Grid: (m//tn        [parallel,  output columns],
#        n_pad//rt    [arbitrary, node-row tiles],
#        K_pad//tk    [arbitrary, contraction])
# ---------------------------------------------------------------------------
def _lin1_pool_kernel(x_ref, w_ref, assign_ref, scale_ref, shift_ref, gmask_ref,
                      o_ref, acc_ref, pooled_ref):
    i = pl.program_id(1)          # node-row tile
    k = pl.program_id(2)          # contraction tile
    last_k = pl.num_programs(2) - 1
    last_i = pl.num_programs(1) - 1

    @pl.when((i == 0) & (k == 0))
    def _():
        pooled_ref[...] = jnp.zeros_like(pooled_ref)

    @pl.when(k == 0)
    def _():
        acc_ref[...] = jnp.zeros_like(acc_ref)

    # x streamed as f32 from HBM, cast to bf16 right before the MXU; f32 acc.
    acc_ref[...] += jnp.dot(x_ref[...].astype(jnp.bfloat16), w_ref[...],
                            preferred_element_type=jnp.float32)

    @pl.when(k == last_k)
    def _():
        # Mean-pool this row tile's contribution.  The per-column BN scale /
        # shift commute through the row-mixing pool, so they are applied once
        # per (g, tn) output instead of per (row_tile, tn) hidden tile.
        pooled_ref[...] += jnp.dot(assign_ref[...],
                                   jnp.maximum(acc_ref[...], 0.0),
                                   preferred_element_type=jnp.float32)

    @pl.when((k == last_k) & (i == last_i))
    def _():
        # gmask = rowsum(assign): 1 for non-empty graphs, 0 for empty graphs,
        # so empty graphs stay exactly 0 instead of receiving `shift`.
        o_ref[...] = (pooled_ref[...] * scale_ref[...]
                      + gmask_ref[...] * shift_ref[...])


def lin1_relu_bn_meanpool(x, w1_bf16, assign, scale, shift, gmask,
                          *, tn, tk, row_tile):
    n_pad, K_pad = x.shape
    K2, m = w1_bf16.shape
    g, n2 = assign.shape
    assert K_pad == K2 and n_pad == n2
    assert m % tn == 0 and K_pad % tk == 0 and n_pad % row_tile == 0

    ncol = m // tn
    cost = pl.CostEstimate(
        flops=2 * n_pad * K_pad * m + 2 * g * n_pad * m + n_pad * m + 2 * g * m,
        transcendentals=0,
        bytes_accessed=(x.size * x.dtype.itemsize * ncol   # x re-read per column tile
                        + w1_bf16.size * 2                 # w1 streamed once
                        + assign.size * 4 * ncol
                        + (scale.size + shift.size + gmask.size) * 4
                        + g * m * 4),
    )
    return pl.pallas_call(
        _lin1_pool_kernel,
        out_shape=jax.ShapeDtypeStruct((g, m), jnp.float32),
        grid_spec=pltpu.PrefetchScalarGridSpec(
            num_scalar_prefetch=0,
            grid=(m // tn, n_pad // row_tile, K_pad // tk),
            in_specs=[
                pl.BlockSpec((row_tile, tk), lambda j, i, k: (i, k)),   # x (f32)
                pl.BlockSpec((tk, tn), lambda j, i, k: (k, j)),         # w1 (bf16)
                pl.BlockSpec((g, row_tile), lambda j, i, k: (0, i)),    # pool matrix
                pl.BlockSpec((1, tn), lambda j, i, k: (0, j)),          # BN scale
                pl.BlockSpec((1, tn), lambda j, i, k: (0, j)),          # BN shift
                pl.BlockSpec((g, 1), lambda j, i, k: (0, 0)),           # graph mask
            ],
            out_specs=pl.BlockSpec((g, tn), lambda j, i, k: (0, j)),
            scratch_shapes=[pltpu.VMEM((row_tile, tn), jnp.float32),    # matmul acc
                            pltpu.VMEM((g, tn), jnp.float32)],          # pooled acc
        ),
        compiler_params=pltpu.CompilerParams(
            dimension_semantics=("parallel", "arbitrary", "arbitrary"),
            vmem_limit_bytes=48 * 1024 * 1024),
        cost_estimate=cost,
    )(x, w1_bf16, assign, scale, shift, gmask)


# ---------------------------------------------------------------------------
# Kernel 2: lin2 (Linear -> ReLU -> BN(eval) -> Dropout(id)) + lin3 (Linear+bias)
#           fused.  pooled is tiny (g, 2048); tile w2's output columns and
#           accumulate the matching w3 row-tile contribution into a lane-dense
#           (g, A2_pad) output.
# ---------------------------------------------------------------------------
def _lin2_lin3_kernel(p_ref, w2_ref, scale_ref, shift_ref, w3_ref, b_ref,
                      o_ref, acc_ref):
    j = pl.program_id(0)

    @pl.when(j == 0)
    def _():
        acc_ref[...] = jnp.zeros_like(acc_ref)

    h2 = jnp.dot(p_ref[...], w2_ref[...], preferred_element_type=jnp.float32)
    h2 = jnp.maximum(h2, 0.0) * scale_ref[...] + shift_ref[...]
    acc_ref[...] += jnp.dot(h2.astype(jnp.bfloat16), w3_ref[...],
                            preferred_element_type=jnp.float32)

    @pl.when(j == pl.num_programs(0) - 1)
    def _():
        o_ref[...] = acc_ref[...] + b_ref[...]


def lin2_lin3(pooled_bf16, w2_bf16, scale, shift, w3_pad_bf16, b3_pad, *, tn=512):
    g, K = pooled_bf16.shape
    K2, m = w2_bf16.shape
    m2, a_pad = w3_pad_bf16.shape
    assert K == K2 and m == m2 and m % tn == 0

    cost = pl.CostEstimate(
        flops=2 * g * K * m + 2 * g * m * a_pad + 3 * g * m,
        transcendentals=0,
        bytes_accessed=(pooled_bf16.size * 2 + w2_bf16.size * 2
                        + w3_pad_bf16.size * 2 + scale.size * 4 + shift.size * 4
                        + b3_pad.size * 4 + g * a_pad * 4),
    )
    return pl.pallas_call(
        _lin2_lin3_kernel,
        out_shape=jax.ShapeDtypeStruct((g, a_pad), jnp.float32),
        grid_spec=pltpu.PrefetchScalarGridSpec(
            num_scalar_prefetch=0,
            grid=(m // tn,),
            in_specs=[
                pl.BlockSpec((g, K), lambda j: (0, 0)),       # pooled (resident, bf16)
                pl.BlockSpec((K, tn), lambda j: (0, j)),      # w2 column tile (bf16)
                pl.BlockSpec((1, tn), lambda j: (0, j)),      # BN scale
                pl.BlockSpec((1, tn), lambda j: (0, j)),      # BN shift
                pl.BlockSpec((tn, a_pad), lambda j: (j, 0)),  # w3 row tile (bf16)
                pl.BlockSpec((1, a_pad), lambda j: (0, 0)),   # bias (resident)
            ],
            out_specs=pl.BlockSpec((g, a_pad), lambda j: (0, 0)),
            scratch_shapes=[pltpu.VMEM((g, a_pad), jnp.float32)],
        ),
        compiler_params=pltpu.CompilerParams(
            dimension_semantics=("arbitrary",),
            vmem_limit_bytes=32 * 1024 * 1024),
        cost_estimate=cost,
    )(pooled_bf16, w2_bf16, scale, shift, w3_pad_bf16, b3_pad)


# ---------------------------------------------------------------------------
# Parameters (deterministic, synthetic), BN folding helper, forward pass
# ---------------------------------------------------------------------------
def make_params(key, in_features, hid1, hid2, a2_d):
    k1, k2, k3, k4 = jax.random.split(key, 4)
    a_pad = _round_up(a2_d, 128)                 # lane-dense lin3 output width

    w3 = jax.random.normal(k3, (hid2, a2_d), jnp.float32) / jnp.sqrt(hid2)
    b3 = jax.random.normal(k4, (a2_d,), jnp.float32) * 0.01
    w3_pad = jnp.zeros((hid2, a_pad), jnp.float32).at[:, :a2_d].set(w3)
    b3_pad = jnp.zeros((1, a_pad), jnp.float32).at[0, :a2_d].set(b3)

    return {
        # linears stored pre-transposed (in, out) == weight.T, bf16 for the MXU
        "w1": (jax.random.normal(k1, (in_features, hid1), jnp.float32)
               / jnp.sqrt(in_features)).astype(jnp.bfloat16),
        "w2": (jax.random.normal(k2, (hid1, hid2), jnp.float32)
               / jnp.sqrt(hid1)).astype(jnp.bfloat16),
        "w3_pad": w3_pad.astype(jnp.bfloat16),
        "b3_pad": b3_pad,
        "a2_d": a2_d,
        # BatchNorm1d default init (eval-mode running stats), eps=0.1
        "bn1_gamma": jnp.ones((hid1,), jnp.float32),
        "bn1_beta": jnp.zeros((hid1,), jnp.float32),
        "bn1_mean": jnp.zeros((hid1,), jnp.float32),
        "bn1_var": jnp.ones((hid1,), jnp.float32),
        "bn2_gamma": jnp.ones((hid2,), jnp.float32),
        "bn2_beta": jnp.zeros((hid2,), jnp.float32),
        "bn2_mean": jnp.zeros((hid2,), jnp.float32),
        "bn2_var": jnp.ones((hid2,), jnp.float32),
        "eps": 0.1,
    }


def _bn_scale_shift(gamma, beta, mean, var, eps):
    scale = gamma / jnp.sqrt(var + eps)
    shift = beta - mean * scale
    return scale[None, :], shift[None, :]


def _mean_pool_matrix(batch, num_graphs):
    one_hot = (batch[None, :] == jnp.arange(num_graphs)[:, None]).astype(jnp.float32)
    counts = one_hot.sum(axis=1, keepdims=True)
    gmask = (counts > 0).astype(jnp.float32)          # (g, 1): 0 for empty graphs
    assign = one_hot / jnp.maximum(counts, 1.0)       # rows sum to gmask
    return assign, gmask


def avg_pool_ed_forward(params, x, batch, num_graphs, *,
                        row_tile=None, tn1=None, tk=None):
    s1, t1 = _bn_scale_shift(params["bn1_gamma"], params["bn1_beta"],
                             params["bn1_mean"], params["bn1_var"], params["eps"])
    s2, t2 = _bn_scale_shift(params["bn2_gamma"], params["bn2_beta"],
                             params["bn2_mean"], params["bn2_var"], params["eps"])
    assign, gmask = _mean_pool_matrix(batch, num_graphs)

    n, K = x.shape
    w1 = params["w1"]
    m = w1.shape[1]

    # ---- tile selection & zero padding (real in_features=16928 is not
    #      lane-aligned; n is arbitrary) ------------------------------------
    if tn1 is None:
        tn1 = min(1024, m)            # 2 column tiles at m=2048: x streamed only
                                      # twice; 'parallel' axis shards v7x's 2 TCs.
    K_pad = _round_up(K, 256)
    if tk is None:
        tk = 512 if K_pad % 512 == 0 else 256
    n8 = _round_up(n, 8)
    if row_tile is None:
        row_tile = n8 if n8 <= 2048 else 1024   # O(row_tile) VMEM -> node-count scalable
    n_pad = _round_up(n, row_tile)
    assert m % tn1 == 0 and K_pad % tk == 0
    assert row_tile % 8 == 0 and (row_tile == n_pad or row_tile % 128 == 0)

    if (n_pad, K_pad) != (n, K):
        x = jnp.pad(x, ((0, n_pad - n), (0, K_pad - K)))
    if w1.shape[0] != K_pad:
        # NOTE: for production, store w1 pre-padded so this copy is not per-call.
        w1 = jnp.pad(w1, ((0, K_pad - w1.shape[0]), (0, 0)))
    if assign.shape[1] != n_pad:
        assign = jnp.pad(assign, ((0, 0), (0, n_pad - assign.shape[1])))

    # lin01 + global_mean_pool fused (x streamed f32, cast to bf16 in-kernel)
    pooled = lin1_relu_bn_meanpool(x, w1, assign, s1, t1, gmask,
                                   tn=tn1, tk=tk, row_tile=row_tile)
    # lin2 + lin3 fused (lane-dense padded output, sliced here)
    out_pad = lin2_lin3(pooled.astype(jnp.bfloat16), params["w2"], s2, t2,
                        params["w3_pad"], params["b3_pad"], tn=512)
    return {"A2": out_pad[:, :params["a2_d"]]}


def reference_forward(params, x, batch, num_graphs):
    # Pure-JAX reference with the same bf16-weight / f32-accumulate numerics.
    s1, t1 = _bn_scale_shift(params["bn1_gamma"], params["bn1_beta"],
                             params["bn1_mean"], params["bn1_var"], params["eps"])
    s2, t2 = _bn_scale_shift(params["bn2_gamma"], params["bn2_beta"],
                             params["bn2_mean"], params["bn2_var"], params["eps"])
    h = jnp.dot(x.astype(jnp.bfloat16), params["w1"],
                preferred_element_type=jnp.float32)
    h = jnp.maximum(h, 0.0) * s1 + t1
    assign, _ = _mean_pool_matrix(batch, num_graphs)
    pooled = jnp.dot(assign, h)
    h2 = jnp.dot(pooled.astype(jnp.bfloat16), params["w2"],
                 preferred_element_type=jnp.float32)
    h2 = jnp.maximum(h2, 0.0) * s2 + t2
    out = jnp.dot(h2.astype(jnp.bfloat16), params["w3_pad"],
                  preferred_element_type=jnp.float32) + params["b3_pad"]
    return {"A2": out[:, :params["a2_d"]]}


if __name__ == "__main__":
    # Small, module-consistent shapes. IN_FEATURES / NUM_NODES are deliberately
    # NOT lane-aligned so the padding path used for the real in_features=16928
    # is exercised.
    NUM_NODES = 300          # total nodes across all graphs in the batch
    NUM_GRAPHS = 2
    IN_FEATURES = 600
    HID1, HID2 = 2048, 1024
    A2_D = 8

    key = jax.random.PRNGKey(0)
    kx, kp = jax.random.split(key)

    x = jax.random.normal(kx, (NUM_NODES, IN_FEATURES), jnp.float32)
    # batch[n] = graph id of node n (sorted, as in PyG)
    batch = jnp.repeat(jnp.arange(NUM_GRAPHS, dtype=jnp.int32),
                       NUM_NODES // NUM_GRAPHS)

    params = make_params(kp, IN_FEATURES, HID1, HID2, A2_D)
    ref = reference_forward(params, x, batch, NUM_GRAPHS)

    # Default tiling: single node-row tile (304), K padded 600 -> 768 (tk=256).
    out = jax.block_until_ready(avg_pool_ed_forward(params, x, batch, NUM_GRAPHS))
    assert out["A2"].shape == (NUM_GRAPHS, A2_D)
    assert jnp.allclose(out["A2"], ref["A2"], atol=1e-2, rtol=1e-2), \
        float(jnp.max(jnp.abs(out["A2"] - ref["A2"])))

    # Multi-row-tile path: 300 nodes padded to 384 -> three row tiles of 128,
    # exercising the O(row_tile) VMEM accumulation used for large graphs.
    out2 = jax.block_until_ready(
        avg_pool_ed_forward(params, x, batch, NUM_GRAPHS, row_tile=128))
    assert jnp.allclose(out2["A2"], ref["A2"], atol=1e-2, rtol=1e-2), \
        float(jnp.max(jnp.abs(out2["A2"] - ref["A2"])))

    # TODO(synk): Dropout / BatchNorm implemented in eval (inference) mode; training-mode
    # stochastic dropout and batch-statistics BN are out of scope for this kernel.
    print("KERNEL_OK")
</pallas_src>

<mosaic_0001>
module attributes {stable_mosaic.version = 11 : i64} {
  func.func @_lin1_pool_kernel(%arg0: i32, %arg1: i32, %arg2: i32, %arg3: memref<304x256xf32, #tpu.memory_space<vmem>>, %arg4: memref<256x1024xbf16, #tpu.memory_space<vmem>>, %arg5: memref<2x304xf32, #tpu.memory_space<vmem>>, %arg6: memref<1x1024xf32, #tpu.memory_space<vmem>>, %arg7: memref<1x1024xf32, #tpu.memory_space<vmem>>, %arg8: memref<2x1xf32, #tpu.memory_space<vmem>>, %arg9: memref<2x1024xf32, #tpu.memory_space<vmem>>, %arg10: memref<304x1024xf32, #tpu.memory_space<vmem>>, %arg11: memref<2x1024xf32, #tpu.memory_space<vmem>>) attributes {dimension_semantics = [#tpu.dimension_semantics<parallel>, #tpu.dimension_semantics<arbitrary>, #tpu.dimension_semantics<arbitrary>], iteration_bounds = array<i64: 2, 1, 3>, scalar_prefetch = 0 : i64, scratch_operands = 2 : i64, tpu.core_type = #tpu.core_type<tc>, window_params = [{transform_indices = @transform_0, window_bounds = array<i64: 304, 256>}, {transform_indices = @transform_1, window_bounds = array<i64: 256, 1024>}, {transform_indices = @transform_2, window_bounds = array<i64: 2, 304>}, {transform_indices = @transform_3, window_bounds = array<i64: 1, 1024>}, {transform_indices = @transform_4, window_bounds = array<i64: 1, 1024>}, {pipeline_mode = #tpu.pipeline_mode<synchronous>, transform_indices = @transform_5, window_bounds = array<i64: 2, 1>}, {transform_indices = @transform_6, window_bounds = array<i64: 2, 1024>}]} {
    %c0_i32 = arith.constant 0 : i32
    %0 = arith.cmpi eq, %arg1, %c0_i32 : i32
    %c0_i32_0 = arith.constant 0 : i32
    %1 = arith.cmpi eq, %arg2, %c0_i32_0 : i32
    %2 = arith.andi %0, %1 : i1
    %3 = arith.extui %2 : i1 to i32
    %c0_i32_1 = arith.constant 0 : i32
    %4 = arith.cmpi ne, %3, %c0_i32_1 : i32
    scf.if %4 {
      %cst_15 = arith.constant 0.000000e+00 : f32
      %23 = vector.broadcast %cst_15 : f32 to vector<2x1024xf32>
      %c0_16 = arith.constant 0 : index
      %c0_17 = arith.constant 0 : index
      %24 = vector.load %arg11[%c0_16, %c0_17] : memref<2x1024xf32, #tpu.memory_space<vmem>>, vector<2x1024xf32>
      tpu.vector_store %arg11[%c0_16, %c0_17], %23 {strides = array<i32>} : memref<2x1024xf32, #tpu.memory_space<vmem>>, vector<2x1024xf32>,
    } else {
    }
    %c0_i32_2 = arith.constant 0 : i32
    %5 = arith.cmpi eq, %arg2, %c0_i32_2 : i32
    %6 = arith.extui %5 : i1 to i32
    %c0_i32_3 = arith.constant 0 : i32
    %7 = arith.cmpi ne, %6, %c0_i32_3 : i32
    scf.if %7 {
      %cst_15 = arith.constant 0.000000e+00 : f32
      %23 = vector.broadcast %cst_15 : f32 to vector<304x1024xf32>
      %c0_16 = arith.constant 0 : index
      %c0_17 = arith.constant 0 : index
      %24 = vector.load %arg10[%c0_16, %c0_17] : memref<304x1024xf32, #tpu.memory_space<vmem>>, vector<304x1024xf32>
      tpu.vector_store %arg10[%c0_16, %c0_17], %23 {strides = array<i32>} : memref<304x1024xf32, #tpu.memory_space<vmem>>, vector<304x1024xf32>,
    } else {
    }
    %c0 = arith.constant 0 : index
    %c0_4 = arith.constant 0 : index
    %8 = vector.load %arg10[%c0, %c0_4] : memref<304x1024xf32, #tpu.memory_space<vmem>>, vector<304x1024xf32>
    %c0_5 = arith.constant 0 : index
    %c0_6 = arith.constant 0 : index
    %9 = vector.load %arg3[%c0_5, %c0_6] : memref<304x256xf32, #tpu.memory_space<vmem>>, vector<304x256xf32>
    %10 = arith.truncf %9 : vector<304x256xf32> to vector<304x256xbf16>
    %c0_7 = arith.constant 0 : index
    %c0_8 = arith.constant 0 : index
    %11 = vector.load %arg4[%c0_7, %c0_8] : memref<256x1024xbf16, #tpu.memory_space<vmem>>, vector<256x1024xbf16>
    %cst = arith.constant dense<0.000000e+00> : vector<304x1024xf32>
    %12 = tpu.matmul %10, %11, %cst {dimension_numbers = #tpu.dot_dimension_numbers<[1], [0], [0], [1], [0, 0, 1, 1], [], []>} : vector<304x256xbf16>, vector<256x1024xbf16>, vector<304x1024xf32> -> vector<304x1024xf32>
    %13 = arith.addf %8, %12 : vector<304x1024xf32>
    %c0_9 = arith.constant 0 : index
    %c0_10 = arith.constant 0 : index
    %14 = vector.load %arg10[%c0_9, %c0_10] : memref<304x1024xf32, #tpu.memory_space<vmem>>, vector<304x1024xf32>
    tpu.vector_store %arg10[%c0_9, %c0_10], %13 {strides = array<i32>} : memref<304x1024xf32, #tpu.memory_space<vmem>>, vector<304x1024xf32>,
    %c2_i32 = arith.constant 2 : i32
    %15 = arith.cmpi eq, %arg2, %c2_i32 : i32
    %16 = arith.extui %15 : i1 to i32
    %c0_i32_11 = arith.constant 0 : i32
    %17 = arith.cmpi ne, %16, %c0_i32_11 : i32
    scf.if %17 {
      %c0_15 = arith.constant 0 : index
      %c0_16 = arith.constant 0 : index
      %23 = vector.load %arg11[%c0_15, %c0_16] : memref<2x1024xf32, #tpu.memory_space<vmem>>, vector<2x1024xf32>
      %c0_17 = arith.constant 0 : index
      %c0_18 = arith.constant 0 : index
      %24 = vector.load %arg5[%c0_17, %c0_18] : memref<2x304xf32, #tpu.memory_space<vmem>>, vector<2x304xf32>
      %c0_19 = arith.constant 0 : index
      %c0_20 = arith.constant 0 : index
      %25 = vector.load %arg10[%c0_19, %c0_20] : memref<304x1024xf32, #tpu.memory_space<vmem>>, vector<304x1024xf32>
      %cst_21 = arith.constant 0.000000e+00 : f32
      %26 = vector.broadcast %cst_21 : f32 to vector<304x1024xf32>
      %27 = arith.maximumf %25, %26 : vector<304x1024xf32>
      %cst_22 = arith.constant dense<0.000000e+00> : vector<2x1024xf32>
      %28 = tpu.matmul %24, %27, %cst_22 {dimension_numbers = #tpu.dot_dimension_numbers<[1], [0], [0], [1], [0, 0, 1, 1], [], []>} : vector<2x304xf32>, vector<304x1024xf32>, vector<2x1024xf32> -> vector<2x1024xf32>
      %29 = arith.addf %23, %28 : vector<2x1024xf32>
      %c0_23 = arith.constant 0 : index
      %c0_24 = arith.constant 0 : index
      %30 = vector.load %arg11[%c0_23, %c0_24] : memref<2x1024xf32, #tpu.memory_space<vmem>>, vector<2x1024xf32>
      tpu.vector_store %arg11[%c0_23, %c0_24], %29 {strides = array<i32>} : memref<2x1024xf32, #tpu.memory_space<vmem>>, vector<2x1024xf32>,
    } else {
    }
    %c2_i32_12 = arith.constant 2 : i32
    %18 = arith.cmpi eq, %arg2, %c2_i32_12 : i32
    %c0_i32_13 = arith.constant 0 : i32
    %19 = arith.cmpi eq, %arg1, %c0_i32_13 : i32
    %20 = arith.andi %18, %19 : i1
    %21 = arith.extui %20 : i1 to i32
    %c0_i32_14 = arith.constant 0 : i32
    %22 = arith.cmpi ne, %21, %c0_i32_14 : i32
    scf.if %22 {
      %c0_15 = arith.constant 0 : index
      %c0_16 = arith.constant 0 : index
      %23 = vector.load %arg11[%c0_15, %c0_16] : memref<2x1024xf32, #tpu.memory_space<vmem>>, vector<2x1024xf32>
      %c0_17 = arith.constant 0 : index
      %c0_18 = arith.constant 0 : index
      %24 = vector.load %arg6[%c0_17, %c0_18] : memref<1x1024xf32, #tpu.memory_space<vmem>>, vector<1x1024xf32>
      %25 = vector.broadcast %24 : vector<1x1024xf32> to vector<2x1024xf32>
      %26 = arith.mulf %23, %25 : vector<2x1024xf32>
      %c0_19 = arith.constant 0 : index
      %c0_20 = arith.constant 0 : index
      %27 = vector.load %arg8[%c0_19, %c0_20] : memref<2x1xf32, #tpu.memory_space<vmem>>, vector<2x1xf32>
      %c0_21 = arith.constant 0 : index
      %c0_22 = arith.constant 0 : index
      %28 = vector.load %arg7[%c0_21, %c0_22] : memref<1x1024xf32, #tpu.memory_space<vmem>>, vector<1x1024xf32>
      %29 = vector.broadcast %27 : vector<2x1xf32> to vector<2x1024xf32>
      %30 = vector.broadcast %28 : vector<1x1024xf32> to vector<2x1024xf32>
      %31 = arith.mulf %29, %30 : vector<2x1024xf32>
      %32 = arith.addf %26, %31 : vector<2x1024xf32>
      %c0_23 = arith.constant 0 : index
      %c0_24 = arith.constant 0 : index
      %33 = vector.load %arg9[%c0_23, %c0_24] : memref<2x1024xf32, #tpu.memory_space<vmem>>, vector<2x1024xf32>
      tpu.vector_store %arg9[%c0_23, %c0_24], %32 {strides = array<i32>} : memref<2x1024xf32, #tpu.memory_space<vmem>>, vector<2x1024xf32>,
    } else {
    }
    return
  }
  func.func @transform_0(%arg0: i32, %arg1: i32, %arg2: i32) -> (i32, i32) {
    %c0_i32 = arith.constant 0 : i32
    return %arg1, %arg2 : i32, i32
  }
  func.func @transform_1(%arg0: i32, %arg1: i32, %arg2: i32) -> (i32, i32) {
    %c0_i32 = arith.constant 0 : i32
    return %arg2, %arg0 : i32, i32
  }
  func.func @transform_2(%arg0: i32, %arg1: i32, %arg2: i32) -> (i32, i32) {
    %c0_i32 = arith.constant 0 : i32
    %c0_i32_0 = arith.constant 0 : i32
    return %c0_i32, %arg1 : i32, i32
  }
  func.func @transform_3(%arg0: i32, %arg1: i32, %arg2: i32) -> (i32, i32) {
    %c0_i32 = arith.constant 0 : i32
    %c0_i32_0 = arith.constant 0 : i32
    return %c0_i32, %arg0 : i32, i32
  }
  func.func @transform_4(%arg0: i32, %arg1: i32, %arg2: i32) -> (i32, i32) {
    %c0_i32 = arith.constant 0 : i32
    %c0_i32_0 = arith.constant 0 : i32
    return %c0_i32, %arg0 : i32, i32
  }
  func.func @transform_5(%arg0: i32, %arg1: i32, %arg2: i32) -> (i32, i32) {
    %c0_i32 = arith.constant 0 : i32
    %c0_i32_0 = arith.constant 0 : i32
    %c0_i32_1 = arith.constant 0 : i32
    return %c0_i32, %c0_i32_0 : i32, i32
  }
  func.func @transform_6(%arg0: i32, %arg1: i32, %arg2: i32) -> (i32, i32) {
    %c0_i32 = arith.constant 0 : i32
    %c0_i32_0 = arith.constant 0 : i32
    return %c0_i32, %arg0 : i32, i32
  }
}

</mosaic_0001>

<llo_original>
// kernel: tpu_custom_call.1
$region0: #{tpu_custom_call.1}
  #allocation0 [shape = 'u32[]', space=smem, size = 0x4, offset = 0x4, fixed_abs, tag = 'smem constant byte address 0x4 - core index']
  #allocation1 [shape = 'u32[144,128]{1,0:T(1,128)}', space=vmem, size = 0x12000, scoped, tag = 'internal scratch']
  #allocation2 [shape = 'f32[304,1024]{1,0:T(8,128)}', space=vmem, size = 0x130000, scoped, tag = 'scratch operand']
  #allocation3 [shape = 'f32[2,1024]{1,0:T(2,128)}', space=vmem, size = 0x2000, scoped, tag = 'scratch operand']
  %s0 = inlined_call_operand.hbm [shape: f32[304,768], index: 0, kind: input, shape index: {}]
  %s1 = inlined_call_operand.hbm [shape: bf16[768,2048], index: 1, kind: input, shape index: {}]
  %s2 = inlined_call_operand.hbm [shape: f32[2,304], index: 2, kind: input, shape index: {}]
  %s3 = inlined_call_operand.hbm [shape: f32[1,2048], index: 3, kind: input, shape index: {}]
  %s4 = inlined_call_operand.hbm [shape: f32[1,2048], index: 4, kind: input, shape index: {}]
  %s5 = inlined_call_operand.vmem [shape: f32[2,1], index: 5, kind: input, shape index: {}]
  %s6 = inlined_call_operand.hbm [shape: f32[2,2048], index: 6, kind: output, shape index: {}]
  %s7 = sld [smem:[#allocation0]]
  $region93: #{tpu_custom_call.1} parent=0
    _
  %s9 = ssub.s32 1, %s7
  %s10 = scalar_select 0, %s9, %s7
  $region1: #{tpu_custom_call.1} parent=0
    #allocation4 [shape = 'u8[622592]{0}', space=vmem, size = 0x98000, scoped, tag = 'input window, operand 0']
    #allocation5 [shape = 's32[2]{0}', space=sflag, size = 0x8, scoped, tag = 'scoped memory for tpu_custom_call.1']
    #allocation6 [shape = 's32[2]{0}', space=sflag, size = 0x8, scoped, tag = 'scoped memory for tpu_custom_call.1']
    #allocation7 [shape = 'u8[1048576]{0}', space=vmem, size = 0x100000, scoped, tag = 'input window, operand 1']
    #allocation8 [shape = 's32[2]{0}', space=sflag, size = 0x8, scoped, tag = 'scoped memory for tpu_custom_call.1']
    #allocation9 [shape = 'u8[3072]{0}', space=vmem, size = 0xc00, scoped, tag = 'input window, operand 2, single buffered']
    #allocation10 [shape = 'u8[8192]{0}', space=vmem, size = 0x2000, scoped, tag = 'input window, operand 3']
    #allocation11 [shape = 's32[2]{0}', space=sflag, size = 0x8, scoped, tag = 'scoped memory for tpu_custom_call.1']
    #allocation12 [shape = 'u8[8192]{0}', space=vmem, size = 0x2000, scoped, tag = 'input window, operand 4']
    #allocation13 [shape = 'u8[16384]{0}', space=vmem, size = 0x4000, scoped, tag = 'output window, operand 0']
    %11 = vsyncpa [#allocation5], 0
    %s12 = scalar_lea.sflag [#allocation5], 1
    %13 = vsyncpa %s12, 0
    %14 = vsyncpa [#allocation8], 0
    %s15 = scalar_lea.sflag [#allocation8], 1
    %16 = vsyncpa %s15, 0
    %17 = vsyncpa [#allocation11], 0
    %s18 = scalar_lea.sflag [#allocation11], 1
    %19 = vsyncpa %s18, 0
    %20 = vsyncpa [#allocation6], 0
    %s21 = scalar_lea.sflag [#allocation6], 1
    %22 = vsyncpa %s21, 0
    loop: start=0, step=1, limit=8
    $region2: #{tpu_custom_call.1} parent=1 // loop_pre_header
      _
    $region3: #{tpu_custom_call.1} parent=1 // loop_header
      %s24 = sphi 0, %s28
      %p25 = scmp.ge.s32.totalorder %s24, 8
      %s31 = sphi 0, %s50
      %s32 = sphi 0, %s46
      %s33 = sphi 0, %s42
      %s34 = sphi 0, %s31
      %s35 = sphi 0, %s32
      %s36 = sphi 0, %s33
      %s37 = sphi 0, %s34
      %s38 = sphi 0, %s35
      %s39 = sphi 0, %s36
      %s55 = sphi 0, %s57
      %s58 = sphi 0, %s55
      %s59 = sphi 0, %s58
      %s75 = sphi 0, %s59
      %s83 = sphi 0, %s85
      %s86 = sphi 0, %s83
      %s87 = sphi 0, %s86
      %s103 = sphi 0, %s87
      %s109 = sphi 0, %s111
      %s112 = sphi 0, %s109
      %s113 = sphi 0, %s112
      %s129 = sphi 0, %s113
      %s135 = sphi 0, %s137
      %s138 = sphi 0, %s135
      %s139 = sphi 0, %s138
      %s155 = sphi 0, %s139
      %s161 = sphi 0, %s163
      %s164 = sphi 0, %s161
      %s165 = sphi 0, %s164
      %s181 = sphi 0, %s165
      %s185 = sphi 0, %s185
      %s187 = sphi 0, %s185
      %s188 = sphi 0, %s187
      %s202 = sphi 0, %s188
      %s208 = sphi 0, %s210
      %s211 = sphi 0, %s208
      %s212 = sphi 0, %s211
      %s228 = sphi 0, %s212
    $region4: #{tpu_custom_call.1} parent=1 // loop_header_branch
      %27 = sbr.rel (%p25) target = $region8
    $region5: #{tpu_custom_call.1} parent=1 // loop_body
      %s29 = ssub.s32 %s24, 1
      %s30 = ssub.s32 %s24, 2
      %s40 = sadd.s32 1, %s33
      %p41 = scmp.ge.s32.totalorder %s40, 3
      %s42 = scalar_select %p41, 0, %s40
      %s43 = sadd.s32 1, %s32
      %s44 = scalar_select %p41, %s43, %s32
      %p45 = scmp.ge.s32.totalorder %s44, 1
      %s46 = scalar_select %p45, 0, %s44
      %s47 = sadd.s32 1, %s31
      %s48 = scalar_select %p45, %s47, %s31
      %p49 = scmp.ge.s32.totalorder %s48, 2
      %s50 = scalar_select %p49, 0, %s48
      %s51 = ssub.s32 %s32, %s46
      %s52 = ssub.s32 %s33, %s42
      %s53 = sor.u32 %s51, %s52
      %p54 = scmp.eq.s32.totalorder %s53, 0
      %s56 = sadd.s32 %s55, 1
      %s57 = scalar_select %p54, %s55, %s56
      %p60 = pneg %p54
      %p61 = scmp.eq.s32.totalorder %s24, 5
      %p62 = por %p60, %p61
      %p63 = scmp.ne.s32.totalorder %s55, %s58
      %p64 = scmp.eq.s32.totalorder %s24, 0
      %p65 = por %p63, %p64
      %p66 = scmp.ne.s32.totalorder %s55, %s58
      %p67 = scmp.eq.s32.totalorder %s29, 5
      %p68 = por %p66, %p67
      %p69 = scmp.ne.s32.totalorder %s58, %s59
      %p70 = scmp.eq.s32.totalorder %s29, 0
      %p71 = por %p69, %p70
      %p72 = scmp.ne.s32.totalorder %s58, %s59
      %p73 = scmp.eq.s32.totalorder %s30, 5
      %p74 = por %p72, %p73
      %p76 = scmp.ne.s32.totalorder %s59, %s75
      %p77 = scmp.eq.s32.totalorder %s30, 0
      %p78 = por %p76, %p77
      %s79 = ssub.s32 %s33, %s42
      %s80 = ssub.s32 %s31, %s50
      %s81 = sor.u32 %s79, %s80
      %p82 = scmp.eq.s32.totalorder %s81, 0
      %s84 = sadd.s32 %s83, 1
      %s85 = scalar_select %p82, %s83, %s84
      %p88 = pneg %p82
      %p89 = scmp.eq.s32.totalorder %s24, 5
      %p90 = por %p88, %p89
      %p91 = scmp.ne.s32.totalorder %s83, %s86
      %p92 = scmp.eq.s32.totalorder %s24, 0
      %p93 = por %p91, %p92
      %p94 = scmp.ne.s32.totalorder %s83, %s86
      %p95 = scmp.eq.s32.totalorder %s29, 5
      %p96 = por %p94, %p95
      %p97 = scmp.ne.s32.totalorder %s86, %s87
      %p98 = scmp.eq.s32.totalorder %s29, 0
      %p99 = por %p97, %p98
      %p100 = scmp.ne.s32.totalorder %s86, %s87
      %p101 = scmp.eq.s32.totalorder %s30, 5
      %p102 = por %p100, %p101
      %p104 = scmp.ne.s32.totalorder %s87, %s103
      %p105 = scmp.eq.s32.totalorder %s30, 0
      %p106 = por %p104, %p105
      %s107 = ssub.s32 %s32, %s46
      %p108 = scmp.eq.s32.totalorder %s107, 0
      %s110 = sadd.s32 %s109, 1
      %s111 = scalar_select %p108, %s109, %s110
      %p114 = pneg %p108
      %p115 = scmp.eq.s32.totalorder %s24, 5
      %p116 = por %p114, %p115
      %p117 = scmp.ne.s32.totalorder %s109, %s112
      %p118 = scmp.eq.s32.totalorder %s24, 0
      %p119 = por %p117, %p118
      %p120 = scmp.ne.s32.totalorder %s109, %s112
      %p121 = scmp.eq.s32.totalorder %s29, 5
      %p122 = por %p120, %p121
      %p123 = scmp.ne.s32.totalorder %s112, %s113
      %p124 = scmp.eq.s32.totalorder %s29, 0
      %p125 = por %p123, %p124
      %p126 = scmp.ne.s32.totalorder %s112, %s113
      %p127 = scmp.eq.s32.totalorder %s30, 5
      %p128 = por %p126, %p127
      %p130 = scmp.ne.s32.totalorder %s113, %s129
      %p131 = scmp.eq.s32.totalorder %s30, 0
      %p132 = por %p130, %p131
      %s133 = ssub.s32 %s31, %s50
      %p134 = scmp.eq.s32.totalorder %s133, 0
      %s136 = sadd.s32 %s135, 1
      %s137 = scalar_select %p134, %s135, %s136
      %p140 = pneg %p134
      %p141 = scmp.eq.s32.totalorder %s24, 5
      %p142 = por %p140, %p141
      %p143 = scmp.ne.s32.totalorder %s135, %s138
      %p144 = scmp.eq.s32.totalorder %s24, 0
      %p145 = por %p143, %p144
      %p146 = scmp.ne.s32.totalorder %s135, %s138
      %p147 = scmp.eq.s32.totalorder %s29, 5
      %p148 = por %p146, %p147
      %p149 = scmp.ne.s32.totalorder %s138, %s139
      %p150 = scmp.eq.s32.totalorder %s29, 0
      %p151 = por %p149, %p150
      %p152 = scmp.ne.s32.totalorder %s138, %s139
      %p153 = scmp.eq.s32.totalorder %s30, 5
      %p154 = por %p152, %p153
      %p156 = scmp.ne.s32.totalorder %s139, %s155
      %p157 = scmp.eq.s32.totalorder %s30, 0
      %p158 = por %p156, %p157
      %s159 = ssub.s32 %s31, %s50
      %p160 = scmp.eq.s32.totalorder %s159, 0
      %s162 = sadd.s32 %s161, 1
      %s163 = scalar_select %p160, %s161, %s162
      %p166 = pneg %p160
      %p167 = scmp.eq.s32.totalorder %s24, 5
      %p168 = por %p166, %p167
      %p169 = scmp.ne.s32.totalorder %s161, %s164
      %p170 = scmp.eq.s32.totalorder %s24, 0
      %p171 = por %p169, %p170
      %p172 = scmp.ne.s32.totalorder %s161, %s164
      %p173 = scmp.eq.s32.totalorder %s29, 5
      %p174 = por %p172, %p173
      %p175 = scmp.ne.s32.totalorder %s164, %s165
      %p176 = scmp.eq.s32.totalorder %s29, 0
      %p177 = por %p175, %p176
      %p178 = scmp.ne.s32.totalorder %s164, %s165
      %p179 = scmp.eq.s32.totalorder %s30, 5
      %p180 = por %p178, %p179
      %p182 = scmp.ne.s32.totalorder %s165, %s181
      %p183 = scmp.eq.s32.totalorder %s30, 0
      %p184 = por %p182, %p183
      %s186 = sadd.s32 %s185, 1
      %p189 = scmp.eq.s32.totalorder %s24, 5
      %p190 = scmp.ne.s32.totalorder %s185, %s187
      %p191 = scmp.eq.s32.totalorder %s24, 0
      %p192 = por %p190, %p191
      %p193 = scmp.ne.s32.totalorder %s185, %s187
      %p194 = scmp.eq.s32.totalorder %s29, 5
      %p195 = por %p193, %p194
      %p196 = scmp.ne.s32.totalorder %s187, %s188
      %p197 = scmp.eq.s32.totalorder %s29, 0
      %p198 = por %p196, %p197
      %p199 = scmp.ne.s32.totalorder %s187, %s188
      %p200 = scmp.eq.s32.totalorder %s30, 5
      %p201 = por %p199, %p200
      %p203 = scmp.ne.s32.totalorder %s188, %s202
      %p204 = scmp.eq.s32.totalorder %s30, 0
      %p205 = por %p203, %p204
      %s206 = ssub.s32 %s31, %s50
      %p207 = scmp.eq.s32.totalorder %s206, 0
      %s209 = sadd.s32 %s208, 1
      %s210 = scalar_select %p207, %s208, %s209
      %p213 = pneg %p207
      %p214 = scmp.eq.s32.totalorder %s24, 5
      %p215 = por %p213, %p214
      %p216 = scmp.ne.s32.totalorder %s208, %s211
      %p217 = scmp.eq.s32.totalorder %s24, 0
      %p218 = por %p216, %p217
      %p219 = scmp.ne.s32.totalorder %s208, %s211
      %p220 = scmp.eq.s32.totalorder %s29, 5
      %p221 = por %p219, %p220
      %p222 = scmp.ne.s32.totalorder %s211, %s212
      %p223 = scmp.eq.s32.totalorder %s29, 0
      %p224 = por %p222, %p223
      %p225 = scmp.ne.s32.totalorder %s211, %s212
      %p226 = scmp.eq.s32.totalorder %s30, 5
      %p227 = por %p225, %p226
      %p229 = scmp.ne.s32.totalorder %s212, %s228
      %p230 = scmp.eq.s32.totalorder %s30, 0
      %p231 = por %p229, %p230
      %p232 = scmp.le.s32.totalorder 1, %s24
      %p233 = scmp.lt.s32.totalorder %s24, 7
      %p234 = pnand %p232, %p233
      %p235 = pneg %p234
      // Predicated region
      $region9: #{tpu_custom_call.1} parent=5 // pred_check
        _
      $region10: #{tpu_custom_call.1} parent=5 // pred_check_branch
        %237 = sbr.rel (%p234) target = $region12
      $region11: #{tpu_custom_call.1} parent=5 // pred_region
        %s238 = ssub.s32 %s24, 1
        // Predicated region
        $region13: #{tpu_custom_call.1} parent=11 // pred_check
          %p239 = pneg %p125
        $region14: #{tpu_custom_call.1} parent=11 // pred_check_branch
          %241 = sbr.rel (%p239) target = $region16
        $region15: #{tpu_custom_call.1} parent=11 // pred_region
          %s242 = smul.u32 3, %s35
          %s244 = ssub.s32 96, 96
          %245 = vsyncadd [#allocation8], %s244
          %s246 = smul.addr %s242, 32
          %s247 = scalar_lea.hbm %s2, %s246
          %s249 = sshll.u32 [#allocation9], 4
          %s250 = int_to_ptr.vmem [resolvable:$true] %s249
          %252 = dma.hbm_to_vmem [thread:$0]  %s247, 96, %s250, [#allocation8]
        $region16: #{tpu_custom_call.1} parent=11 // pred_fallthru
          _
        // Predicated region
        $region17: #{tpu_custom_call.1} parent=11 // pred_check
          %p253 = pneg %p198
        $region18: #{tpu_custom_call.1} parent=11 // pred_check_branch
          %255 = sbr.rel (%p253) target = $region20
        $region19: #{tpu_custom_call.1} parent=11 // pred_region
          _
        $region20: #{tpu_custom_call.1} parent=11 // pred_fallthru
          _
      $region12: #{tpu_custom_call.1} parent=5 // pred_fallthru
        _
      %p256 = scmp.lt.s32.totalorder %s24, 6
      // Predicated region
      $region21: #{tpu_custom_call.1} parent=5 // pred_check
        %p257 = pneg %p256
      $region22: #{tpu_custom_call.1} parent=5 // pred_check_branch
        %259 = sbr.rel (%p257) target = $region24
      $region23: #{tpu_custom_call.1} parent=5 // pred_region
        // Predicated region
        $region25: #{tpu_custom_call.1} parent=23 // pred_check
          %p260 = pneg %p65
        $region26: #{tpu_custom_call.1} parent=23 // pred_check_branch
          %262 = sbr.rel (%p260) target = $region28
        $region27: #{tpu_custom_call.1} parent=23 // pred_region
          %s263 = sand.u32 %s55, 1
          %s264 = scalar_lea.sflag [#allocation5], %s263
          %s265 = sand.u32 %s55, 1
          %s266 = smul.addr %s265, 608
          %s267 = scalar_lea.vmem [#allocation4], %s266
          %s268 = smul.u32 38, %s32
          %s269 = smul.u32 2, %s33
          %s271 = ssub.s32 9728, 9728
          %272 = vsyncadd %s264, %s271
          %s273 = smul.addr %s268, 6
          %s274 = sadd.s32 %s269, %s273
          %s275 = smul.addr %s274, 128
          %s276 = scalar_lea.hbm %s0, %s275
          %s277 = sshll.u32 %s267, 4
          %s278 = int_to_ptr.vmem [resolvable:$true] %s277
          %283 = dma.hbm_to_vmem [thread:$0]  %s276, 9728, %s278, %s264, 768, 256, 16
        $region28: #{tpu_custom_call.1} parent=23 // pred_fallthru
          _
        // Predicated region
        $region29: #{tpu_custom_call.1} parent=23 // pred_check
          %p284 = pneg %p93
        $region30: #{tpu_custom_call.1} parent=23 // pred_check_branch
          %286 = sbr.rel (%p284) target = $region32
        $region31: #{tpu_custom_call.1} parent=23 // pred_region
          %s287 = sand.u32 %s24, 1
          %s288 = scalar_lea.sflag [#allocation8], %s287
          %s289 = sand.u32 %s83, 1
          %s290 = smul.addr %s289, 1024
          %s291 = scalar_lea.vmem [#allocation7], %s290
          %s292 = smul.u32 32, %s33
          %s293 = smul.u32 8, %s31
          %s295 = ssub.s32 16384, 16384
          %296 = vsyncadd %s288, %s295
          %s297 = smul.addr %s292, 16
          %s298 = sadd.s32 %s293, %s297
          %s299 = smul.addr %s298, 64
          %s300 = scalar_lea.hbm %s1, %s299
          %s301 = sshll.u32 %s291, 4
          %s302 = int_to_ptr.vmem [resolvable:$true] %s301
          %307 = dma.hbm_to_vmem [thread:$0]  %s300, 16384, %s302, %s288, 1024, 512, 32
        $region32: #{tpu_custom_call.1} parent=23 // pred_fallthru
          _
        // Predicated region
        $region33: #{tpu_custom_call.1} parent=23 // pred_check
          %p308 = pneg %p145
        $region34: #{tpu_custom_call.1} parent=23 // pred_check_branch
          %310 = sbr.rel (%p308) target = $region36
        $region35: #{tpu_custom_call.1} parent=23 // pred_region
          %s311 = sand.u32 %s24, 1
          %s312 = scalar_lea.sflag [#allocation11], %s311
          %s313 = sand.u32 %s135, 1
          %s314 = smul.addr %s313, 8
          %s315 = scalar_lea.vmem [#allocation10], %s314
          %s316 = smul.u32 8, %s31
          %s318 = ssub.s32 128, 128
          %319 = vsyncadd %s312, %s318
          %s320 = smul.addr %s316, 16
          %s321 = scalar_lea.hbm %s3, %s320
          %s323 = sshll.u32 %s315, 4
          %s324 = int_to_ptr.vmem [resolvable:$true] %s323
          %326 = dma.hbm_to_vmem [thread:$0]  %s321, 128, %s324, %s312
        $region36: #{tpu_custom_call.1} parent=23 // pred_fallthru
          _
        // Predicated region
        $region37: #{tpu_custom_call.1} parent=23 // pred_check
          %p327 = pneg %p171
        $region38: #{tpu_custom_call.1} parent=23 // pred_check_branch
          %329 = sbr.rel (%p327) target = $region40
        $region39: #{tpu_custom_call.1} parent=23 // pred_region
          %s330 = sand.u32 %s24, 1
          %s331 = scalar_lea.sflag [#allocation11], %s330
          %s332 = sand.u32 %s161, 1
          %s333 = smul.addr %s332, 8
          %s334 = scalar_lea.vmem [#allocation12], %s333
          %s335 = smul.u32 8, %s31
          %s337 = ssub.s32 128, 128
          %338 = vsyncadd %s331, %s337
          %s339 = smul.addr %s335, 16
          %s340 = scalar_lea.hbm %s4, %s339
          %s342 = sshll.u32 %s334, 4
          %s343 = int_to_ptr.vmem [resolvable:$true] %s342
          %345 = dma.hbm_to_vmem [thread:$0]  %s340, 128, %s343, %s331
        $region40: #{tpu_custom_call.1} parent=23 // pred_fallthru
          _
      $region24: #{tpu_custom_call.1} parent=5 // pred_fallthru
        _
      %p346 = scmp.le.s32.totalorder 1, %s24
      %p347 = scmp.lt.s32.totalorder %s24, 7
      %p348 = pnand %p346, %p347
      %p349 = pneg %p348
      // Predicated region
      $region41: #{tpu_custom_call.1} parent=5 // pred_check
        _
      $region42: #{tpu_custom_call.1} parent=5 // pred_check_branch
        %351 = sbr.rel (%p348) target = $region44
      $region43: #{tpu_custom_call.1} parent=5 // pred_region
        %s352 = ssub.s32 %s24, 1
        %s353 = sand.u32 %s58, 1
        %s354 = scalar_lea.sflag [#allocation5], %s353
        %s355 = sand.u32 %s58, 1
        %s356 = smul.addr %s355, 608
        %s357 = scalar_lea.vmem [#allocation4], %s356
        // Predicated region
        $region45: #{tpu_custom_call.1} parent=43 // pred_check
          %p358 = pneg %p71
        $region46: #{tpu_custom_call.1} parent=43 // pred_check_branch
          %360 = sbr.rel (%p358) target = $region48
        $region47: #{tpu_custom_call.1} parent=43 // pred_region
          %361 = dma.done %s354, 9728
        $region48: #{tpu_custom_call.1} parent=43 // pred_fallthru
          _
        %s362 = sand.u32 %s29, 1
        %s363 = scalar_lea.sflag [#allocation8], %s362
        %s364 = sand.u32 %s86, 1
        %s365 = smul.addr %s364, 1024
        %s366 = scalar_lea.vmem [#allocation7], %s365
        // Predicated region
        $region49: #{tpu_custom_call.1} parent=43 // pred_check
          %p367 = pneg %p99
        $region50: #{tpu_custom_call.1} parent=43 // pred_check_branch
          %369 = sbr.rel (%p367) target = $region52
        $region51: #{tpu_custom_call.1} parent=43 // pred_region
          %370 = dma.done %s363, 16384
        $region52: #{tpu_custom_call.1} parent=43 // pred_fallthru
          _
        // Predicated region
        $region53: #{tpu_custom_call.1} parent=43 // pred_check
          %p371 = pneg %p125
        $region54: #{tpu_custom_call.1} parent=43 // pred_check_branch
          %373 = sbr.rel (%p371) target = $region56
        $region55: #{tpu_custom_call.1} parent=43 // pred_region
          %374 = dma.done [#allocation8], 96
        $region56: #{tpu_custom_call.1} parent=43 // pred_fallthru
          _
        %s375 = sand.u32 %s29, 1
        %s376 = scalar_lea.sflag [#allocation11], %s375
        %s377 = sand.u32 %s138, 1
        %s378 = smul.addr %s377, 8
        %s379 = scalar_lea.vmem [#allocation10], %s378
        // Predicated region
        $region57: #{tpu_custom_call.1} parent=43 // pred_check
          %p380 = pneg %p151
        $region58: #{tpu_custom_call.1} parent=43 // pred_check_branch
          %382 = sbr.rel (%p380) target = $region60
        $region59: #{tpu_custom_call.1} parent=43 // pred_region
          %383 = dma.done %s376, 128
        $region60: #{tpu_custom_call.1} parent=43 // pred_fallthru
          _
        %s384 = sand.u32 %s29, 1
        %s385 = scalar_lea.sflag [#allocation11], %s384
        %s386 = sand.u32 %s164, 1
        %s387 = smul.addr %s386, 8
        %s388 = scalar_lea.vmem [#allocation12], %s387
        // Predicated region
        $region61: #{tpu_custom_call.1} parent=43 // pred_check
          %p389 = pneg %p177
        $region62: #{tpu_custom_call.1} parent=43 // pred_check_branch
          %391 = sbr.rel (%p389) target = $region64
        $region63: #{tpu_custom_call.1} parent=43 // pred_region
          %392 = dma.done %s385, 128
        $region64: #{tpu_custom_call.1} parent=43 // pred_fallthru
          _
        %s393 = sand.u32 %s58, 1
        %s394 = scalar_lea.sflag [#allocation5], %s393
        %s395 = sand.u32 %s58, 1
        %s396 = smul.addr %s395, 608
        %s397 = scalar_lea.vmem [#allocation4], %s396
        %p398 = pneg %p71
        %p399 = pneg %p68
        %s400 = sand.u32 %s29, 1
        %s401 = scalar_lea.sflag [#allocation8], %s400
        %s402 = sand.u32 %s86, 1
        %s403 = smul.addr %s402, 1024
        %s404 = scalar_lea.vmem [#allocation7], %s403
        %p405 = pneg %p99
        %p406 = pneg %p96
        %p407 = pneg %p125
        %p408 = pneg %p122
        %s409 = sand.u32 %s29, 1
        %s410 = scalar_lea.sflag [#allocation11], %s409
        %s411 = sand.u32 %s138, 1
        %s412 = smul.addr %s411, 8
        %s413 = scalar_lea.vmem [#allocation10], %s412
        %p414 = pneg %p151
        %p415 = pneg %p148
        %s416 = sand.u32 %s29, 1
        %s417 = scalar_lea.sflag [#allocation11], %s416
        %s418 = sand.u32 %s164, 1
        %s419 = smul.addr %s418, 8
        %s420 = scalar_lea.vmem [#allocation12], %s419
        %p421 = pneg %p177
        %p422 = pneg %p174
        %p423 = pneg %p198
        %p424 = pneg %p195
        %p425 = pneg %p224
        %p426 = pneg %p221
        %s427 = sand.u32 %s211, 1
        %s428 = scalar_lea.sflag [#allocation6], %s427
        %s429 = sand.u32 %s211, 1
        %s430 = smul.addr %s429, 16
        %s431 = scalar_lea.vmem [#allocation13], %s430
        %s432 = smul.u32 38, %s35
        %s433 = smul.u32 2, %s36
        %s434 = smul.u32 32, %s36
        %s435 = smul.u32 8, %s34
        %s436 = smul.u32 3, %s35
        %s437 = smul.u32 8, %s34
        %s438 = smul.u32 8, %s34
        %s439 = smul.u32 8, %s34
        %p440 = scmp.eq.s32.totalorder %s35, 0
        %p441 = scmp.eq.s32.totalorder %s36, 0
        %p442 = pnand %p440, %p441
        %p443 = pneg %p442
        // Predicated region
        $region65: #{tpu_custom_call.1} parent=43 // pred_check
          _
        $region66: #{tpu_custom_call.1} parent=43 // pred_check_branch
          %445 = sbr.rel (%p442) target = $region68
        $region67: #{tpu_custom_call.1} parent=43 // pred_region
          %446 = vst [vmem:[#allocation3] sm:$0xff] 0.0
          %447 = vst [vmem:[#allocation3 + $0x8] sm:$0xff] 0.0
        $region68: #{tpu_custom_call.1} parent=43 // pred_fallthru
          _
        // Predicated region
        $region69: #{tpu_custom_call.1} parent=43 // pred_check
          %p448 = pneg %p441
        $region70: #{tpu_custom_call.1} parent=43 // pred_check_branch
          %450 = sbr.rel (%p448) target = $region72
        $region71: #{tpu_custom_call.1} parent=43 // pred_region
          %451 = vst [vmem:[#allocation2] sm:$0xff] 0.0
          %452 = vst [vmem:[#allocation2 + $0x8] sm:$0xff] 0.0
          %453 = vst [vmem:[#allocation2 + $0x10] sm:$0xff] 0.0
          %454 = vst [vmem:[#allocation2 + $0x18] sm:$0xff] 0.0
          %455 = vst [vmem:[#allocation2 + $0x20] sm:$0xff] 0.0
          %456 = vst [vmem:[#allocation2 + $0x28] sm:$0xff] 0.0
          %457 = vst [vmem:[#allocation2 + $0x30] sm:$0xff] 0.0
          %458 = vst [vmem:[#allocation2 + $0x38] sm:$0xff] 0.0
          %459 = vst [vmem:[#allocation2 + $0x40] sm:$0xff] 0.0
          %460 = vst [vmem:[#allocation2 + $0x48] sm:$0xff] 0.0
          %461 = vst [vmem:[#allocation2 + $0x50] sm:$0xff] 0.0
          %462 = vst [vmem:[#allocation2 + $0x58] sm:$0xff] 0.0
          %463 = vst [vmem:[#allocation2 + $0x60] sm:$0xff] 0.0
          %464 = vst [vmem:[#allocation2 + $0x68] sm:$0xff] 0.0
          %465 = vst [vmem:[#allocation2 + $0x70] sm:$0xff] 0.0
          %466 = vst [vmem:[#allocation2 + $0x78] sm:$0xff] 0.0
          %467 = vst [vmem:[#allocation2 + $0x80] sm:$0xff] 0.0
          %468 = vst [vmem:[#allocation2 + $0x88] sm:$0xff] 0.0
          %469 = vst [vmem:[#allocation2 + $0x90] sm:$0xff] 0.0
          %470 = vst [vmem:[#allocation2 + $0x98] sm:$0xff] 0.0
          %471 = vst [vmem:[#allocation2 + $0xa0] sm:$0xff] 0.0
          %472 = vst [vmem:[#allocation2 + $0xa8] sm:$0xff] 0.0
          %473 = vst [vmem:[#allocation2 + $0xb0] sm:$0xff] 0.0
          %474 = vst [vmem:[#allocation2 + $0xb8] sm:$0xff] 0.0
          %475 = vst [vmem:[#allocation2 + $0xc0] sm:$0xff] 0.0
          %476 = vst [vmem:[#allocation2 + $0xc8] sm:$0xff] 0.0
          %477 = vst [vmem:[#allocation2 + $0xd0] sm:$0xff] 0.0
          %478 = vst [vmem:[#allocation2 + $0xd8] sm:$0xff] 0.0
          %479 = vst [vmem:[#allocation2 + $0xe0] sm:$0xff] 0.0
          %480 = vst [vmem:[#allocation2 + $0xe8] sm:$0xff] 0.0
          %481 = vst [vmem:[#allocation2 + $0xf0] sm:$0xff] 0.0
          %482 = vst [vmem:[#allocation2 + $0xf8] sm:$0xff] 0.0
          %483 = vst [vmem:[#allocation2 + $0x100] sm:$0xff] 0.0
          %484 = vst [vmem:[#allocation2 + $0x108] sm:$0xff] 0.0
          %485 = vst [vmem:[#allocation2 + $0x110] sm:$0xff] 0.0
          %486 = vst [vmem:[#allocation2 + $0x118] sm:$0xff] 0.0
          %487 = vst [vmem:[#allocation2 + $0x120] sm:$0xff] 0.0
          %488 = vst [vmem:[#allocation2 + $0x128] sm:$0xff] 0.0
          %489 = vst [vmem:[#allocation2 + $0x130] sm:$0xff] 0.0
          %490 = vst [vmem:[#allocation2 + $0x138] sm:$0xff] 0.0
          %491 = vst [vmem:[#allocation2 + $0x140] sm:$0xff] 0.0
          %492 = vst [vmem:[#allocation2 + $0x148] sm:$0xff] 0.0
          %493 = vst [vmem:[#allocation2 + $0x150] sm:$0xff] 0.0
          %494 = vst [vmem:[#allocation2 + $0x158] sm:$0xff] 0.0
          %495 = vst [vmem:[#allocation2 + $0x160] sm:$0xff] 0.0
          %496 = vst [vmem:[#allocation2 + $0x168] sm:$0xff] 0.0
          %497 = vst [vmem:[#allocation2 + $0x170] sm:$0xff] 0.0
          %498 = vst [vmem:[#allocation2 + $0x178] sm:$0xff] 0.0
          %499 = vst [vmem:[#allocation2 + $0x180] sm:$0xff] 0.0
          %500 = vst [vmem:[#allocation2 + $0x188] sm:$0xff] 0.0
          %501 = vst [vmem:[#allocation2 + $0x190] sm:$0xff] 0.0
          %502 = vst [vmem:[#allocation2 + $0x198] sm:$0xff] 0.0
          %503 = vst [vmem:[#allocation2 + $0x1a0] sm:$0xff] 0.0
          %504 = vst [vmem:[#allocation2 + $0x1a8] sm:$0xff] 0.0
          %505 = vst [vmem:[#allocation2 + $0x1b0] sm:$0xff] 0.0
          %506 = vst [vmem:[#allocation2 + $0x1b8] sm:$0xff] 0.0
          %507 = vst [vmem:[#allocation2 + $0x1c0] sm:$0xff] 0.0
          %508 = vst [vmem:[#allocation2 + $0x1c8] sm:$0xff] 0.0
          %509 = vst [vmem:[#allocation2 + $0x1d0] sm:$0xff] 0.0
          %510 = vst [vmem:[#allocation2 + $0x1d8] sm:$0xff] 0.0
          %511 = vst [vmem:[#allocation2 + $0x1e0] sm:$0xff] 0.0
          %512 = vst [vmem:[#allocation2 + $0x1e8] sm:$0xff] 0.0
          %513 = vst [vmem:[#allocation2 + $0x1f0] sm:$0xff] 0.0
          %514 = vst [vmem:[#allocation2 + $0x1f8] sm:$0xff] 0.0
          %515 = vst [vmem:[#allocation2 + $0x200] sm:$0xff] 0.0
          %516 = vst [vmem:[#allocation2 + $0x208] sm:$0xff] 0.0
          %517 = vst [vmem:[#allocation2 + $0x210] sm:$0xff] 0.0
          %518 = vst [vmem:[#allocation2 + $0x218] sm:$0xff] 0.0
          %519 = vst [vmem:[#allocation2 + $0x220] sm:$0xff] 0.0
          %520 = vst [vmem:[#allocation2 + $0x228] sm:$0xff] 0.0
          %521 = vst [vmem:[#allocation2 + $0x230] sm:$0xff] 0.0
          %522 = vst [vmem:[#allocation2 + $0x238] sm:$0xff] 0.0
          %523 = vst [vmem:[#allocation2 + $0x240] sm:$0xff] 0.0
          %524 = vst [vmem:[#allocation2 + $0x248] sm:$0xff] 0.0
          %525 = vst [vmem:[#allocation2 + $0x250] sm:$0xff] 0.0
          %526 = vst [vmem:[#allocation2 + $0x258] sm:$0xff] 0.0
          %527 = vst [vmem:[#allocation2 + $0x260] sm:$0xff] 0.0
          %528 = vst [vmem:[#allocation2 + $0x268] sm:$0xff] 0.0
          %529 = vst [vmem:[#allocation2 + $0x270] sm:$0xff] 0.0
          %530 = vst [vmem:[#allocation2 + $0x278] sm:$0xff] 0.0
          %531 = vst [vmem:[#allocation2 + $0x280] sm:$0xff] 0.0
          %532 = vst [vmem:[#allocation2 + $0x288] sm:$0xff] 0.0
          %533 = vst [vmem:[#allocation2 + $0x290] sm:$0xff] 0.0
          %534 = vst [vmem:[#allocation2 + $0x298] sm:$0xff] 0.0
          %535 = vst [vmem:[#allocation2 + $0x2a0] sm:$0xff] 0.0
          %536 = vst [vmem:[#allocation2 + $0x2a8] sm:$0xff] 0.0
          %537 = vst [vmem:[#allocation2 + $0x2b0] sm:$0xff] 0.0
          %538 = vst [vmem:[#allocation2 + $0x2b8] sm:$0xff] 0.0
          %539 = vst [vmem:[#allocation2 + $0x2c0] sm:$0xff] 0.0
          %540 = vst [vmem:[#allocation2 + $0x2c8] sm:$0xff] 0.0
          %541 = vst [vmem:[#allocation2 + $0x2d0] sm:$0xff] 0.0
          %542 = vst [vmem:[#allocation2 + $0x2d8] sm:$0xff] 0.0
          %543 = vst [vmem:[#allocation2 + $0x2e0] sm:$0xff] 0.0
          %544 = vst [vmem:[#allocation2 + $0x2e8] sm:$0xff] 0.0
          %545 = vst [vmem:[#allocation2 + $0x2f0] sm:$0xff] 0.0
          %546 = vst [vmem:[#allocation2 + $0x2f8] sm:$0xff] 0.0
          %547 = vst [vmem:[#allocation2 + $0x300] sm:$0xff] 0.0
          %548 = vst [vmem:[#allocation2 + $0x308] sm:$0xff] 0.0
          %549 = vst [vmem:[#allocation2 + $0x310] sm:$0xff] 0.0
          %550 = vst [vmem:[#allocation2 + $0x318] sm:$0xff] 0.0
          %551 = vst [vmem:[#allocation2 + $0x320] sm:$0xff] 0.0
          %552 = vst [vmem:[#allocation2 + $0x328] sm:$0xff] 0.0
          %553 = vst [vmem:[#allocation2 + $0x330] sm:$0xff] 0.0
          %554 = vst [vmem:[#allocation2 + $0x338] sm:$0xff] 0.0
          %555 = vst [vmem:[#allocation2 + $0x340] sm:$0xff] 0.0
          %556 = vst [vmem:[#allocation2 + $0x348] sm:$0xff] 0.0
          %557 = vst [vmem:[#allocation2 + $0x350] sm:$0xff] 0.0
          %558 = vst [vmem:[#allocation2 + $0x358] sm:$0xff] 0.0
          %559 = vst [vmem:[#allocation2 + $0x360] sm:$0xff] 0.0
          %560 = vst [vmem:[#allocation2 + $0x368] sm:$0xff] 0.0
          %561 = vst [vmem:[#allocation2 + $0x370] sm:$0xff] 0.0
          %562 = vst [vmem:[#allocation2 + $0x378] sm:$0xff] 0.0
          %563 = vst [vmem:[#allocation2 + $0x380] sm:$0xff] 0.0
          %564 = vst [vmem:[#allocation2 + $0x388] sm:$0xff] 0.0
          %565 = vst [vmem:[#allocation2 + $0x390] sm:$0xff] 0.0
          %566 = vst [vmem:[#allocation2 + $0x398] sm:$0xff] 0.0
          %567 = vst [vmem:[#allocation2 + $0x3a0] sm:$0xff] 0.0
          %568 = vst [vmem:[#allocation2 + $0x3a8] sm:$0xff] 0.0
          %569 = vst [vmem:[#allocation2 + $0x3b0] sm:$0xff] 0.0
          %570 = vst [vmem:[#allocation2 + $0x3b8] sm:$0xff] 0.0
          %571 = vst [vmem:[#allocation2 + $0x3c0] sm:$0xff] 0.0
          %572 = vst [vmem:[#allocation2 + $0x3c8] sm:$0xff] 0.0
          %573 = vst [vmem:[#allocation2 + $0x3d0] sm:$0xff] 0.0
          %574 = vst [vmem:[#allocation2 + $0x3d8] sm:$0xff] 0.0
          %575 = vst [vmem:[#allocation2 + $0x3e0] sm:$0xff] 0.0
          %576 = vst [vmem:[#allocation2 + $0x3e8] sm:$0xff] 0.0
          %577 = vst [vmem:[#allocation2 + $0x3f0] sm:$0xff] 0.0
          %578 = vst [vmem:[#allocation2 + $0x3f8] sm:$0xff] 0.0
          %579 = vst [vmem:[#allocation2 + $0x400] sm:$0xff] 0.0
          %580 = vst [vmem:[#allocation2 + $0x408] sm:$0xff] 0.0
          %581 = vst [vmem:[#allocation2 + $0x410] sm:$0xff] 0.0
          %582 = vst [vmem:[#allocation2 + $0x418] sm:$0xff] 0.0
          %583 = vst [vmem:[#allocation2 + $0x420] sm:$0xff] 0.0
          %584 = vst [vmem:[#allocation2 + $0x428] sm:$0xff] 0.0
          %585 = vst [vmem:[#allocation2 + $0x430] sm:$0xff] 0.0
          %586 = vst [vmem:[#allocation2 + $0x438] sm:$0xff] 0.0
          %587 = vst [vmem:[#allocation2 + $0x440] sm:$0xff] 0.0
          %588 = vst [vmem:[#allocation2 + $0x448] sm:$0xff] 0.0
          %589 = vst [vmem:[#allocation2 + $0x450] sm:$0xff] 0.0
          %590 = vst [vmem:[#allocation2 + $0x458] sm:$0xff] 0.0
          %591 = vst [vmem:[#allocation2 + $0x460] sm:$0xff] 0.0
          %592 = vst [vmem:[#allocation2 + $0x468] sm:$0xff] 0.0
          %593 = vst [vmem:[#allocation2 + $0x470] sm:$0xff] 0.0
          %594 = vst [vmem:[#allocation2 + $0x478] sm:$0xff] 0.0
          %595 = vst [vmem:[#allocation2 + $0x480] sm:$0xff] 0.0
          %596 = vst [vmem:[#allocation2 + $0x488] sm:$0xff] 0.0
          %597 = vst [vmem:[#allocation2 + $0x490] sm:$0xff] 0.0
          %598 = vst [vmem:[#allocation2 + $0x498] sm:$0xff] 0.0
          %599 = vst [vmem:[#allocation2 + $0x4a0] sm:$0xff] 0.0
          %600 = vst [vmem:[#allocation2 + $0x4a8] sm:$0xff] 0.0
          %601 = vst [vmem:[#allocation2 + $0x4b0] sm:$0xff] 0.0
          %602 = vst [vmem:[#allocation2 + $0x4b8] sm:$0xff] 0.0
          %603 = vst [vmem:[#allocation2 + $0x4c0] sm:$0xff] 0.0
          %604 = vst [vmem:[#allocation2 + $0x4c8] sm:$0xff] 0.0
          %605 = vst [vmem:[#allocation2 + $0x4d0] sm:$0xff] 0.0
          %606 = vst [vmem:[#allocation2 + $0x4d8] sm:$0xff] 0.0
          %607 = vst [vmem:[#allocation2 + $0x4e0] sm:$0xff] 0.0
          %608 = vst [vmem:[#allocation2 + $0x4e8] sm:$0xff] 0.0
          %609 = vst [vmem:[#allocation2 + $0x4f0] sm:$0xff] 0.0
          %610 = vst [vmem:[#allocation2 + $0x4f8] sm:$0xff] 0.0
          %611 = vst [vmem:[#allocation2 + $0x500] sm:$0xff] 0.0
          %612 = vst [vmem:[#allocation2 + $0x508] sm:$0xff] 0.0
          %613 = vst [vmem:[#allocation2 + $0x510] sm:$0xff] 0.0
          %614 = vst [vmem:[#allocation2 + $0x518] sm:$0xff] 0.0
          %615 = vst [vmem:[#allocation2 + $0x520] sm:$0xff] 0.0
          %616 = vst [vmem:[#allocation2 + $0x528] sm:$0xff] 0.0
          %617 = vst [vmem:[#allocation2 + $0x530] sm:$0xff] 0.0
          %618 = vst [vmem:[#allocation2 + $0x538] sm:$0xff] 0.0
          %619 = vst [vmem:[#allocation2 + $0x540] sm:$0xff] 0.0
          %620 = vst [vmem:[#allocation2 + $0x548] sm:$0xff] 0.0
          %621 = vst [vmem:[#allocation2 + $0x550] sm:$0xff] 0.0
          %622 = vst [vmem:[#allocation2 + $0x558] sm:$0xff] 0.0
          %623 = vst [vmem:[#allocation2 + $0x560] sm:$0xff] 0.0
          %624 = vst [vmem:[#allocation2 + $0x568] sm:$0xff] 0.0
          %625 = vst [vmem:[#allocation2 + $0x570] sm:$0xff] 0.0
          %626 = vst [vmem:[#allocation2 + $0x578] sm:$0xff] 0.0
          %627 = vst [vmem:[#allocation2 + $0x580] sm:$0xff] 0.0
          %628 = vst [vmem:[#allocation2 + $0x588] sm:$0xff] 0.0
          %629 = vst [vmem:[#allocation2 + $0x590] sm:$0xff] 0.0
          %630 = vst [vmem:[#allocation2 + $0x598] sm:$0xff] 0.0
          %631 = vst [vmem:[#allocation2 + $0x5a0] sm:$0xff] 0.0
          %632 = vst [vmem:[#allocation2 + $0x5a8] sm:$0xff] 0.0
          %633 = vst [vmem:[#allocation2 + $0x5b0] sm:$0xff] 0.0
          %634 = vst [vmem:[#allocation2 + $0x5b8] sm:$0xff] 0.0
          %635 = vst [vmem:[#allocation2 + $0x5c0] sm:$0xff] 0.0
          %636 = vst [vmem:[#allocation2 + $0x5c8] sm:$0xff] 0.0
          %637 = vst [vmem:[#allocation2 + $0x5d0] sm:$0xff] 0.0
          %638 = vst [vmem:[#allocation2 + $0x5d8] sm:$0xff] 0.0
          %639 = vst [vmem:[#allocation2 + $0x5e0] sm:$0xff] 0.0
          %640 = vst [vmem:[#allocation2 + $0x5e8] sm:$0xff] 0.0
          %641 = vst [vmem:[#allocation2 + $0x5f0] sm:$0xff] 0.0
          %642 = vst [vmem:[#allocation2 + $0x5f8] sm:$0xff] 0.0
          %643 = vst [vmem:[#allocation2 + $0x600] sm:$0xff] 0.0
          %644 = vst [vmem:[#allocation2 + $0x608] sm:$0xff] 0.0
          %645 = vst [vmem:[#allocation2 + $0x610] sm:$0xff] 0.0
          %646 = vst [vmem:[#allocation2 + $0x618] sm:$0xff] 0.0
          %647 = vst [vmem:[#allocation2 + $0x620] sm:$0xff] 0.0
          %648 = vst [vmem:[#allocation2 + $0x628] sm:$0xff] 0.0
          %649 = vst [vmem:[#allocation2 + $0x630] sm:$0xff] 0.0
          %650 = vst [vmem:[#allocation2 + $0x638] sm:$0xff] 0.0
          %651 = vst [vmem:[#allocation2 + $0x640] sm:$0xff] 0.0
          %652 = vst [vmem:[#allocation2 + $0x648] sm:$0xff] 0.0
          %653 = vst [vmem:[#allocation2 + $0x650] sm:$0xff] 0.0
          %654 = vst [vmem:[#allocation2 + $0x658] sm:$0xff] 0.0
          %655 = vst [vmem:[#allocation2 + $0x660] sm:$0xff] 0.0
          %656 = vst [vmem:[#allocation2 + $0x668] sm:$0xff] 0.0
          %657 = vst [vmem:[#allocation2 + $0x670] sm:$0xff] 0.0
          %658 = vst [vmem:[#allocation2 + $0x678] sm:$0xff] 0.0
          %659 = vst [vmem:[#allocation2 + $0x680] sm:$0xff] 0.0
          %660 = vst [vmem:[#allocation2 + $0x688] sm:$0xff] 0.0
          %661 = vst [vmem:[#allocation2 + $0x690] sm:$0xff] 0.0
          %662 = vst [vmem:[#allocation2 + $0x698] sm:$0xff] 0.0
          %663 = vst [vmem:[#allocation2 + $0x6a0] sm:$0xff] 0.0
          %664 = vst [vmem:[#allocation2 + $0x6a8] sm:$0xff] 0.0
          %665 = vst [vmem:[#allocation2 + $0x6b0] sm:$0xff] 0.0
          %666 = vst [vmem:[#allocation2 + $0x6b8] sm:$0xff] 0.0
          %667 = vst [vmem:[#allocation2 + $0x6c0] sm:$0xff] 0.0
          %668 = vst [vmem:[#allocation2 + $0x6c8] sm:$0xff] 0.0
          %669 = vst [vmem:[#allocation2 + $0x6d0] sm:$0xff] 0.0
          %670 = vst [vmem:[#allocation2 + $0x6d8] sm:$0xff] 0.0
          %671 = vst [vmem:[#allocation2 + $0x6e0] sm:$0xff] 0.0
          %672 = vst [vmem:[#allocation2 + $0x6e8] sm:$0xff] 0.0
          %673 = vst [vmem:[#allocation2 + $0x6f0] sm:$0xff] 0.0
          %674 = vst [vmem:[#allocation2 + $0x6f8] sm:$0xff] 0.0
          %675 = vst [vmem:[#allocation2 + $0x700] sm:$0xff] 0.0
          %676 = vst [vmem:[#allocation2 + $0x708] sm:$0xff] 0.0
          %677 = vst [vmem:[#allocation2 + $0x710] sm:$0xff] 0.0
          %678 = vst [vmem:[#allocation2 + $0x718] sm:$0xff] 0.0
          %679 = vst [vmem:[#allocation2 + $0x720] sm:$0xff] 0.0
          %680 = vst [vmem:[#allocation2 + $0x728] sm:$0xff] 0.0
          %681 = vst [vmem:[#allocation2 + $0x730] sm:$0xff] 0.0
          %682 = vst [vmem:[#allocation2 + $0x738] sm:$0xff] 0.0
          %683 = vst [vmem:[#allocation2 + $0x740] sm:$0xff] 0.0
          %684 = vst [vmem:[#allocation2 + $0x748] sm:$0xff] 0.0
          %685 = vst [vmem:[#allocation2 + $0x750] sm:$0xff] 0.0
          %686 = vst [vmem:[#allocation2 + $0x758] sm:$0xff] 0.0
          %687 = vst [vmem:[#allocation2 + $0x760] sm:$0xff] 0.0
          %688 = vst [vmem:[#allocation2 + $0x768] sm:$0xff] 0.0
          %689 = vst [vmem:[#allocation2 + $0x770] sm:$0xff] 0.0
          %690 = vst [vmem:[#allocation2 + $0x778] sm:$0xff] 0.0
          %691 = vst [vmem:[#allocation2 + $0x780] sm:$0xff] 0.0
          %692 = vst [vmem:[#allocation2 + $0x788] sm:$0xff] 0.0
          %693 = vst [vmem:[#allocation2 + $0x790] sm:$0xff] 0.0
          %694 = vst [vmem:[#allocation2 + $0x798] sm:$0xff] 0.0
          %695 = vst [vmem:[#allocation2 + $0x7a0] sm:$0xff] 0.0
          %696 = vst [vmem:[#allocation2 + $0x7a8] sm:$0xff] 0.0
          %697 = vst [vmem:[#allocation2 + $0x7b0] sm:$0xff] 0.0
          %698 = vst [vmem:[#allocation2 + $0x7b8] sm:$0xff] 0.0
          %699 = vst [vmem:[#allocation2 + $0x7c0] sm:$0xff] 0.0
          %700 = vst [vmem:[#allocation2 + $0x7c8] sm:$0xff] 0.0
          %701 = vst [vmem:[#allocation2 + $0x7d0] sm:$0xff] 0.0
          %702 = vst [vmem:[#allocation2 + $0x7d8] sm:$0xff] 0.0
          %703 = vst [vmem:[#allocation2 + $0x7e0] sm:$0xff] 0.0
          %704 = vst [vmem:[#allocation2 + $0x7e8] sm:$0xff] 0.0
          %705 = vst [vmem:[#allocation2 + $0x7f0] sm:$0xff] 0.0
          %706 = vst [vmem:[#allocation2 + $0x7f8] sm:$0xff] 0.0
          %707 = vst [vmem:[#allocation2 + $0x800] sm:$0xff] 0.0
          %708 = vst [vmem:[#allocation2 + $0x808] sm:$0xff] 0.0
          %709 = vst [vmem:[#allocation2 + $0x810] sm:$0xff] 0.0
          %710 = vst [vmem:[#allocation2 + $0x818] sm:$0xff] 0.0
          %711 = vst [vmem:[#allocation2 + $0x820] sm:$0xff] 0.0
          %712 = vst [vmem:[#allocation2 + $0x828] sm:$0xff] 0.0
          %713 = vst [vmem:[#allocation2 + $0x830] sm:$0xff] 0.0
          %714 = vst [vmem:[#allocation2 + $0x838] sm:$0xff] 0.0
          %715 = vst [vmem:[#allocation2 + $0x840] sm:$0xff] 0.0
          %716 = vst [vmem:[#allocation2 + $0x848] sm:$0xff] 0.0
          %717 = vst [vmem:[#allocation2 + $0x850] sm:$0xff] 0.0
          %718 = vst [vmem:[#allocation2 + $0x858] sm:$0xff] 0.0
          %719 = vst [vmem:[#allocation2 + $0x860] sm:$0xff] 0.0
          %720 = vst [vmem:[#allocation2 + $0x868] sm:$0xff] 0.0
          %721 = vst [vmem:[#allocation2 + $0x870] sm:$0xff] 0.0
          %722 = vst [vmem:[#allocation2 + $0x878] sm:$0xff] 0.0
          %723 = vst [vmem:[#allocation2 + $0x880] sm:$0xff] 0.0
          %724 = vst [vmem:[#allocation2 + $0x888] sm:$0xff] 0.0
          %725 = vst [vmem:[#allocation2 + $0x890] sm:$0xff] 0.0
          %726 = vst [vmem:[#allocation2 + $0x898] sm:$0xff] 0.0
          %727 = vst [vmem:[#allocation2 + $0x8a0] sm:$0xff] 0.0
          %728 = vst [vmem:[#allocation2 + $0x8a8] sm:$0xff] 0.0
          %729 = vst [vmem:[#allocation2 + $0x8b0] sm:$0xff] 0.0
          %730 = vst [vmem:[#allocation2 + $0x8b8] sm:$0xff] 0.0
          %731 = vst [vmem:[#allocation2 + $0x8c0] sm:$0xff] 0.0
          %732 = vst [vmem:[#allocation2 + $0x8c8] sm:$0xff] 0.0
          %733 = vst [vmem:[#allocation2 + $0x8d0] sm:$0xff] 0.0
          %734 = vst [vmem:[#allocation2 + $0x8d8] sm:$0xff] 0.0
          %735 = vst [vmem:[#allocation2 + $0x8e0] sm:$0xff] 0.0
          %736 = vst [vmem:[#allocation2 + $0x8e8] sm:$0xff] 0.0
          %737 = vst [vmem:[#allocation2 + $0x8f0] sm:$0xff] 0.0
          %738 = vst [vmem:[#allocation2 + $0x8f8] sm:$0xff] 0.0
          %739 = vst [vmem:[#allocation2 + $0x900] sm:$0xff] 0.0
          %740 = vst [vmem:[#allocation2 + $0x908] sm:$0xff] 0.0
          %741 = vst [vmem:[#allocation2 + $0x910] sm:$0xff] 0.0
          %742 = vst [vmem:[#allocation2 + $0x918] sm:$0xff] 0.0
          %743 = vst [vmem:[#allocation2 + $0x920] sm:$0xff] 0.0
          %744 = vst [vmem:[#allocation2 + $0x928] sm:$0xff] 0.0
          %745 = vst [vmem:[#allocation2 + $0x930] sm:$0xff] 0.0
          %746 = vst [vmem:[#allocation2 + $0x938] sm:$0xff] 0.0
          %747 = vst [vmem:[#allocation2 + $0x940] sm:$0xff] 0.0
          %748 = vst [vmem:[#allocation2 + $0x948] sm:$0xff] 0.0
          %749 = vst [vmem:[#allocation2 + $0x950] sm:$0xff] 0.0
          %750 = vst [vmem:[#allocation2 + $0x958] sm:$0xff] 0.0
          %751 = vst [vmem:[#allocation2 + $0x960] sm:$0xff] 0.0
          %752 = vst [vmem:[#allocation2 + $0x968] sm:$0xff] 0.0
          %753 = vst [vmem:[#allocation2 + $0x970] sm:$0xff] 0.0
          %754 = vst [vmem:[#allocation2 + $0x978] sm:$0xff] 0.0
        $region72: #{tpu_custom_call.1} parent=43 // pred_fallthru
          _
        %v755 = vld [vmem:[#allocation2] sm:$0xff]
        %v756 = vld [vmem:[#allocation2 + $0x8] sm:$0xff]
        %v757 = vld [vmem:[#allocation2 + $0x10] sm:$0xff]
        %v758 = vld [vmem:[#allocation2 + $0x18] sm:$0xff]
        %v759 = vld [vmem:[#allocation2 + $0x20] sm:$0xff]
        %v760 = vld [vmem:[#allocation2 + $0x28] sm:$0xff]
        %v761 = vld [vmem:[#allocation2 + $0x30] sm:$0xff]
        %v762 = vld [vmem:[#allocation2 + $0x38] sm:$0xff]
        %v763 = vld [vmem:[#allocation2 + $0x40] sm:$0xff]
        %v764 = vld [vmem:[#allocation2 + $0x48] sm:$0xff]
        %v765 = vld [vmem:[#allocation2 + $0x50] sm:$0xff]
        %v766 = vld [vmem:[#allocation2 + $0x58] sm:$0xff]
        %v767 = vld [vmem:[#allocation2 + $0x60] sm:$0xff]
        %v768 = vld [vmem:[#allocation2 + $0x68] sm:$0xff]
        %v769 = vld [vmem:[#allocation2 + $0x70] sm:$0xff]
        %v770 = vld [vmem:[#allocation2 + $0x78] sm:$0xff]
        %v771 = vld [vmem:[#allocation2 + $0x80] sm:$0xff]
        %v772 = vld [vmem:[#allocation2 + $0x88] sm:$0xff]
        %v773 = vld [vmem:[#allocation2 + $0x90] sm:$0xff]
        %v774 = vld [vmem:[#allocation2 + $0x98] sm:$0xff]
        %v775 = vld [vmem:[#allocation2 + $0xa0] sm:$0xff]
        %v776 = vld [vmem:[#allocation2 + $0xa8] sm:$0xff]
        %v777 = vld [vmem:[#allocation2 + $0xb0] sm:$0xff]
        %v778 = vld [vmem:[#allocation2 + $0xb8] sm:$0xff]
        %v779 = vld [vmem:[#allocation2 + $0xc0] sm:$0xff]
        %v780 = vld [vmem:[#allocation2 + $0xc8] sm:$0xff]
        %v781 = vld [vmem:[#allocation2 + $0xd0] sm:$0xff]
        %v782 = vld [vmem:[#allocation2 + $0xd8] sm:$0xff]
        %v783 = vld [vmem:[#allocation2 + $0xe0] sm:$0xff]
        %v784 = vld [vmem:[#allocation2 + $0xe8] sm:$0xff]
        %v785 = vld [vmem:[#allocation2 + $0xf0] sm:$0xff]
        %v786 = vld [vmem:[#allocation2 + $0xf8] sm:$0xff]
        %v787 = vld [vmem:[#allocation2 + $0x100] sm:$0xff]
        %v788 = vld [vmem:[#allocation2 + $0x108] sm:$0xff]
        %v789 = vld [vmem:[#allocation2 + $0x110] sm:$0xff]
        %v790 = vld [vmem:[#allocation2 + $0x118] sm:$0xff]
        %v791 = vld [vmem:[#allocation2 + $0x120] sm:$0xff]
        %v792 = vld [vmem:[#allocation2 + $0x128] sm:$0xff]
        %v793 = vld [vmem:[#allocation2 + $0x130] sm:$0xff]
        %v794 = vld [vmem:[#allocation2 + $0x138] sm:$0xff]
        %v795 = vld [vmem:[#allocation2 + $0x140] sm:$0xff]
        %v796 = vld [vmem:[#allocation2 + $0x148] sm:$0xff]
        %v797 = vld [vmem:[#allocation2 + $0x150] sm:$0xff]
        %v798 = vld [vmem:[#allocation2 + $0x158] sm:$0xff]
        %v799 = vld [vmem:[#allocation2 + $0x160] sm:$0xff]
        %v800 = vld [vmem:[#allocation2 + $0x168] sm:$0xff]
        %v801 = vld [vmem:[#allocation2 + $0x170] sm:$0xff]
        %v802 = vld [vmem:[#allocation2 + $0x178] sm:$0xff]
        %v803 = vld [vmem:[#allocation2 + $0x180] sm:$0xff]
        %v804 = vld [vmem:[#allocation2 + $0x188] sm:$0xff]
        %v805 = vld [vmem:[#allocation2 + $0x190] sm:$0xff]
        %v806 = vld [vmem:[#allocation2 + $0x198] sm:$0xff]
        %v807 = vld [vmem:[#allocation2 + $0x1a0] sm:$0xff]
        %v808 = vld [vmem:[#allocation2 + $0x1a8] sm:$0xff]
        %v809 = vld [vmem:[#allocation2 + $0x1b0] sm:$0xff]
        %v810 = vld [vmem:[#allocation2 + $0x1b8] sm:$0xff]
        %v811 = vld [vmem:[#allocation2 + $0x1c0] sm:$0xff]
        %v812 = vld [vmem:[#allocation2 + $0x1c8] sm:$0xff]
        %v813 = vld [vmem:[#allocation2 + $0x1d0] sm:$0xff]
        %v814 = vld [vmem:[#allocation2 + $0x1d8] sm:$0xff]
        %v815 = vld [vmem:[#allocation2 + $0x1e0] sm:$0xff]
        %v816 = vld [vmem:[#allocation2 + $0x1e8] sm:$0xff]
        %v817 = vld [vmem:[#allocation2 + $0x1f0] sm:$0xff]
        %v818 = vld [vmem:[#allocation2 + $0x1f8] sm:$0xff]
        %v819 = vld [vmem:[#allocation2 + $0x200] sm:$0xff]
        %v820 = vld [vmem:[#allocation2 + $0x208] sm:$0xff]
        %v821 = vld [vmem:[#allocation2 + $0x210] sm:$0xff]
        %v822 = vld [vmem:[#allocation2 + $0x218] sm:$0xff]
        %v823 = vld [vmem:[#allocation2 + $0x220] sm:$0xff]
        %v824 = vld [vmem:[#allocation2 + $0x228] sm:$0xff]
        %v825 = vld [vmem:[#allocation2 + $0x230] sm:$0xff]
        %v826 = vld [vmem:[#allocation2 + $0x238] sm:$0xff]
        %v827 = vld [vmem:[#allocation2 + $0x240] sm:$0xff]
        %v828 = vld [vmem:[#allocation2 + $0x248] sm:$0xff]
        %v829 = vld [vmem:[#allocation2 + $0x250] sm:$0xff]
        %v830 = vld [vmem:[#allocation2 + $0x258] sm:$0xff]
        %v831 = vld [vmem:[#allocation2 + $0x260] sm:$0xff]
        %v832 = vld [vmem:[#allocation2 + $0x268] sm:$0xff]
        %v833 = vld [vmem:[#allocation2 + $0x270] sm:$0xff]
        %v834 = vld [vmem:[#allocation2 + $0x278] sm:$0xff]
        %v835 = vld [vmem:[#allocation2 + $0x280] sm:$0xff]
        %v836 = vld [vmem:[#allocation2 + $0x288] sm:$0xff]
        %v837 = vld [vmem:[#allocation2 + $0x290] sm:$0xff]
        %v838 = vld [vmem:[#allocation2 + $0x298] sm:$0xff]
        %v839 = vld [vmem:[#allocation2 + $0x2a0] sm:$0xff]
        %v840 = vld [vmem:[#allocation2 + $0x2a8] sm:$0xff]
        %v841 = vld [vmem:[#allocation2 + $0x2b0] sm:$0xff]
        %v842 = vld [vmem:[#allocation2 + $0x2b8] sm:$0xff]
        %v843 = vld [vmem:[#allocation2 + $0x2c0] sm:$0xff]
        %v844 = vld [vmem:[#allocation2 + $0x2c8] sm:$0xff]
        %v845 = vld [vmem:[#allocation2 + $0x2d0] sm:$0xff]
        %v846 = vld [vmem:[#allocation2 + $0x2d8] sm:$0xff]
        %v847 = vld [vmem:[#allocation2 + $0x2e0] sm:$0xff]
        %v848 = vld [vmem:[#allocation2 + $0x2e8] sm:$0xff]
        %v849 = vld [vmem:[#allocation2 + $0x2f0] sm:$0xff]
        %v850 = vld [vmem:[#allocation2 + $0x2f8] sm:$0xff]
        %v851 = vld [vmem:[#allocation2 + $0x300] sm:$0xff]
        %v852 = vld [vmem:[#allocation2 + $0x308] sm:$0xff]
        %v853 = vld [vmem:[#allocation2 + $0x310] sm:$0xff]
        %v854 = vld [vmem:[#allocation2 + $0x318] sm:$0xff]
        %v855 = vld [vmem:[#allocation2 + $0x320] sm:$0xff]
        %v856 = vld [vmem:[#allocation2 + $0x328] sm:$0xff]
        %v857 = vld [vmem:[#allocation2 + $0x330] sm:$0xff]
        %v858 = vld [vmem:[#allocation2 + $0x338] sm:$0xff]
        %v859 = vld [vmem:[#allocation2 + $0x340] sm:$0xff]
        %v860 = vld [vmem:[#allocation2 + $0x348] sm:$0xff]
        %v861 = vld [vmem:[#allocation2 + $0x350] sm:$0xff]
        %v862 = vld [vmem:[#allocation2 + $0x358] sm:$0xff]
        %v863 = vld [vmem:[#allocation2 + $0x360] sm:$0xff]
        %v864 = vld [vmem:[#allocation2 + $0x368] sm:$0xff]
        %v865 = vld [vmem:[#allocation2 + $0x370] sm:$0xff]
        %v866 = vld [vmem:[#allocation2 + $0x378] sm:$0xff]
        %v867 = vld [vmem:[#allocation2 + $0x380] sm:$0xff]
        %v868 = vld [vmem:[#allocation2 + $0x388] sm:$0xff]
        %v869 = vld [vmem:[#allocation2 + $0x390] sm:$0xff]
        %v870 = vld [vmem:[#allocation2 + $0x398] sm:$0xff]
        %v871 = vld [vmem:[#allocation2 + $0x3a0] sm:$0xff]
        %v872 = vld [vmem:[#allocation2 + $0x3a8] sm:$0xff]
        %v873 = vld [vmem:[#allocation2 + $0x3b0] sm:$0xff]
        %v874 = vld [vmem:[#allocation2 + $0x3b8] sm:$0xff]
        %v875 = vld [vmem:[#allocation2 + $0x3c0] sm:$0xff]
        %v876 = vld [vmem:[#allocation2 + $0x3c8] sm:$0xff]
        %v877 = vld [vmem:[#allocation2 + $0x3d0] sm:$0xff]
        %v878 = vld [vmem:[#allocation2 + $0x3d8] sm:$0xff]
        %v879 = vld [vmem:[#allocation2 + $0x3e0] sm:$0xff]
        %v880 = vld [vmem:[#allocation2 + $0x3e8] sm:$0xff]
        %v881 = vld [vmem:[#allocation2 + $0x3f0] sm:$0xff]
        %v882 = vld [vmem:[#allocation2 + $0x3f8] sm:$0xff]
        %v883 = vld [vmem:[#allocation2 + $0x400] sm:$0xff]
        %v884 = vld [vmem:[#allocation2 + $0x408] sm:$0xff]
        %v885 = vld [vmem:[#allocation2 + $0x410] sm:$0xff]
        %v886 = vld [vmem:[#allocation2 + $0x418] sm:$0xff]
        %v887 = vld [vmem:[#allocation2 + $0x420] sm:$0xff]
        %v888 = vld [vmem:[#allocation2 + $0x428] sm:$0xff]
        %v889 = vld [vmem:[#allocation2 + $0x430] sm:$0xff]
        %v890 = vld [vmem:[#allocation2 + $0x438] sm:$0xff]
        %v891 = vld [vmem:[#allocation2 + $0x440] sm:$0xff]
        %v892 = vld [vmem:[#allocation2 + $0x448] sm:$0xff]
        %v893 = vld [vmem:[#allocation2 + $0x450] sm:$0xff]
        %v894 = vld [vmem:[#allocation2 + $0x458] sm:$0xff]
        %v895 = vld [vmem:[#allocation2 + $0x460] sm:$0xff]
        %v896 = vld [vmem:[#allocation2 + $0x468] sm:$0xff]
        %v897 = vld [vmem:[#allocation2 + $0x470] sm:$0xff]
        %v898 = vld [vmem:[#allocation2 + $0x478] sm:$0xff]
        %v899 = vld [vmem:[#allocation2 + $0x480] sm:$0xff]
        %v900 = vld [vmem:[#allocation2 + $0x488] sm:$0xff]
        %v901 = vld [vmem:[#allocation2 + $0x490] sm:$0xff]
        %v902 = vld [vmem:[#allocation2 + $0x498] sm:$0xff]
        %v903 = vld [vmem:[#allocation2 + $0x4a0] sm:$0xff]
        %v904 = vld [vmem:[#allocation2 + $0x4a8] sm:$0xff]
        %v905 = vld [vmem:[#allocation2 + $0x4b0] sm:$0xff]
        %v906 = vld [vmem:[#allocation2 + $0x4b8] sm:$0xff]
        %v907 = vld [vmem:[#allocation2 + $0x4c0] sm:$0xff]
        %v908 = vld [vmem:[#allocation2 + $0x4c8] sm:$0xff]
        %v909 = vld [vmem:[#allocation2 + $0x4d0] sm:$0xff]
        %v910 = vld [vmem:[#allocation2 + $0x4d8] sm:$0xff]
        %v911 = vld [vmem:[#allocation2 + $0x4e0] sm:$0xff]
        %v912 = vld [vmem:[#allocation2 + $0x4e8] sm:$0xff]
        %v913 = vld [vmem:[#allocation2 + $0x4f0] sm:$0xff]
        %v914 = vld [vmem:[#allocation2 + $0x4f8] sm:$0xff]
        %v915 = vld [vmem:[#allocation2 + $0x500] sm:$0xff]
        %v916 = vld [vmem:[#allocation2 + $0x508] sm:$0xff]
        %v917 = vld [vmem:[#allocation2 + $0x510] sm:$0xff]
        %v918 = vld [vmem:[#allocation2 + $0x518] sm:$0xff]
        %v919 = vld [vmem:[#allocation2 + $0x520] sm:$0xff]
        %v920 = vld [vmem:[#allocation2 + $0x528] sm:$0xff]
        %v921 = vld [vmem:[#allocation2 + $0x530] sm:$0xff]
        %v922 = vld [vmem:[#allocation2 + $0x538] sm:$0xff]
        %v923 = vld [vmem:[#allocation2 + $0x540] sm:$0xff]
        %v924 = vld [vmem:[#allocation2 + $0x548] sm:$0xff]
        %v925 = vld [vmem:[#allocation2 + $0x550] sm:$0xff]
        %v926 = vld [vmem:[#allocation2 + $0x558] sm:$0xff]
        %v927 = vld [vmem:[#allocation2 + $0x560] sm:$0xff]
        %v928 = vld [vmem:[#allocation2 + $0x568] sm:$0xff]
        %v929 = vld [vmem:[#allocation2 + $0x570] sm:$0xff]
        %v930 = vld [vmem:[#allocation2 + $0x578] sm:$0xff]
        %v931 = vld [vmem:[#allocation2 + $0x580] sm:$0xff]
        %v932 = vld [vmem:[#allocation2 + $0x588] sm:$0xff]
        %v933 = vld [vmem:[#allocation2 + $0x590] sm:$0xff]
        %v934 = vld [vmem:[#allocation2 + $0x598] sm:$0xff]
        %v935 = vld [vmem:[#allocation2 + $0x5a0] sm:$0xff]
        %v936 = vld [vmem:[#allocation2 + $0x5a8] sm:$0xff]
        %v937 = vld [vmem:[#allocation2 + $0x5b0] sm:$0xff]
        %v938 = vld [vmem:[#allocation2 + $0x5b8] sm:$0xff]
        %v939 = vld [vmem:[#allocation2 + $0x5c0] sm:$0xff]
        %v940 = vld [vmem:[#allocation2 + $0x5c8] sm:$0xff]
        %v941 = vld [vmem:[#allocation2 + $0x5d0] sm:$0xff]
        %v942 = vld [vmem:[#allocation2 + $0x5d8] sm:$0xff]
        %v943 = vld [vmem:[#allocation2 + $0x5e0] sm:$0xff]
        %v944 = vld [vmem:[#allocation2 + $0x5e8] sm:$0xff]
        %v945 = vld [vmem:[#allocation2 + $0x5f0] sm:$0xff]
        %v946 = vld [vmem:[#allocation2 + $0x5f8] sm:$0xff]
        %v947 = vld [vmem:[#allocation2 + $0x600] sm:$0xff]
        %v948 = vld [vmem:[#allocation2 + $0x608] sm:$0xff]
        %v949 = vld [vmem:[#allocation2 + $0x610] sm:$0xff]
        %v950 = vld [vmem:[#allocation2 + $0x618] sm:$0xff]
        %v951 = vld [vmem:[#allocation2 + $0x620] sm:$0xff]
        %v952 = vld [vmem:[#allocation2 + $0x628] sm:$0xff]
        %v953 = vld [vmem:[#allocation2 + $0x630] sm:$0xff]
        %v954 = vld [vmem:[#allocation2 + $0x638] sm:$0xff]
        %v955 = vld [vmem:[#allocation2 + $0x640] sm:$0xff]
        %v956 = vld [vmem:[#allocation2 + $0x648] sm:$0xff]
        %v957 = vld [vmem:[#allocation2 + $0x650] sm:$0xff]
        %v958 = vld [vmem:[#allocation2 + $0x658] sm:$0xff]
        %v959 = vld [vmem:[#allocation2 + $0x660] sm:$0xff]
        %v960 = vld [vmem:[#allocation2 + $0x668] sm:$0xff]
        %v961 = vld [vmem:[#allocation2 + $0x670] sm:$0xff]
        %v962 = vld [vmem:[#allocation2 + $0x678] sm:$0xff]
        %v963 = vld [vmem:[#allocation2 + $0x680] sm:$0xff]
        %v964 = vld [vmem:[#allocation2 + $0x688] sm:$0xff]
        %v965 = vld [vmem:[#allocation2 + $0x690] sm:$0xff]
        %v966 = vld [vmem:[#allocation2 + $0x698] sm:$0xff]
        %v967 = vld [vmem:[#allocation2 + $0x6a0] sm:$0xff]
        %v968 = vld [vmem:[#allocation2 + $0x6a8] sm:$0xff]
        %v969 = vld [vmem:[#allocation2 + $0x6b0] sm:$0xff]
        %v970 = vld [vmem:[#allocation2 + $0x6b8] sm:$0xff]
        %v971 = vld [vmem:[#allocation2 + $0x6c0] sm:$0xff]
        %v972 = vld [vmem:[#allocation2 + $0x6c8] sm:$0xff]
        %v973 = vld [vmem:[#allocation2 + $0x6d0] sm:$0xff]
        %v974 = vld [vmem:[#allocation2 + $0x6d8] sm:$0xff]
        %v975 = vld [vmem:[#allocation2 + $0x6e0] sm:$0xff]
        %v976 = vld [vmem:[#allocation2 + $0x6e8] sm:$0xff]
        %v977 = vld [vmem:[#allocation2 + $0x6f0] sm:$0xff]
        %v978 = vld [vmem:[#allocation2 + $0x6f8] sm:$0xff]
        %v979 = vld [vmem:[#allocation2 + $0x700] sm:$0xff]
        %v980 = vld [vmem:[#allocation2 + $0x708] sm:$0xff]
        %v981 = vld [vmem:[#allocation2 + $0x710] sm:$0xff]
        %v982 = vld [vmem:[#allocation2 + $0x718] sm:$0xff]
        %v983 = vld [vmem:[#allocation2 + $0x720] sm:$0xff]
        %v984 = vld [vmem:[#allocation2 + $0x728] sm:$0xff]
        %v985 = vld [vmem:[#allocation2 + $0x730] sm:$0xff]
        %v986 = vld [vmem:[#allocation2 + $0x738] sm:$0xff]
        %v987 = vld [vmem:[#allocation2 + $0x740] sm:$0xff]
        %v988 = vld [vmem:[#allocation2 + $0x748] sm:$0xff]
        %v989 = vld [vmem:[#allocation2 + $0x750] sm:$0xff]
        %v990 = vld [vmem:[#allocation2 + $0x758] sm:$0xff]
        %v991 = vld [vmem:[#allocation2 + $0x760] sm:$0xff]
        %v992 = vld [vmem:[#allocation2 + $0x768] sm:$0xff]
        %v993 = vld [vmem:[#allocation2 + $0x770] sm:$0xff]
        %v994 = vld [vmem:[#allocation2 + $0x778] sm:$0xff]
        %v995 = vld [vmem:[#allocation2 + $0x780] sm:$0xff]
        %v996 = vld [vmem:[#allocation2 + $0x788] sm:$0xff]
        %v997 = vld [vmem:[#allocation2 + $0x790] sm:$0xff]
        %v998 = vld [vmem:[#allocation2 + $0x798] sm:$0xff]
        %v999 = vld [vmem:[#allocation2 + $0x7a0] sm:$0xff]
        %v1000 = vld [vmem:[#allocation2 + $0x7a8] sm:$0xff]
        %v1001 = vld [vmem:[#allocation2 + $0x7b0] sm:$0xff]
        %v1002 = vld [vmem:[#allocation2 + $0x7b8] sm:$0xff]
        %v1003 = vld [vmem:[#allocation2 + $0x7c0] sm:$0xff]
        %v1004 = vld [vmem:[#allocation2 + $0x7c8] sm:$0xff]
        %v1005 = vld [vmem:[#allocation2 + $0x7d0] sm:$0xff]
        %v1006 = vld [vmem:[#allocation2 + $0x7d8] sm:$0xff]
        %v1007 = vld [vmem:[#allocation2 + $0x7e0] sm:$0xff]
        %v1008 = vld [vmem:[#allocation2 + $0x7e8] sm:$0xff]
        %v1009 = vld [vmem:[#allocation2 + $0x7f0] sm:$0xff]
        %v1010 = vld [vmem:[#allocation2 + $0x7f8] sm:$0xff]
        %v1011 = vld [vmem:[#allocation2 + $0x800] sm:$0xff]
        %v1012 = vld [vmem:[#allocation2 + $0x808] sm:$0xff]
        %v1013 = vld [vmem:[#allocation2 + $0x810] sm:$0xff]
        %v1014 = vld [vmem:[#allocation2 + $0x818] sm:$0xff]
        %v1015 = vld [vmem:[#allocation2 + $0x820] sm:$0xff]
        %v1016 = vld [vmem:[#allocation2 + $0x828] sm:$0xff]
        %v1017 = vld [vmem:[#allocation2 + $0x830] sm:$0xff]
        %v1018 = vld [vmem:[#allocation2 + $0x838] sm:$0xff]
        %v1019 = vld [vmem:[#allocation2 + $0x840] sm:$0xff]
        %v1020 = vld [vmem:[#allocation2 + $0x848] sm:$0xff]
        %v1021 = vld [vmem:[#allocation2 + $0x850] sm:$0xff]
        %v1022 = vld [vmem:[#allocation2 + $0x858] sm:$0xff]
        %v1023 = vld [vmem:[#allocation2 + $0x860] sm:$0xff]
        %v1024 = vld [vmem:[#allocation2 + $0x868] sm:$0xff]
        %v1025 = vld [vmem:[#allocation2 + $0x870] sm:$0xff]
        %v1026 = vld [vmem:[#allocation2 + $0x878] sm:$0xff]
        %v1027 = vld [vmem:[#allocation2 + $0x880] sm:$0xff]
        %v1028 = vld [vmem:[#allocation2 + $0x888] sm:$0xff]
        %v1029 = vld [vmem:[#allocation2 + $0x890] sm:$0xff]
        %v1030 = vld [vmem:[#allocation2 + $0x898] sm:$0xff]
        %v1031 = vld [vmem:[#allocation2 + $0x8a0] sm:$0xff]
        %v1032 = vld [vmem:[#allocation2 + $0x8a8] sm:$0xff]
        %v1033 = vld [vmem:[#allocation2 + $0x8b0] sm:$0xff]
        %v1034 = vld [vmem:[#allocation2 + $0x8b8] sm:$0xff]
        %v1035 = vld [vmem:[#allocation2 + $0x8c0] sm:$0xff]
        %v1036 = vld [vmem:[#allocation2 + $0x8c8] sm:$0xff]
        %v1037 = vld [vmem:[#allocation2 + $0x8d0] sm:$0xff]
        %v1038 = vld [vmem:[#allocation2 + $0x8d8] sm:$0xff]
        %v1039 = vld [vmem:[#allocation2 + $0x8e0] sm:$0xff]
        %v1040 = vld [vmem:[#allocation2 + $0x8e8] sm:$0xff]
        %v1041 = vld [vmem:[#allocation2 + $0x8f0] sm:$0xff]
        %v1042 = vld [vmem:[#allocation2 + $0x8f8] sm:$0xff]
        %v1043 = vld [vmem:[#allocation2 + $0x900] sm:$0xff]
        %v1044 = vld [vmem:[#allocation2 + $0x908] sm:$0xff]
        %v1045 = vld [vmem:[#allocation2 + $0x910] sm:$0xff]
        %v1046 = vld [vmem:[#allocation2 + $0x918] sm:$0xff]
        %v1047 = vld [vmem:[#allocation2 + $0x920] sm:$0xff]
        %v1048 = vld [vmem:[#allocation2 + $0x928] sm:$0xff]
        %v1049 = vld [vmem:[#allocation2 + $0x930] sm:$0xff]
        %v1050 = vld [vmem:[#allocation2 + $0x938] sm:$0xff]
        %v1051 = vld [vmem:[#allocation2 + $0x940] sm:$0xff]
        %v1052 = vld [vmem:[#allocation2 + $0x948] sm:$0xff]
        %v1053 = vld [vmem:[#allocation2 + $0x950] sm:$0xff]
        %v1054 = vld [vmem:[#allocation2 + $0x958] sm:$0xff]
        %v1055 = vld [vmem:[#allocation2 + $0x960] sm:$0xff]
        %v1056 = vld [vmem:[#allocation2 + $0x968] sm:$0xff]
        %v1057 = vld [vmem:[#allocation2 + $0x970] sm:$0xff]
        %v1058 = vld [vmem:[#allocation2 + $0x978] sm:$0xff]
        %v1059 = vld [vmem:[%s357] sm:$0xff]
        %v1060 = vld [vmem:[%s357 + $0x8] sm:$0xff]
        %v1061 = vld [vmem:[%s357 + $0x10] sm:$0xff]
        %v1062 = vld [vmem:[%s357 + $0x18] sm:$0xff]
        %v1063 = vld [vmem:[%s357 + $0x20] sm:$0xff]
        %v1064 = vld [vmem:[%s357 + $0x28] sm:$0xff]
        %v1065 = vld [vmem:[%s357 + $0x30] sm:$0xff]
        %v1066 = vld [vmem:[%s357 + $0x38] sm:$0xff]
        %v1067 = vld [vmem:[%s357 + $0x40] sm:$0xff]
        %v1068 = vld [vmem:[%s357 + $0x48] sm:$0xff]
        %v1069 = vld [vmem:[%s357 + $0x50] sm:$0xff]
        %v1070 = vld [vmem:[%s357 + $0x58] sm:$0xff]
        %v1071 = vld [vmem:[%s357 + $0x60] sm:$0xff]
        %v1072 = vld [vmem:[%s357 + $0x68] sm:$0xff]
        %v1073 = vld [vmem:[%s357 + $0x70] sm:$0xff]
        %v1074 = vld [vmem:[%s357 + $0x78] sm:$0xff]
        %v1075 = vld [vmem:[%s357 + $0x80] sm:$0xff]
        %v1076 = vld [vmem:[%s357 + $0x88] sm:$0xff]
        %v1077 = vld [vmem:[%s357 + $0x90] sm:$0xff]
        %v1078 = vld [vmem:[%s357 + $0x98] sm:$0xff]
        %v1079 = vld [vmem:[%s357 + $0xa0] sm:$0xff]
        %v1080 = vld [vmem:[%s357 + $0xa8] sm:$0xff]
        %v1081 = vld [vmem:[%s357 + $0xb0] sm:$0xff]
        %v1082 = vld [vmem:[%s357 + $0xb8] sm:$0xff]
        %v1083 = vld [vmem:[%s357 + $0xc0] sm:$0xff]
        %v1084 = vld [vmem:[%s357 + $0xc8] sm:$0xff]
        %v1085 = vld [vmem:[%s357 + $0xd0] sm:$0xff]
        %v1086 = vld [vmem:[%s357 + $0xd8] sm:$0xff]
        %v1087 = vld [vmem:[%s357 + $0xe0] sm:$0xff]
        %v1088 = vld [vmem:[%s357 + $0xe8] sm:$0xff]
        %v1089 = vld [vmem:[%s357 + $0xf0] sm:$0xff]
        %v1090 = vld [vmem:[%s357 + $0xf8] sm:$0xff]
        %v1091 = vld [vmem:[%s357 + $0x100] sm:$0xff]
        %v1092 = vld [vmem:[%s357 + $0x108] sm:$0xff]
        %v1093 = vld [vmem:[%s357 + $0x110] sm:$0xff]
        %v1094 = vld [vmem:[%s357 + $0x118] sm:$0xff]
        %v1095 = vld [vmem:[%s357 + $0x120] sm:$0xff]
        %v1096 = vld [vmem:[%s357 + $0x128] sm:$0xff]
        %v1097 = vld [vmem:[%s357 + $0x130] sm:$0xff]
        %v1098 = vld [vmem:[%s357 + $0x138] sm:$0xff]
        %v1099 = vld [vmem:[%s357 + $0x140] sm:$0xff]
        %v1100 = vld [vmem:[%s357 + $0x148] sm:$0xff]
        %v1101 = vld [vmem:[%s357 + $0x150] sm:$0xff]
        %v1102 = vld [vmem:[%s357 + $0x158] sm:$0xff]
        %v1103 = vld [vmem:[%s357 + $0x160] sm:$0xff]
        %v1104 = vld [vmem:[%s357 + $0x168] sm:$0xff]
        %v1105 = vld [vmem:[%s357 + $0x170] sm:$0xff]
        %v1106 = vld [vmem:[%s357 + $0x178] sm:$0xff]
        %v1107 = vld [vmem:[%s357 + $0x180] sm:$0xff]
        %v1108 = vld [vmem:[%s357 + $0x188] sm:$0xff]
        %v1109 = vld [vmem:[%s357 + $0x190] sm:$0xff]
        %v1110 = vld [vmem:[%s357 + $0x198] sm:$0xff]
        %v1111 = vld [vmem:[%s357 + $0x1a0] sm:$0xff]
        %v1112 = vld [vmem:[%s357 + $0x1a8] sm:$0xff]
        %v1113 = vld [vmem:[%s357 + $0x1b0] sm:$0xff]
        %v1114 = vld [vmem:[%s357 + $0x1b8] sm:$0xff]
        %v1115 = vld [vmem:[%s357 + $0x1c0] sm:$0xff]
        %v1116 = vld [vmem:[%s357 + $0x1c8] sm:$0xff]
        %v1117 = vld [vmem:[%s357 + $0x1d0] sm:$0xff]
        %v1118 = vld [vmem:[%s357 + $0x1d8] sm:$0xff]
        %v1119 = vld [vmem:[%s357 + $0x1e0] sm:$0xff]
        %v1120 = vld [vmem:[%s357 + $0x1e8] sm:$0xff]
        %v1121 = vld [vmem:[%s357 + $0x1f0] sm:$0xff]
        %v1122 = vld [vmem:[%s357 + $0x1f8] sm:$0xff]
        %v1123 = vld [vmem:[%s357 + $0x200] sm:$0xff]
        %v1124 = vld [vmem:[%s357 + $0x208] sm:$0xff]
        %v1125 = vld [vmem:[%s357 + $0x210] sm:$0xff]
        %v1126 = vld [vmem:[%s357 + $0x218] sm:$0xff]
        %v1127 = vld [vmem:[%s357 + $0x220] sm:$0xff]
        %v1128 = vld [vmem:[%s357 + $0x228] sm:$0xff]
        %v1129 = vld [vmem:[%s357 + $0x230] sm:$0xff]
        %v1130 = vld [vmem:[%s357 + $0x238] sm:$0xff]
        %v1131 = vld [vmem:[%s357 + $0x240] sm:$0xff]
        %v1132 = vld [vmem:[%s357 + $0x248] sm:$0xff]
        %v1133 = vld [vmem:[%s357 + $0x250] sm:$0xff]
        %v1134 = vld [vmem:[%s357 + $0x258] sm:$0xff]
        %v1135 = vpack.c.bf16 %v1061, %v1059
        %v1136 = vpack.c.bf16 %v1062, %v1060
        %v1137 = vpack.c.bf16 %v1065, %v1063
        %v1138 = vpack.c.bf16 %v1066, %v1064
        %v1139 = vpack.c.bf16 %v1069, %v1067
        %v1140 = vpack.c.bf16 %v1070, %v1068
        %v1141 = vpack.c.bf16 %v1073, %v1071
        %v1142 = vpack.c.bf16 %v1074, %v1072
        %v1143 = vpack.c.bf16 %v1077, %v1075
        %v1144 = vpack.c.bf16 %v1078, %v1076
        %v1145 = vpack.c.bf16 %v1081, %v1079
        %v1146 = vpack.c.bf16 %v1082, %v1080
        %v1147 = vpack.c.bf16 %v1085, %v1083
        %v1148 = vpack.c.bf16 %v1086, %v1084
        %v1149 = vpack.c.bf16 %v1089, %v1087
        %v1150 = vpack.c.bf16 %v1090, %v1088
        %v1151 = vpack.c.bf16 %v1093, %v1091
        %v1152 = vpack.c.bf16 %v1094, %v1092
        %v1153 = vpack.c.bf16 %v1097, %v1095
        %v1154 = vpack.c.bf16 %v1098, %v1096
        %v1155 = vpack.c.bf16 %v1101, %v1099
        %v1156 = vpack.c.bf16 %v1102, %v1100
        %v1157 = vpack.c.bf16 %v1105, %v1103
        %v1158 = vpack.c.bf16 %v1106, %v1104
        %v1159 = vpack.c.bf16 %v1109, %v1107
        %v1160 = vpack.c.bf16 %v1110, %v1108
        %v1161 = vpack.c.bf16 %v1113, %v1111
        %v1162 = vpack.c.bf16 %v1114, %v1112
        %v1163 = vpack.c.bf16 %v1117, %v1115
        %v1164 = vpack.c.bf16 %v1118, %v1116
        %v1165 = vpack.c.bf16 %v1121, %v1119
        %v1166 = vpack.c.bf16 %v1122, %v1120
        %v1167 = vpack.c.bf16 %v1125, %v1123
        %v1168 = vpack.c.bf16 %v1126, %v1124
        %v1169 = vpack.c.bf16 %v1129, %v1127
        %v1170 = vpack.c.bf16 %v1130, %v1128
        %v1171 = vpack.c.bf16 %v1133, %v1131
        %v1172 = vpack.c.bf16 %v1134, %v1132
        %v1173 = vld [vmem:[%s366] sm:$0xff]
        %v1174 = vld [vmem:[%s366 + $0x8] sm:$0xff]
        %v1175 = vld [vmem:[%s366 + $0x10] sm:$0xff]
        %v1176 = vld [vmem:[%s366 + $0x18] sm:$0xff]
        %v1177 = vld [vmem:[%s366 + $0x20] sm:$0xff]
        %v1178 = vld [vmem:[%s366 + $0x28] sm:$0xff]
        %v1179 = vld [vmem:[%s366 + $0x30] sm:$0xff]
        %v1180 = vld [vmem:[%s366 + $0x38] sm:$0xff]
        %v1181 = vld [vmem:[%s366 + $0x40] sm:$0xff]
        %v1182 = vld [vmem:[%s366 + $0x48] sm:$0xff]
        %v1183 = vld [vmem:[%s366 + $0x50] sm:$0xff]
        %v1184 = vld [vmem:[%s366 + $0x58] sm:$0xff]
        %v1185 = vld [vmem:[%s366 + $0x60] sm:$0xff]
        %v1186 = vld [vmem:[%s366 + $0x68] sm:$0xff]
        %v1187 = vld [vmem:[%s366 + $0x70] sm:$0xff]
        %v1188 = vld [vmem:[%s366 + $0x78] sm:$0xff]
        %v1189 = vld [vmem:[%s366 + $0x80] sm:$0xff]
        %v1190 = vld [vmem:[%s366 + $0x88] sm:$0xff]
        %v1191 = vld [vmem:[%s366 + $0x90] sm:$0xff]
        %v1192 = vld [vmem:[%s366 + $0x98] sm:$0xff]
        %v1193 = vld [vmem:[%s366 + $0xa0] sm:$0xff]
        %v1194 = vld [vmem:[%s366 + $0xa8] sm:$0xff]
        %v1195 = vld [vmem:[%s366 + $0xb0] sm:$0xff]
        %v1196 = vld [vmem:[%s366 + $0xb8] sm:$0xff]
        %v1197 = vld [vmem:[%s366 + $0xc0] sm:$0xff]
        %v1198 = vld [vmem:[%s366 + $0xc8] sm:$0xff]
        %v1199 = vld [vmem:[%s366 + $0xd0] sm:$0xff]
        %v1200 = vld [vmem:[%s366 + $0xd8] sm:$0xff]
        %v1201 = vld [vmem:[%s366 + $0xe0] sm:$0xff]
        %v1202 = vld [vmem:[%s366 + $0xe8] sm:$0xff]
        %v1203 = vld [vmem:[%s366 + $0xf0] sm:$0xff]
        %v1204 = vld [vmem:[%s366 + $0xf8] sm:$0xff]
        %v1205 = vld [vmem:[%s366 + $0x100] sm:$0xff]
        %v1206 = vld [vmem:[%s366 + $0x108] sm:$0xff]
        %v1207 = vld [vmem:[%s366 + $0x110] sm:$0xff]
        %v1208 = vld [vmem:[%s366 + $0x118] sm:$0xff]
        %v1209 = vld [vmem:[%s366 + $0x120] sm:$0xff]
        %v1210 = vld [vmem:[%s366 + $0x128] sm:$0xff]
        %v1211 = vld [vmem:[%s366 + $0x130] sm:$0xff]
        %v1212 = vld [vmem:[%s366 + $0x138] sm:$0xff]
        %v1213 = vld [vmem:[%s366 + $0x140] sm:$0xff]
        %v1214 = vld [vmem:[%s366 + $0x148] sm:$0xff]
        %v1215 = vld [vmem:[%s366 + $0x150] sm:$0xff]
        %v1216 = vld [vmem:[%s366 + $0x158] sm:$0xff]
        %v1217 = vld [vmem:[%s366 + $0x160] sm:$0xff]
        %v1218 = vld [vmem:[%s366 + $0x168] sm:$0xff]
        %v1219 = vld [vmem:[%s366 + $0x170] sm:$0xff]
        %v1220 = vld [vmem:[%s366 + $0x178] sm:$0xff]
        %v1221 = vld [vmem:[%s366 + $0x180] sm:$0xff]
        %v1222 = vld [vmem:[%s366 + $0x188] sm:$0xff]
        %v1223 = vld [vmem:[%s366 + $0x190] sm:$0xff]
        %v1224 = vld [vmem:[%s366 + $0x198] sm:$0xff]
        %v1225 = vld [vmem:[%s366 + $0x1a0] sm:$0xff]
        %v1226 = vld [vmem:[%s366 + $0x1a8] sm:$0xff]
        %v1227 = vld [vmem:[%s366 + $0x1b0] sm:$0xff]
        %v1228 = vld [vmem:[%s366 + $0x1b8] sm:$0xff]
        %v1229 = vld [vmem:[%s366 + $0x1c0] sm:$0xff]
        %v1230 = vld [vmem:[%s366 + $0x1c8] sm:$0xff]
        %v1231 = vld [vmem:[%s366 + $0x1d0] sm:$0xff]
        %v1232 = vld [vmem:[%s366 + $0x1d8] sm:$0xff]
        %v1233 = vld [vmem:[%s366 + $0x1e0] sm:$0xff]
        %v1234 = vld [vmem:[%s366 + $0x1e8] sm:$0xff]
        %v1235 = vld [vmem:[%s366 + $0x1f0] sm:$0xff]
        %v1236 = vld [vmem:[%s366 + $0x1f8] sm:$0xff]
        %v1237 = vld [vmem:[%s366 + $0x200] sm:$0xff]
        %v1238 = vld [vmem:[%s366 + $0x208] sm:$0xff]
        %v1239 = vld [vmem:[%s366 + $0x210] sm:$0xff]
        %v1240 = vld [vmem:[%s366 + $0x218] sm:$0xff]
        %v1241 = vld [vmem:[%s366 + $0x220] sm:$0xff]
        %v1242 = vld [vmem:[%s366 + $0x228] sm:$0xff]
        %v1243 = vld [vmem:[%s366 + $0x230] sm:$0xff]
        %v1244 = vld [vmem:[%s366 + $0x238] sm:$0xff]
        %v1245 = vld [vmem:[%s366 + $0x240] sm:$0xff]
        %v1246 = vld [vmem:[%s366 + $0x248] sm:$0xff]
        %v1247 = vld [vmem:[%s366 + $0x250] sm:$0xff]
        %v1248 = vld [vmem:[%s366 + $0x258] sm:$0xff]
        %v1249 = vld [vmem:[%s366 + $0x260] sm:$0xff]
        %v1250 = vld [vmem:[%s366 + $0x268] sm:$0xff]
        %v1251 = vld [vmem:[%s366 + $0x270] sm:$0xff]
        %v1252 = vld [vmem:[%s366 + $0x278] sm:$0xff]
        %v1253 = vld [vmem:[%s366 + $0x280] sm:$0xff]
        %v1254 = vld [vmem:[%s366 + $0x288] sm:$0xff]
        %v1255 = vld [vmem:[%s366 + $0x290] sm:$0xff]
        %v1256 = vld [vmem:[%s366 + $0x298] sm:$0xff]
        %v1257 = vld [vmem:[%s366 + $0x2a0] sm:$0xff]
        %v1258 = vld [vmem:[%s366 + $0x2a8] sm:$0xff]
        %v1259 = vld [vmem:[%s366 + $0x2b0] sm:$0xff]
        %v1260 = vld [vmem:[%s366 + $0x2b8] sm:$0xff]
        %v1261 = vld [vmem:[%s366 + $0x2c0] sm:$0xff]
        %v1262 = vld [vmem:[%s366 + $0x2c8] sm:$0xff]
        %v1263 = vld [vmem:[%s366 + $0x2d0] sm:$0xff]
        %v1264 = vld [vmem:[%s366 + $0x2d8] sm:$0xff]
        %v1265 = vld [vmem:[%s366 + $0x2e0] sm:$0xff]
        %v1266 = vld [vmem:[%s366 + $0x2e8] sm:$0xff]
        %v1267 = vld [vmem:[%s366 + $0x2f0] sm:$0xff]
        %v1268 = vld [vmem:[%s366 + $0x2f8] sm:$0xff]
        %v1269 = vld [vmem:[%s366 + $0x300] sm:$0xff]
        %v1270 = vld [vmem:[%s366 + $0x308] sm:$0xff]
        %v1271 = vld [vmem:[%s366 + $0x310] sm:$0xff]
        %v1272 = vld [vmem:[%s366 + $0x318] sm:$0xff]
        %v1273 = vld [vmem:[%s366 + $0x320] sm:$0xff]
        %v1274 = vld [vmem:[%s366 + $0x328] sm:$0xff]
        %v1275 = vld [vmem:[%s366 + $0x330] sm:$0xff]
        %v1276 = vld [vmem:[%s366 + $0x338] sm:$0xff]
        %v1277 = vld [vmem:[%s366 + $0x340] sm:$0xff]
        %v1278 = vld [vmem:[%s366 + $0x348] sm:$0xff]
        %v1279 = vld [vmem:[%s366 + $0x350] sm:$0xff]
        %v1280 = vld [vmem:[%s366 + $0x358] sm:$0xff]
        %v1281 = vld [vmem:[%s366 + $0x360] sm:$0xff]
        %v1282 = vld [vmem:[%s366 + $0x368] sm:$0xff]
        %v1283 = vld [vmem:[%s366 + $0x370] sm:$0xff]
        %v1284 = vld [vmem:[%s366 + $0x378] sm:$0xff]
        %v1285 = vld [vmem:[%s366 + $0x380] sm:$0xff]
        %v1286 = vld [vmem:[%s366 + $0x388] sm:$0xff]
        %v1287 = vld [vmem:[%s366 + $0x390] sm:$0xff]
        %v1288 = vld [vmem:[%s366 + $0x398] sm:$0xff]
        %v1289 = vld [vmem:[%s366 + $0x3a0] sm:$0xff]
        %v1290 = vld [vmem:[%s366 + $0x3a8] sm:$0xff]
        %v1291 = vld [vmem:[%s366 + $0x3b0] sm:$0xff]
        %v1292 = vld [vmem:[%s366 + $0x3b8] sm:$0xff]
        %v1293 = vld [vmem:[%s366 + $0x3c0] sm:$0xff]
        %v1294 = vld [vmem:[%s366 + $0x3c8] sm:$0xff]
        %v1295 = vld [vmem:[%s366 + $0x3d0] sm:$0xff]
        %v1296 = vld [vmem:[%s366 + $0x3d8] sm:$0xff]
        %v1297 = vld [vmem:[%s366 + $0x3e0] sm:$0xff]
        %v1298 = vld [vmem:[%s366 + $0x3e8] sm:$0xff]
        %v1299 = vld [vmem:[%s366 + $0x3f0] sm:$0xff]
        %v1300 = vld [vmem:[%s366 + $0x3f8] sm:$0xff]
        %v1429 = vunpack.c.l.b16 %v1173
        %v1430 = vunpack.c.h.b16 %v1173
        %v1431 = vunpack.c.l.b16 %v1174
        %v1432 = vunpack.c.h.b16 %v1174
        %v1433 = vunpack.c.l.b16 %v1175
        %v1434 = vunpack.c.h.b16 %v1175
        %v1435 = vunpack.c.l.b16 %v1176
        %v1436 = vunpack.c.h.b16 %v1176
        %v1437 = vunpack.c.l.b16 %v1177
        %v1438 = vunpack.c.h.b16 %v1177
        %v1439 = vunpack.c.l.b16 %v1178
        %v1440 = vunpack.c.h.b16 %v1178
        %v1441 = vunpack.c.l.b16 %v1179
        %v1442 = vunpack.c.h.b16 %v1179
        %v1443 = vunpack.c.l.b16 %v1180
        %v1444 = vunpack.c.h.b16 %v1180
        %v1445 = vunpack.c.l.b16 %v1181
        %v1446 = vunpack.c.h.b16 %v1181
        %v1447 = vunpack.c.l.b16 %v1182
        %v1448 = vunpack.c.h.b16 %v1182
        %v1449 = vunpack.c.l.b16 %v1183
        %v1450 = vunpack.c.h.b16 %v1183
        %v1451 = vunpack.c.l.b16 %v1184
        %v1452 = vunpack.c.h.b16 %v1184
        %v1453 = vunpack.c.l.b16 %v1185
        %v1454 = vunpack.c.h.b16 %v1185
        %v1455 = vunpack.c.l.b16 %v1186
        %v1456 = vunpack.c.h.b16 %v1186
        %v1457 = vunpack.c.l.b16 %v1187
        %v1458 = vunpack.c.h.b16 %v1187
        %v1459 = vunpack.c.l.b16 %v1188
        %v1460 = vunpack.c.h.b16 %v1188
        %v1461 = vunpack.c.l.b16 %v1189
        %v1462 = vunpack.c.h.b16 %v1189
        %v1463 = vunpack.c.l.b16 %v1190
        %v1464 = vunpack.c.h.b16 %v1190
        %v1465 = vunpack.c.l.b16 %v1191
        %v1466 = vunpack.c.h.b16 %v1191
        %v1467 = vunpack.c.l.b16 %v1192
        %v1468 = vunpack.c.h.b16 %v1192
        %v1469 = vunpack.c.l.b16 %v1193
        %v1470 = vunpack.c.h.b16 %v1193
        %v1471 = vunpack.c.l.b16 %v1194
        %v1472 = vunpack.c.h.b16 %v1194
        %v1473 = vunpack.c.l.b16 %v1195
        %v1474 = vunpack.c.h.b16 %v1195
        %v1475 = vunpack.c.l.b16 %v1196
        %v1476 = vunpack.c.h.b16 %v1196
        %v1477 = vunpack.c.l.b16 %v1197
        %v1478 = vunpack.c.h.b16 %v1197
        %v1479 = vunpack.c.l.b16 %v1198
        %v1480 = vunpack.c.h.b16 %v1198
        %v1481 = vunpack.c.l.b16 %v1199
        %v1482 = vunpack.c.h.b16 %v1199
        %v1483 = vunpack.c.l.b16 %v1200
        %v1484 = vunpack.c.h.b16 %v1200
        %v1485 = vunpack.c.l.b16 %v1201
        %v1486 = vunpack.c.h.b16 %v1201
        %v1487 = vunpack.c.l.b16 %v1202
        %v1488 = vunpack.c.h.b16 %v1202
        %v1489 = vunpack.c.l.b16 %v1203
        %v1490 = vunpack.c.h.b16 %v1203
        %v1491 = vunpack.c.l.b16 %v1204
        %v1492 = vunpack.c.h.b16 %v1204
        %v1493 = vunpack.c.l.b16 %v1205
        %v1494 = vunpack.c.h.b16 %v1205
        %v1495 = vunpack.c.l.b16 %v1206
        %v1496 = vunpack.c.h.b16 %v1206
        %v1497 = vunpack.c.l.b16 %v1207
        %v1498 = vunpack.c.h.b16 %v1207
        %v1499 = vunpack.c.l.b16 %v1208
        %v1500 = vunpack.c.h.b16 %v1208
        %v1501 = vunpack.c.l.b16 %v1209
        %v1502 = vunpack.c.h.b16 %v1209
        %v1503 = vunpack.c.l.b16 %v1210
        %v1504 = vunpack.c.h.b16 %v1210
        %v1505 = vunpack.c.l.b16 %v1211
        %v1506 = vunpack.c.h.b16 %v1211
        %v1507 = vunpack.c.l.b16 %v1212
        %v1508 = vunpack.c.h.b16 %v1212
        %v1509 = vunpack.c.l.b16 %v1213
        %v1510 = vunpack.c.h.b16 %v1213
        %v1511 = vunpack.c.l.b16 %v1214
        %v1512 = vunpack.c.h.b16 %v1214
        %v1513 = vunpack.c.l.b16 %v1215
        %v1514 = vunpack.c.h.b16 %v1215
        %v1515 = vunpack.c.l.b16 %v1216
        %v1516 = vunpack.c.h.b16 %v1216
        %v1517 = vunpack.c.l.b16 %v1217
        %v1518 = vunpack.c.h.b16 %v1217
        %v1519 = vunpack.c.l.b16 %v1218
        %v1520 = vunpack.c.h.b16 %v1218
        %v1521 = vunpack.c.l.b16 %v1219
        %v1522 = vunpack.c.h.b16 %v1219
        %v1523 = vunpack.c.l.b16 %v1220
        %v1524 = vunpack.c.h.b16 %v1220
        %v1525 = vunpack.c.l.b16 %v1221
        %v1526 = vunpack.c.h.b16 %v1221
        %v1527 = vunpack.c.l.b16 %v1222
        %v1528 = vunpack.c.h.b16 %v1222
        %v1529 = vunpack.c.l.b16 %v1223
        %v1530 = vunpack.c.h.b16 %v1223
        %v1531 = vunpack.c.l.b16 %v1224
        %v1532 = vunpack.c.h.b16 %v1224
        %v1533 = vunpack.c.l.b16 %v1225
        %v1534 = vunpack.c.h.b16 %v1225
        %v1535 = vunpack.c.l.b16 %v1226
        %v1536 = vunpack.c.h.b16 %v1226
        %v1537 = vunpack.c.l.b16 %v1227
        %v1538 = vunpack.c.h.b16 %v1227
        %v1539 = vunpack.c.l.b16 %v1228
        %v1540 = vunpack.c.h.b16 %v1228
        %v1541 = vunpack.c.l.b16 %v1229
        %v1542 = vunpack.c.h.b16 %v1229
        %v1543 = vunpack.c.l.b16 %v1230
        %v1544 = vunpack.c.h.b16 %v1230
        %v1545 = vunpack.c.l.b16 %v1231
        %v1546 = vunpack.c.h.b16 %v1231
        %v1547 = vunpack.c.l.b16 %v1232
        %v1548 = vunpack.c.h.b16 %v1232
        %v1549 = vunpack.c.l.b16 %v1233
        %v1550 = vunpack.c.h.b16 %v1233
        %v1551 = vunpack.c.l.b16 %v1234
        %v1552 = vunpack.c.h.b16 %v1234
        %v1553 = vunpack.c.l.b16 %v1235
        %v1554 = vunpack.c.h.b16 %v1235
        %v1555 = vunpack.c.l.b16 %v1236
        %v1556 = vunpack.c.h.b16 %v1236
        %v1557 = vunpack.c.l.b16 %v1237
        %v1558 = vunpack.c.h.b16 %v1237
        %v1559 = vunpack.c.l.b16 %v1238
        %v1560 = vunpack.c.h.b16 %v1238
        %v1561 = vunpack.c.l.b16 %v1239
        %v1562 = vunpack.c.h.b16 %v1239
        %v1563 = vunpack.c.l.b16 %v1240
        %v1564 = vunpack.c.h.b16 %v1240
        %v1565 = vunpack.c.l.b16 %v1241
        %v1566 = vunpack.c.h.b16 %v1241
        %v1567 = vunpack.c.l.b16 %v1242
        %v1568 = vunpack.c.h.b16 %v1242
        %v1569 = vunpack.c.l.b16 %v1243
        %v1570 = vunpack.c.h.b16 %v1243
        %v1571 = vunpack.c.l.b16 %v1244
        %v1572 = vunpack.c.h.b16 %v1244
        %v1573 = vunpack.c.l.b16 %v1245
        %v1574 = vunpack.c.h.b16 %v1245
        %v1575 = vunpack.c.l.b16 %v1246
        %v1576 = vunpack.c.h.b16 %v1246
        %v1577 = vunpack.c.l.b16 %v1247
        %v1578 = vunpack.c.h.b16 %v1247
        %v1579 = vunpack.c.l.b16 %v1248
        %v1580 = vunpack.c.h.b16 %v1248
        %v1581 = vunpack.c.l.b16 %v1249
        %v1582 = vunpack.c.h.b16 %v1249
        %v1583 = vunpack.c.l.b16 %v1250
        %v1584 = vunpack.c.h.b16 %v1250
        %v1585 = vunpack.c.l.b16 %v1251
        %v1586 = vunpack.c.h.b16 %v1251
        %v1587 = vunpack.c.l.b16 %v1252
        %v1588 = vunpack.c.h.b16 %v1252
        %v1589 = vunpack.c.l.b16 %v1253
        %v1590 = vunpack.c.h.b16 %v1253
        %v1591 = vunpack.c.l.b16 %v1254
        %v1592 = vunpack.c.h.b16 %v1254
        %v1593 = vunpack.c.l.b16 %v1255
        %v1594 = vunpack.c.h.b16 %v1255
        %v1595 = vunpack.c.l.b16 %v1256
        %v1596 = vunpack.c.h.b16 %v1256
        %v1597 = vunpack.c.l.b16 %v1257
        %v1598 = vunpack.c.h.b16 %v1257
        %v1599 = vunpack.c.l.b16 %v1258
        %v1600 = vunpack.c.h.b16 %v1258
        %v1601 = vunpack.c.l.b16 %v1259
        %v1602 = vunpack.c.h.b16 %v1259
        %v1603 = vunpack.c.l.b16 %v1260
        %v1604 = vunpack.c.h.b16 %v1260
        %v1605 = vunpack.c.l.b16 %v1261
        %v1606 = vunpack.c.h.b16 %v1261
        %v1607 = vunpack.c.l.b16 %v1262
        %v1608 = vunpack.c.h.b16 %v1262
        %v1609 = vunpack.c.l.b16 %v1263
        %v1610 = vunpack.c.h.b16 %v1263
        %v1611 = vunpack.c.l.b16 %v1264
        %v1612 = vunpack.c.h.b16 %v1264
        %v1613 = vunpack.c.l.b16 %v1265
        %v1614 = vunpack.c.h.b16 %v1265
        %v1615 = vunpack.c.l.b16 %v1266
        %v1616 = vunpack.c.h.b16 %v1266
        %v1617 = vunpack.c.l.b16 %v1267
        %v1618 = vunpack.c.h.b16 %v1267
        %v1619 = vunpack.c.l.b16 %v1268
        %v1620 = vunpack.c.h.b16 %v1268
        %v1621 = vunpack.c.l.b16 %v1269
        %v1622 = vunpack.c.h.b16 %v1269
        %v1623 = vunpack.c.l.b16 %v1270
        %v1624 = vunpack.c.h.b16 %v1270
        %v1625 = vunpack.c.l.b16 %v1271
        %v1626 = vunpack.c.h.b16 %v1271
        %v1627 = vunpack.c.l.b16 %v1272
        %v1628 = vunpack.c.h.b16 %v1272
        %v1629 = vunpack.c.l.b16 %v1273
        %v1630 = vunpack.c.h.b16 %v1273
        %v1631 = vunpack.c.l.b16 %v1274
        %v1632 = vunpack.c.h.b16 %v1274
        %v1633 = vunpack.c.l.b16 %v1275
        %v1634 = vunpack.c.h.b16 %v1275
        %v1635 = vunpack.c.l.b16 %v1276
        %v1636 = vunpack.c.h.b16 %v1276
        %v1637 = vunpack.c.l.b16 %v1277
        %v1638 = vunpack.c.h.b16 %v1277
        %v1639 = vunpack.c.l.b16 %v1278
        %v1640 = vunpack.c.h.b16 %v1278
        %v1641 = vunpack.c.l.b16 %v1279
        %v1642 = vunpack.c.h.b16 %v1279
        %v1643 = vunpack.c.l.b16 %v1280
        %v1644 = vunpack.c.h.b16 %v1280
        %v1645 = vunpack.c.l.b16 %v1281
        %v1646 = vunpack.c.h.b16 %v1281
        %v1647 = vunpack.c.l.b16 %v1282
        %v1648 = vunpack.c.h.b16 %v1282
        %v1649 = vunpack.c.l.b16 %v1283
        %v1650 = vunpack.c.h.b16 %v1283
        %v1651 = vunpack.c.l.b16 %v1284
        %v1652 = vunpack.c.h.b16 %v1284
        %v1653 = vunpack.c.l.b16 %v1285
        %v1654 = vunpack.c.h.b16 %v1285
        %v1655 = vunpack.c.l.b16 %v1286
        %v1656 = vunpack.c.h.b16 %v1286
        %v1657 = vunpack.c.l.b16 %v1287
        %v1658 = vunpack.c.h.b16 %v1287
        %v1659 = vunpack.c.l.b16 %v1288
        %v1660 = vunpack.c.h.b16 %v1288
        %v1661 = vunpack.c.l.b16 %v1289
        %v1662 = vunpack.c.h.b16 %v1289
        %v1663 = vunpack.c.l.b16 %v1290
        %v1664 = vunpack.c.h.b16 %v1290
        %v1665 = vunpack.c.l.b16 %v1291
        %v1666 = vunpack.c.h.b16 %v1291
        %v1667 = vunpack.c.l.b16 %v1292
        %v1668 = vunpack.c.h.b16 %v1292
        %v1669 = vunpack.c.l.b16 %v1293
        %v1670 = vunpack.c.h.b16 %v1293
        %v1671 = vunpack.c.l.b16 %v1294
        %v1672 = vunpack.c.h.b16 %v1294
        %v1673 = vunpack.c.l.b16 %v1295
        %v1674 = vunpack.c.h.b16 %v1295
        %v1675 = vunpack.c.l.b16 %v1296
        %v1676 = vunpack.c.h.b16 %v1296
        %v1677 = vunpack.c.l.b16 %v1297
        %v1678 = vunpack.c.h.b16 %v1297
        %v1679 = vunpack.c.l.b16 %v1298
        %v1680 = vunpack.c.h.b16 %v1298
        %v1681 = vunpack.c.l.b16 %v1299
        %v1682 = vunpack.c.h.b16 %v1299
        %v1683 = vunpack.c.l.b16 %v1300
        %v1684 = vunpack.c.h.b16 %v1300
        %v1685 = vpack.c.b16 %v1437, %v1429
        %v1686 = vpack.c.b16 %v1438, %v1430
        %v1687 = vpack.c.b16 %v1439, %v1431
        %v1688 = vpack.c.b16 %v1440, %v1432
        %v1689 = vpack.c.b16 %v1441, %v1433
        %v1690 = vpack.c.b16 %v1442, %v1434
        %v1691 = vpack.c.b16 %v1443, %v1435
        %v1692 = vpack.c.b16 %v1444, %v1436
        %v1693 = vpack.c.b16 %v1453, %v1445
        %v1694 = vpack.c.b16 %v1454, %v1446
        %v1695 = vpack.c.b16 %v1455, %v1447
        %v1696 = vpack.c.b16 %v1456, %v1448
        %v1697 = vpack.c.b16 %v1457, %v1449
        %v1698 = vpack.c.b16 %v1458, %v1450
        %v1699 = vpack.c.b16 %v1459, %v1451
        %v1700 = vpack.c.b16 %v1460, %v1452
        %v1701 = vpack.c.b16 %v1469, %v1461
        %v1702 = vpack.c.b16 %v1470, %v1462
        %v1703 = vpack.c.b16 %v1471, %v1463
        %v1704 = vpack.c.b16 %v1472, %v1464
        %v1705 = vpack.c.b16 %v1473, %v1465
        %v1706 = vpack.c.b16 %v1474, %v1466
        %v1707 = vpack.c.b16 %v1475, %v1467
        %v1708 = vpack.c.b16 %v1476, %v1468
        %v1709 = vpack.c.b16 %v1485, %v1477
        %v1710 = vpack.c.b16 %v1486, %v1478
        %v1711 = vpack.c.b16 %v1487, %v1479
        %v1712 = vpack.c.b16 %v1488, %v1480
        %v1713 = vpack.c.b16 %v1489, %v1481
        %v1714 = vpack.c.b16 %v1490, %v1482
        %v1715 = vpack.c.b16 %v1491, %v1483
        %v1716 = vpack.c.b16 %v1492, %v1484
        %v1717 = vpack.c.b16 %v1501, %v1493
        %v1718 = vpack.c.b16 %v1502, %v1494
        %v1719 = vpack.c.b16 %v1503, %v1495
        %v1720 = vpack.c.b16 %v1504, %v1496
        %v1721 = vpack.c.b16 %v1505, %v1497
        %v1722 = vpack.c.b16 %v1506, %v1498
        %v1723 = vpack.c.b16 %v1507, %v1499
        %v1724 = vpack.c.b16 %v1508, %v1500
        %v1725 = vpack.c.b16 %v1517, %v1509
        %v1726 = vpack.c.b16 %v1518, %v1510
        %v1727 = vpack.c.b16 %v1519, %v1511
        %v1728 = vpack.c.b16 %v1520, %v1512
        %v1729 = vpack.c.b16 %v1521, %v1513
        %v1730 = vpack.c.b16 %v1522, %v1514
        %v1731 = vpack.c.b16 %v1523, %v1515
        %v1732 = vpack.c.b16 %v1524, %v1516
        %v1733 = vpack.c.b16 %v1533, %v1525
        %v1734 = vpack.c.b16 %v1534, %v1526
        %v1735 = vpack.c.b16 %v1535, %v1527
        %v1736 = vpack.c.b16 %v1536, %v1528
        %v1737 = vpack.c.b16 %v1537, %v1529
        %v1738 = vpack.c.b16 %v1538, %v1530
        %v1739 = vpack.c.b16 %v1539, %v1531
        %v1740 = vpack.c.b16 %v1540, %v1532
        %v1741 = vpack.c.b16 %v1549, %v1541
        %v1742 = vpack.c.b16 %v1550, %v1542
        %v1743 = vpack.c.b16 %v1551, %v1543
        %v1744 = vpack.c.b16 %v1552, %v1544
        %v1745 = vpack.c.b16 %v1553, %v1545
        %v1746 = vpack.c.b16 %v1554, %v1546
        %v1747 = vpack.c.b16 %v1555, %v1547
        %v1748 = vpack.c.b16 %v1556, %v1548
        %v1749 = vpack.c.b16 %v1565, %v1557
        %v1750 = vpack.c.b16 %v1566, %v1558
        %v1751 = vpack.c.b16 %v1567, %v1559
        %v1752 = vpack.c.b16 %v1568, %v1560
        %v1753 = vpack.c.b16 %v1569, %v1561
        %v1754 = vpack.c.b16 %v1570, %v1562
        %v1755 = vpack.c.b16 %v1571, %v1563
        %v1756 = vpack.c.b16 %v1572, %v1564
        %v1757 = vpack.c.b16 %v1581, %v1573
        %v1758 = vpack.c.b16 %v1582, %v1574
        %v1759 = vpack.c.b16 %v1583, %v1575
        %v1760 = vpack.c.b16 %v1584, %v1576
        %v1761 = vpack.c.b16 %v1585, %v1577
        %v1762 = vpack.c.b16 %v1586, %v1578
        %v1763 = vpack.c.b16 %v1587, %v1579
        %v1764 = vpack.c.b16 %v1588, %v1580
        %v1765 = vpack.c.b16 %v1597, %v1589
        %v1766 = vpack.c.b16 %v1598, %v1590
        %v1767 = vpack.c.b16 %v1599, %v1591
        %v1768 = vpack.c.b16 %v1600, %v1592
        %v1769 = vpack.c.b16 %v1601, %v1593
        %v1770 = vpack.c.b16 %v1602, %v1594
        %v1771 = vpack.c.b16 %v1603, %v1595
        %v1772 = vpack.c.b16 %v1604, %v1596
        %v1773 = vpack.c.b16 %v1613, %v1605
        %v1774 = vpack.c.b16 %v1614, %v1606
        %v1775 = vpack.c.b16 %v1615, %v1607
        %v1776 = vpack.c.b16 %v1616, %v1608
        %v1777 = vpack.c.b16 %v1617, %v1609
        %v1778 = vpack.c.b16 %v1618, %v1610
        %v1779 = vpack.c.b16 %v1619, %v1611
        %v1780 = vpack.c.b16 %v1620, %v1612
        %v1781 = vpack.c.b16 %v1629, %v1621
        %v1782 = vpack.c.b16 %v1630, %v1622
        %v1783 = vpack.c.b16 %v1631, %v1623
        %v1784 = vpack.c.b16 %v1632, %v1624
        %v1785 = vpack.c.b16 %v1633, %v1625
        %v1786 = vpack.c.b16 %v1634, %v1626
        %v1787 = vpack.c.b16 %v1635, %v1627
        %v1788 = vpack.c.b16 %v1636, %v1628
        %v1789 = vpack.c.b16 %v1645, %v1637
        %v1790 = vpack.c.b16 %v1646, %v1638
        %v1791 = vpack.c.b16 %v1647, %v1639
        %v1792 = vpack.c.b16 %v1648, %v1640
        %v1793 = vpack.c.b16 %v1649, %v1641
        %v1794 = vpack.c.b16 %v1650, %v1642
        %v1795 = vpack.c.b16 %v1651, %v1643
        %v1796 = vpack.c.b16 %v1652, %v1644
        %v1797 = vpack.c.b16 %v1661, %v1653
        %v1798 = vpack.c.b16 %v1662, %v1654
        %v1799 = vpack.c.b16 %v1663, %v1655
        %v1800 = vpack.c.b16 %v1664, %v1656
        %v1801 = vpack.c.b16 %v1665, %v1657
        %v1802 = vpack.c.b16 %v1666, %v1658
        %v1803 = vpack.c.b16 %v1667, %v1659
        %v1804 = vpack.c.b16 %v1668, %v1660
        %v1805 = vpack.c.b16 %v1677, %v1669
        %v1806 = vpack.c.b16 %v1678, %v1670
        %v1807 = vpack.c.b16 %v1679, %v1671
        %v1808 = vpack.c.b16 %v1680, %v1672
        %v1809 = vpack.c.b16 %v1681, %v1673
        %v1810 = vpack.c.b16 %v1682, %v1674
        %v1811 = vpack.c.b16 %v1683, %v1675
        %v1812 = vpack.c.b16 %v1684, %v1676
        %1941 = vmatprep.subr.bf16.mxu0 %v1686
        %1942 = vmatpush1.bf16.msra.mxu0 %v1685
        %1943 = vmatprep.subr.bf16.mxu0 %v1694
        %1944 = vmatpush1.bf16.msra.mxu0 %v1693
        %1945 = vmatprep.subr.bf16.mxu0 %v1702
        %1946 = vmatpush1.bf16.msra.mxu0 %v1701
        %1947 = vmatprep.subr.bf16.mxu0 %v1710
        %1948 = vmatpush1.bf16.msra.mxu0 %v1709
        %1949 = vmatprep.subr.bf16.mxu0 %v1718
        %1950 = vmatpush1.bf16.msra.mxu0 %v1717
        %1951 = vmatprep.subr.bf16.mxu0 %v1726
        %1952 = vmatpush1.bf16.msra.mxu0 %v1725
        %1953 = vmatprep.subr.bf16.mxu0 %v1734
        %1954 = vmatpush1.bf16.msra.mxu0 %v1733
        %1955 = vmatprep.subr.bf16.mxu0 %v1742
        %1956 = vmatpush1.bf16.msra.mxu0 %v1741
        %1957 = vmatprep.subr.bf16.mxu0 %v1750
        %1958 = vmatpush1.bf16.msra.mxu0 %v1749
        %1959 = vmatprep.subr.bf16.mxu0 %v1758
        %1960 = vmatpush1.bf16.msra.mxu0 %v1757
        %1961 = vmatprep.subr.bf16.mxu0 %v1766
        %1962 = vmatpush1.bf16.msra.mxu0 %v1765
        %1963 = vmatprep.subr.bf16.mxu0 %v1774
        %1964 = vmatpush1.bf16.msra.mxu0 %v1773
        %1965 = vmatprep.subr.bf16.mxu0 %v1782
        %1966 = vmatpush1.bf16.msra.mxu0 %v1781
        %1967 = vmatprep.subr.bf16.mxu0 %v1790
        %1968 = vmatpush1.bf16.msra.mxu0 %v1789
        %1969 = vmatprep.subr.bf16.mxu0 %v1798
        %1970 = vmatpush1.bf16.msra.mxu0 %v1797
        %1971 = vmatprep.subr.bf16.mxu0 %v1806
        %1972 = vmatpush1.bf16.msra.mxu0 %v1805
        %1973 = vmatprep.mubr.bf16.mxu0 %v1136
        %1974 = vmatmul.mubr.bf16.gmra.mrb[0].mxu0 %v1135
        %v1975 = vpop.f32.mrb[0].mxu0
        %v1976 = vadd.f32 0.0, %v1975
        %v1977 = vpop.f32.mrb[0].mxu0
        %v1978 = vadd.f32 0.0, %v1977
        %v1979 = vpop.f32.mrb[0].mxu0
        %v1980 = vadd.f32 0.0, %v1979
        %v1981 = vpop.f32.mrb[0].mxu0
        %v1982 = vadd.f32 0.0, %v1981
        %1983 = vmatprep.mubr.bf16.mxu0 %v1138
        %1984 = vmatmul.mubr.bf16.gmra.mrb[0].mxu0 %v1137
        %v1985 = vpop.f32.mrb[0].mxu0
        %v1986 = vadd.f32 0.0, %v1985
        %v1987 = vpop.f32.mrb[0].mxu0
        %v1988 = vadd.f32 0.0, %v1987
        %v1989 = vpop.f32.mrb[0].mxu0
        %v1990 = vadd.f32 0.0, %v1989
        %v1991 = vpop.f32.mrb[0].mxu0
        %v1992 = vadd.f32 0.0, %v1991
        %1993 = vmatprep.mubr.bf16.mxu0 %v1140
        %1994 = vmatmul.mubr.bf16.gmra.mrb[0].mxu0 %v1139
        %v1995 = vpop.f32.mrb[0].mxu0
        %v1996 = vadd.f32 0.0, %v1995
        %v1997 = vpop.f32.mrb[0].mxu0
        %v1998 = vadd.f32 0.0, %v1997
        %v1999 = vpop.f32.mrb[0].mxu0
        %v2000 = vadd.f32 0.0, %v1999
        %v2001 = vpop.f32.mrb[0].mxu0
        %v2002 = vadd.f32 0.0, %v2001
        %2003 = vmatprep.mubr.bf16.mxu0 %v1142
        %2004 = vmatmul.mubr.bf16.gmra.mrb[0].mxu0 %v1141
        %v2005 = vpop.f32.mrb[0].mxu0
        %v2006 = vadd.f32 0.0, %v2005
        %v2007 = vpop.f32.mrb[0].mxu0
        %v2008 = vadd.f32 0.0, %v2007
        %v2009 = vpop.f32.mrb[0].mxu0
        %v2010 = vadd.f32 0.0, %v2009
        %v2011 = vpop.f32.mrb[0].mxu0
        %v2012 = vadd.f32 0.0, %v2011
        %2013 = vmatprep.mubr.bf16.mxu0 %v1144
        %2014 = vmatmul.mubr.bf16.gmra.mrb[0].mxu0 %v1143
        %v2015 = vpop.f32.mrb[0].mxu0
        %v2016 = vadd.f32 0.0, %v2015
        %v2017 = vpop.f32.mrb[0].mxu0
        %v2018 = vadd.f32 0.0, %v2017
        %v2019 = vpop.f32.mrb[0].mxu0
        %v2020 = vadd.f32 0.0, %v2019
        %v2021 = vpop.f32.mrb[0].mxu0
        %v2022 = vadd.f32 0.0, %v2021
        %2023 = vmatprep.mubr.bf16.mxu0 %v1146
        %2024 = vmatmul.mubr.bf16.gmra.mrb[0].mxu0 %v1145
        %v2025 = vpop.f32.mrb[0].mxu0
        %v2026 = vadd.f32 0.0, %v2025
        %v2027 = vpop.f32.mrb[0].mxu0
        %v2028 = vadd.f32 0.0, %v2027
        %v2029 = vpop.f32.mrb[0].mxu0
        %v2030 = vadd.f32 0.0, %v2029
        %v2031 = vpop.f32.mrb[0].mxu0
        %v2032 = vadd.f32 0.0, %v2031
        %2033 = vmatprep.mubr.bf16.mxu0 %v1148
        %2034 = vmatmul.mubr.bf16.gmra.mrb[0].mxu0 %v1147
        %v2035 = vpop.f32.mrb[0].mxu0
        %v2036 = vadd.f32 0.0, %v2035
        %v2037 = vpop.f32.mrb[0].mxu0
        %v2038 = vadd.f32 0.0, %v2037
        %v2039 = vpop.f32.mrb[0].mxu0
        %v2040 = vadd.f32 0.0, %v2039
        %v2041 = vpop.f32.mrb[0].mxu0
        %v2042 = vadd.f32 0.0, %v2041
        %2043 = vmatprep.mubr.bf16.mxu0 %v1150
        %2044 = vmatmul.mubr.bf16.gmra.mrb[0].mxu0 %v1149
        %v2045 = vpop.f32.mrb[0].mxu0
        %v2046 = vadd.f32 0.0, %v2045
        %v2047 = vpop.f32.mrb[0].mxu0
        %v2048 = vadd.f32 0.0, %v2047
        %v2049 = vpop.f32.mrb[0].mxu0
        %v2050 = vadd.f32 0.0, %v2049
        %v2051 = vpop.f32.mrb[0].mxu0
        %v2052 = vadd.f32 0.0, %v2051
        %2053 = vmatprep.mubr.bf16.mxu0 %v1152
        %2054 = vmatmul.mubr.bf16.gmra.mrb[0].mxu0 %v1151
        %v2055 = vpop.f32.mrb[0].mxu0
        %v2056 = vadd.f32 0.0, %v2055
        %v2057 = vpop.f32.mrb[0].mxu0
        %v2058 = vadd.f32 0.0, %v2057
        %v2059 = vpop.f32.mrb[0].mxu0
        %v2060 = vadd.f32 0.0, %v2059
        %v2061 = vpop.f32.mrb[0].mxu0
        %v2062 = vadd.f32 0.0, %v2061
        %2063 = vmatprep.mubr.bf16.mxu0 %v1154
        %2064 = vmatmul.mubr.bf16.gmra.mrb[0].mxu0 %v1153
        %v2065 = vpop.f32.mrb[0].mxu0
        %v2066 = vadd.f32 0.0, %v2065
        %v2067 = vpop.f32.mrb[0].mxu0
        %v2068 = vadd.f32 0.0, %v2067
        %v2069 = vpop.f32.mrb[0].mxu0
        %v2070 = vadd.f32 0.0, %v2069
        %v2071 = vpop.f32.mrb[0].mxu0
        %v2072 = vadd.f32 0.0, %v2071
        %2073 = vmatprep.mubr.bf16.mxu0 %v1156
        %2074 = vmatmul.mubr.bf16.gmra.mrb[0].mxu0 %v1155
        %v2075 = vpop.f32.mrb[0].mxu0
        %v2076 = vadd.f32 0.0, %v2075
        %v2077 = vpop.f32.mrb[0].mxu0
        %v2078 = vadd.f32 0.0, %v2077
        %v2079 = vpop.f32.mrb[0].mxu0
        %v2080 = vadd.f32 0.0, %v2079
        %v2081 = vpop.f32.mrb[0].mxu0
        %v2082 = vadd.f32 0.0, %v2081
        %2083 = vmatprep.mubr.bf16.mxu0 %v1158
        %2084 = vmatmul.mubr.bf16.gmra.mrb[0].mxu0 %v1157
        %v2085 = vpop.f32.mrb[0].mxu0
        %v2086 = vadd.f32 0.0, %v2085
        %v2087 = vpop.f32.mrb[0].mxu0
        %v2088 = vadd.f32 0.0, %v2087
        %v2089 = vpop.f32.mrb[0].mxu0
        %v2090 = vadd.f32 0.0, %v2089
        %v2091 = vpop.f32.mrb[0].mxu0
        %v2092 = vadd.f32 0.0, %v2091
        %2093 = vmatprep.mubr.bf16.mxu0 %v1160
        %2094 = vmatmul.mubr.bf16.gmra.mrb[0].mxu0 %v1159
        %v2095 = vpop.f32.mrb[0].mxu0
        %v2096 = vadd.f32 0.0, %v2095
        %v2097 = vpop.f32.mrb[0].mxu0
        %v2098 = vadd.f32 0.0, %v2097
        %v2099 = vpop.f32.mrb[0].mxu0
        %v2100 = vadd.f32 0.0, %v2099
        %v2101 = vpop.f32.mrb[0].mxu0
        %v2102 = vadd.f32 0.0, %v2101
        %2103 = vmatprep.mubr.bf16.mxu0 %v1162
        %2104 = vmatmul.mubr.bf16.gmra.mrb[0].mxu0 %v1161
        %v2105 = vpop.f32.mrb[0].mxu0
        %v2106 = vadd.f32 0.0, %v2105
        %v2107 = vpop.f32.mrb[0].mxu0
        %v2108 = vadd.f32 0.0, %v2107
        %v2109 = vpop.f32.mrb[0].mxu0
        %v2110 = vadd.f32 0.0, %v2109
        %v2111 = vpop.f32.mrb[0].mxu0
        %v2112 = vadd.f32 0.0, %v2111
        %2113 = vmatprep.mubr.bf16.mxu0 %v1164
        %2114 = vmatmul.mubr.bf16.gmra.mrb[0].mxu0 %v1163
        %v2115 = vpop.f32.mrb[0].mxu0
        %v2116 = vadd.f32 0.0, %v2115
        %v2117 = vpop.f32.mrb[0].mxu0
        %v2118 = vadd.f32 0.0, %v2117
        %v2119 = vpop.f32.mrb[0].mxu0
        %v2120 = vadd.f32 0.0, %v2119
        %v2121 = vpop.f32.mrb[0].mxu0
        %v2122 = vadd.f32 0.0, %v2121
        %2123 = vmatprep.mubr.bf16.mxu0 %v1166
        %2124 = vmatmul.mubr.bf16.gmra.mrb[0].mxu0 %v1165
        %v2125 = vpop.f32.mrb[0].mxu0
        %v2126 = vadd.f32 0.0, %v2125
        %v2127 = vpop.f32.mrb[0].mxu0
        %v2128 = vadd.f32 0.0, %v2127
        %v2129 = vpop.f32.mrb[0].mxu0
        %v2130 = vadd.f32 0.0, %v2129
        %v2131 = vpop.f32.mrb[0].mxu0
        %v2132 = vadd.f32 0.0, %v2131
        %2133 = vmatprep.mubr.bf16.mxu0 %v1168
        %2134 = vmatmul.mubr.bf16.gmra.mrb[0].mxu0 %v1167
        %v2135 = vpop.f32.mrb[0].mxu0
        %v2136 = vadd.f32 0.0, %v2135
        %v2137 = vpop.f32.mrb[0].mxu0
        %v2138 = vadd.f32 0.0, %v2137
        %v2139 = vpop.f32.mrb[0].mxu0
        %v2140 = vadd.f32 0.0, %v2139
        %v2141 = vpop.f32.mrb[0].mxu0
        %v2142 = vadd.f32 0.0, %v2141
        %2143 = vmatprep.mubr.bf16.mxu0 %v1170
        %2144 = vmatmul.mubr.bf16.gmra.mrb[0].mxu0 %v1169
        %v2145 = vpop.f32.mrb[0].mxu0
        %v2146 = vadd.f32 0.0, %v2145
        %v2147 = vpop.f32.mrb[0].mxu0
        %v2148 = vadd.f32 0.0, %v2147
        %v2149 = vpop.f32.mrb[0].mxu0
        %v2150 = vadd.f32 0.0, %v2149
        %v2151 = vpop.f32.mrb[0].mxu0
        %v2152 = vadd.f32 0.0, %v2151
        %2153 = vmatprep.mubr.bf16.mxu0 %v1172
        %2154 = vmatmul.mubr.bf16.gmra.mrb[0].mxu0 %v1171
        %v2155 = vpop.f32.mrb[0].mxu0
        %v2156 = vadd.f32 0.0, %v2155
        %v2157 = vpop.f32.mrb[0].mxu0
        %v2158 = vadd.f32 0.0, %v2157
        %v2159 = vpop.f32.mrb[0].mxu0
        %v2160 = vadd.f32 0.0, %v2159
        %v2161 = vpop.f32.mrb[0].mxu0
        %v2162 = vadd.f32 0.0, %v2161
        %2163 = vdwg.mxu0
        %2164 = vmatprep.subr.bf16.mxu0 %v1688
        %2165 = vmatpush1.bf16.msra.mxu0 %v1687
        %2166 = vmatprep.subr.bf16.mxu0 %v1696
        %2167 = vmatpush1.bf16.msra.mxu0 %v1695
        %2168 = vmatprep.subr.bf16.mxu0 %v1704
        %2169 = vmatpush1.bf16.msra.mxu0 %v1703
        %2170 = vmatprep.subr.bf16.mxu0 %v1712
        %2171 = vmatpush1.bf16.msra.mxu0 %v1711
        %2172 = vmatprep.subr.bf16.mxu0 %v1720
        %2173 = vmatpush1.bf16.msra.mxu0 %v1719
        %2174 = vmatprep.subr.bf16.mxu0 %v1728
        %2175 = vmatpush1.bf16.msra.mxu0 %v1727
        %2176 = vmatprep.subr.bf16.mxu0 %v1736
        %2177 = vmatpush1.bf16.msra.mxu0 %v1735
        %2178 = vmatprep.subr.bf16.mxu0 %v1744
        %2179 = vmatpush1.bf16.msra.mxu0 %v1743
        %2180 = vmatprep.subr.bf16.mxu0 %v1752
        %2181 = vmatpush1.bf16.msra.mxu0 %v1751
        %2182 = vmatprep.subr.bf16.mxu0 %v1760
        %2183 = vmatpush1.bf16.msra.mxu0 %v1759
        %2184 = vmatprep.subr.bf16.mxu0 %v1768
        %2185 = vmatpush1.bf16.msra.mxu0 %v1767
        %2186 = vmatprep.subr.bf16.mxu0 %v1776
        %2187 = vmatpush1.bf16.msra.mxu0 %v1775
        %2188 = vmatprep.subr.bf16.mxu0 %v1784
        %2189 = vmatpush1.bf16.msra.mxu0 %v1783
        %2190 = vmatprep.subr.bf16.mxu0 %v1792
        %2191 = vmatpush1.bf16.msra.mxu0 %v1791
        %2192 = vmatprep.subr.bf16.mxu0 %v1800
        %2193 = vmatpush1.bf16.msra.mxu0 %v1799
        %2194 = vmatprep.subr.bf16.mxu0 %v1808
        %2195 = vmatpush1.bf16.msra.mxu0 %v1807
        %2196 = vmatprep.mubr.bf16.mxu0 %v1136
        %2197 = vmatmul.mubr.bf16.gmra.mrb[0].mxu0 %v1135
        %v2198 = vpop.f32.mrb[0].mxu0
        %v2199 = vadd.f32 0.0, %v2198
        %v2200 = vpop.f32.mrb[0].mxu0
        %v2201 = vadd.f32 0.0, %v2200
        %v2202 = vpop.f32.mrb[0].mxu0
        %v2203 = vadd.f32 0.0, %v2202
        %v2204 = vpop.f32.mrb[0].mxu0
        %v2205 = vadd.f32 0.0, %v2204
        %2206 = vmatprep.mubr.bf16.mxu0 %v1138
        %2207 = vmatmul.mubr.bf16.gmra.mrb[0].mxu0 %v1137
        %v2208 = vpop.f32.mrb[0].mxu0
        %v2209 = vadd.f32 0.0, %v2208
        %v2210 = vpop.f32.mrb[0].mxu0
        %v2211 = vadd.f32 0.0, %v2210
        %v2212 = vpop.f32.mrb[0].mxu0
        %v2213 = vadd.f32 0.0, %v2212
        %v2214 = vpop.f32.mrb[0].mxu0
        %v2215 = vadd.f32 0.0, %v2214
        %2216 = vmatprep.mubr.bf16.mxu0 %v1140
        %2217 = vmatmul.mubr.bf16.gmra.mrb[0].mxu0 %v1139
        %v2218 = vpop.f32.mrb[0].mxu0
        %v2219 = vadd.f32 0.0, %v2218
        %v2220 = vpop.f32.mrb[0].mxu0
        %v2221 = vadd.f32 0.0, %v2220
        %v2222 = vpop.f32.mrb[0].mxu0
        %v2223 = vadd.f32 0.0, %v2222
        %v2224 = vpop.f32.mrb[0].mxu0
        %v2225 = vadd.f32 0.0, %v2224
        %2226 = vmatprep.mubr.bf16.mxu0 %v1142
        %2227 = vmatmul.mubr.bf16.gmra.mrb[0].mxu0 %v1141
        %v2228 = vpop.f32.mrb[0].mxu0
        %v2229 = vadd.f32 0.0, %v2228
        %v2230 = vpop.f32.mrb[0].mxu0
        %v2231 = vadd.f32 0.0, %v2230
        %v2232 = vpop.f32.mrb[0].mxu0
        %v2233 = vadd.f32 0.0, %v2232
        %v2234 = vpop.f32.mrb[0].mxu0
        %v2235 = vadd.f32 0.0, %v2234
        %2236 = vmatprep.mubr.bf16.mxu0 %v1144
        %2237 = vmatmul.mubr.bf16.gmra.mrb[0].mxu0 %v1143
        %v2238 = vpop.f32.mrb[0].mxu0
        %v2239 = vadd.f32 0.0, %v2238
        %v2240 = vpop.f32.mrb[0].mxu0
        %v2241 = vadd.f32 0.0, %v2240
        %v2242 = vpop.f32.mrb[0].mxu0
        %v2243 = vadd.f32 0.0, %v2242
        %v2244 = vpop.f32.mrb[0].mxu0
        %v2245 = vadd.f32 0.0, %v2244
        %2246 = vmatprep.mubr.bf16.mxu0 %v1146
        %2247 = vmatmul.mubr.bf16.gmra.mrb[0].mxu0 %v1145
        %v2248 = vpop.f32.mrb[0].mxu0
        %v2249 = vadd.f32 0.0, %v2248
        %v2250 = vpop.f32.mrb[0].mxu0
        %v2251 = vadd.f32 0.0, %v2250
        %v2252 = vpop.f32.mrb[0].mxu0
        %v2253 = vadd.f32 0.0, %v2252
        %v2254 = vpop.f32.mrb[0].mxu0
        %v2255 = vadd.f32 0.0, %v2254
        %2256 = vmatprep.mubr.bf16.mxu0 %v1148
        %2257 = vmatmul.mubr.bf16.gmra.mrb[0].mxu0 %v1147
        %v2258 = vpop.f32.mrb[0].mxu0
        %v2259 = vadd.f32 0.0, %v2258
        %v2260 = vpop.f32.mrb[0].mxu0
        %v2261 = vadd.f32 0.0, %v2260
        %v2262 = vpop.f32.mrb[0].mxu0
        %v2263 = vadd.f32 0.0, %v2262
        %v2264 = vpop.f32.mrb[0].mxu0
        %v2265 = vadd.f32 0.0, %v2264
        %2266 = vmatprep.mubr.bf16.mxu0 %v1150
        %2267 = vmatmul.mubr.bf16.gmra.mrb[0].mxu0 %v1149
        %v2268 = vpop.f32.mrb[0].mxu0
        %v2269 = vadd.f32 0.0, %v2268
        %v2270 = vpop.f32.mrb[0].mxu0
        %v2271 = vadd.f32 0.0, %v2270
        %v2272 = vpop.f32.mrb[0].mxu0
        %v2273 = vadd.f32 0.0, %v2272
        %v2274 = vpop.f32.mrb[0].mxu0
        %v2275 = vadd.f32 0.0, %v2274
        %2276 = vmatprep.mubr.bf16.mxu0 %v1152
        %2277 = vmatmul.mubr.bf16.gmra.mrb[0].mxu0 %v1151
        %v2278 = vpop.f32.mrb[0].mxu0
        %v2279 = vadd.f32 0.0, %v2278
        %v2280 = vpop.f32.mrb[0].mxu0
        %v2281 = vadd.f32 0.0, %v2280
        %v2282 = vpop.f32.mrb[0].mxu0
        %v2283 = vadd.f32 0.0, %v2282
        %v2284 = vpop.f32.mrb[0].mxu0
        %v2285 = vadd.f32 0.0, %v2284
        %2286 = vmatprep.mubr.bf16.mxu0 %v1154
        %2287 = vmatmul.mubr.bf16.gmra.mrb[0].mxu0 %v1153
        %v2288 = vpop.f32.mrb[0].mxu0
        %v2289 = vadd.f32 0.0, %v2288
        %v2290 = vpop.f32.mrb[0].mxu0
        %v2291 = vadd.f32 0.0, %v2290
        %v2292 = vpop.f32.mrb[0].mxu0
        %v2293 = vadd.f32 0.0, %v2292
        %v2294 = vpop.f32.mrb[0].mxu0
        %v2295 = vadd.f32 0.0, %v2294
        %2296 = vmatprep.mubr.bf16.mxu0 %v1156
        %2297 = vmatmul.mubr.bf16.gmra.mrb[0].mxu0 %v1155
        %v2298 = vpop.f32.mrb[0].mxu0
        %v2299 = vadd.f32 0.0, %v2298
        %v2300 = vpop.f32.mrb[0].mxu0
        %v2301 = vadd.f32 0.0, %v2300
        %v2302 = vpop.f32.mrb[0].mxu0
        %v2303 = vadd.f32 0.0, %v2302
        %v2304 = vpop.f32.mrb[0].mxu0
        %v2305 = vadd.f32 0.0, %v2304
        %2306 = vmatprep.mubr.bf16.mxu0 %v1158
        %2307 = vmatmul.mubr.bf16.gmra.mrb[0].mxu0 %v1157
        %v2308 = vpop.f32.mrb[0].mxu0
        %v2309 = vadd.f32 0.0, %v2308
        %v2310 = vpop.f32.mrb[0].mxu0
        %v2311 = vadd.f32 0.0, %v2310
        %v2312 = vpop.f32.mrb[0].mxu0
        %v2313 = vadd.f32 0.0, %v2312
        %v2314 = vpop.f32.mrb[0].mxu0
        %v2315 = vadd.f32 0.0, %v2314
        %2316 = vmatprep.mubr.bf16.mxu0 %v1160
        %2317 = vmatmul.mubr.bf16.gmra.mrb[0].mxu0 %v1159
        %v2318 = vpop.f32.mrb[0].mxu0
        %v2319 = vadd.f32 0.0, %v2318
        %v2320 = vpop.f32.mrb[0].mxu0
        %v2321 = vadd.f32 0.0, %v2320
        %v2322 = vpop.f32.mrb[0].mxu0
        %v2323 = vadd.f32 0.0, %v2322
        %v2324 = vpop.f32.mrb[0].mxu0
        %v2325 = vadd.f32 0.0, %v2324
        %2326 = vmatprep.mubr.bf16.mxu0 %v1162
        %2327 = vmatmul.mubr.bf16.gmra.mrb[0].mxu0 %v1161
        %v2328 = vpop.f32.mrb[0].mxu0
        %v2329 = vadd.f32 0.0, %v2328
        %v2330 = vpop.f32.mrb[0].mxu0
        %v2331 = vadd.f32 0.0, %v2330
        %v2332 = vpop.f32.mrb[0].mxu0
        %v2333 = vadd.f32 0.0, %v2332
        %v2334 = vpop.f32.mrb[0].mxu0
        %v2335 = vadd.f32 0.0, %v2334
        %2336 = vmatprep.mubr.bf16.mxu0 %v1164
        %2337 = vmatmul.mubr.bf16.gmra.mrb[0].mxu0 %v1163
        %v2338 = vpop.f32.mrb[0].mxu0
        %v2339 = vadd.f32 0.0, %v2338
        %v2340 = vpop.f32.mrb[0].mxu0
        %v2341 = vadd.f32 0.0, %v2340
        %v2342 = vpop.f32.mrb[0].mxu0
        %v2343 = vadd.f32 0.0, %v2342
        %v2344 = vpop.f32.mrb[0].mxu0
        %v2345 = vadd.f32 0.0, %v2344
        %2346 = vmatprep.mubr.bf16.mxu0 %v1166
        %2347 = vmatmul.mubr.bf16.gmra.mrb[0].mxu0 %v1165
        %v2348 = vpop.f32.mrb[0].mxu0
        %v2349 = vadd.f32 0.0, %v2348
        %v2350 = vpop.f32.mrb[0].mxu0
        %v2351 = vadd.f32 0.0, %v2350
        %v2352 = vpop.f32.mrb[0].mxu0
        %v2353 = vadd.f32 0.0, %v2352
        %v2354 = vpop.f32.mrb[0].mxu0
        %v2355 = vadd.f32 0.0, %v2354
        %2356 = vmatprep.mubr.bf16.mxu0 %v1168
        %2357 = vmatmul.mubr.bf16.gmra.mrb[0].mxu0 %v1167
        %v2358 = vpop.f32.mrb[0].mxu0
        %v2359 = vadd.f32 0.0, %v2358
        %v2360 = vpop.f32.mrb[0].mxu0
        %v2361 = vadd.f32 0.0, %v2360
        %v2362 = vpop.f32.mrb[0].mxu0
        %v2363 = vadd.f32 0.0, %v2362
        %v2364 = vpop.f32.mrb[0].mxu0
        %v2365 = vadd.f32 0.0, %v2364
        %2366 = vmatprep.mubr.bf16.mxu0 %v1170
        %2367 = vmatmul.mubr.bf16.gmra.mrb[0].mxu0 %v1169
        %v2368 = vpop.f32.mrb[0].mxu0
        %v2369 = vadd.f32 0.0, %v2368
        %v2370 = vpop.f32.mrb[0].mxu0
        %v2371 = vadd.f32 0.0, %v2370
        %v2372 = vpop.f32.mrb[0].mxu0
        %v2373 = vadd.f32 0.0, %v2372
        %v2374 = vpop.f32.mrb[0].mxu0
        %v2375 = vadd.f32 0.0, %v2374
        %2376 = vmatprep.mubr.bf16.mxu0 %v1172
        %2377 = vmatmul.mubr.bf16.gmra.mrb[0].mxu0 %v1171
        %v2378 = vpop.f32.mrb[0].mxu0
        %v2379 = vadd.f32 0.0, %v2378
        %v2380 = vpop.f32.mrb[0].mxu0
        %v2381 = vadd.f32 0.0, %v2380
        %v2382 = vpop.f32.mrb[0].mxu0
        %v2383 = vadd.f32 0.0, %v2382
        %v2384 = vpop.f32.mrb[0].mxu0
        %v2385 = vadd.f32 0.0, %v2384
        %2386 = vdwg.mxu0
        %2387 = vmatprep.subr.bf16.mxu0 %v1690
        %2388 = vmatpush1.bf16.msra.mxu0 %v1689
        %2389 = vmatprep.subr.bf16.mxu0 %v1698
        %2390 = vmatpush1.bf16.msra.mxu0 %v1697
        %2391 = vmatprep.subr.bf16.mxu0 %v1706
        %2392 = vmatpush1.bf16.msra.mxu0 %v1705
        %2393 = vmatprep.subr.bf16.mxu0 %v1714
        %2394 = vmatpush1.bf16.msra.mxu0 %v1713
        %2395 = vmatprep.subr.bf16.mxu0 %v1722
        %2396 = vmatpush1.bf16.msra.mxu0 %v1721
        %2397 = vmatprep.subr.bf16.mxu0 %v1730
        %2398 = vmatpush1.bf16.msra.mxu0 %v1729
        %2399 = vmatprep.subr.bf16.mxu0 %v1738
        %2400 = vmatpush1.bf16.msra.mxu0 %v1737
        %2401 = vmatprep.subr.bf16.mxu0 %v1746
        %2402 = vmatpush1.bf16.msra.mxu0 %v1745
        %2403 = vmatprep.subr.bf16.mxu0 %v1754
        %2404 = vmatpush1.bf16.msra.mxu0 %v1753
        %2405 = vmatprep.subr.bf16.mxu0 %v1762
        %2406 = vmatpush1.bf16.msra.mxu0 %v1761
        %2407 = vmatprep.subr.bf16.mxu0 %v1770
        %2408 = vmatpush1.bf16.msra.mxu0 %v1769
        %2409 = vmatprep.subr.bf16.mxu0 %v1778
        %2410 = vmatpush1.bf16.msra.mxu0 %v1777
        %2411 = vmatprep.subr.bf16.mxu0 %v1786
        %2412 = vmatpush1.bf16.msra.mxu0 %v1785
        %2413 = vmatprep.subr.bf16.mxu0 %v1794
        %2414 = vmatpush1.bf16.msra.mxu0 %v1793
        %2415 = vmatprep.subr.bf16.mxu0 %v1802
        %2416 = vmatpush1.bf16.msra.mxu0 %v1801
        %2417 = vmatprep.subr.bf16.mxu0 %v1810
        %2418 = vmatpush1.bf16.msra.mxu0 %v1809
        %2419 = vmatprep.mubr.bf16.mxu0 %v1136
        %2420 = vmatmul.mubr.bf16.gmra.mrb[0].mxu0 %v1135
        %v2421 = vpop.f32.mrb[0].mxu0
        %v2422 = vadd.f32 0.0, %v2421
        %v2423 = vpop.f32.mrb[0].mxu0
        %v2424 = vadd.f32 0.0, %v2423
        %v2425 = vpop.f32.mrb[0].mxu0
        %v2426 = vadd.f32 0.0, %v2425
        %v2427 = vpop.f32.mrb[0].mxu0
        %v2428 = vadd.f32 0.0, %v2427
        %2429 = vmatprep.mubr.bf16.mxu0 %v1138
        %2430 = vmatmul.mubr.bf16.gmra.mrb[0].mxu0 %v1137
        %v2431 = vpop.f32.mrb[0].mxu0
        %v2432 = vadd.f32 0.0, %v2431
        %v2433 = vpop.f32.mrb[0].mxu0
        %v2434 = vadd.f32 0.0, %v2433
        %v2435 = vpop.f32.mrb[0].mxu0
        %v2436 = vadd.f32 0.0, %v2435
        %v2437 = vpop.f32.mrb[0].mxu0
        %v2438 = vadd.f32 0.0, %v2437
        %2439 = vmatprep.mubr.bf16.mxu0 %v1140
        %2440 = vmatmul.mubr.bf16.gmra.mrb[0].mxu0 %v1139
        %v2441 = vpop.f32.mrb[0].mxu0
        %v2442 = vadd.f32 0.0, %v2441
        %v2443 = vpop.f32.mrb[0].mxu0
        %v2444 = vadd.f32 0.0, %v2443
        %v2445 = vpop.f32.mrb[0].mxu0
        %v2446 = vadd.f32 0.0, %v2445
        %v2447 = vpop.f32.mrb[0].mxu0
        %v2448 = vadd.f32 0.0, %v2447
        %2449 = vmatprep.mubr.bf16.mxu0 %v1142
        %2450 = vmatmul.mubr.bf16.gmra.mrb[0].mxu0 %v1141
        %v2451 = vpop.f32.mrb[0].mxu0
        %v2452 = vadd.f32 0.0, %v2451
        %v2453 = vpop.f32.mrb[0].mxu0
        %v2454 = vadd.f32 0.0, %v2453
        %v2455 = vpop.f32.mrb[0].mxu0
        %v2456 = vadd.f32 0.0, %v2455
        %v2457 = vpop.f32.mrb[0].mxu0
        %v2458 = vadd.f32 0.0, %v2457
        %2459 = vmatprep.mubr.bf16.mxu0 %v1144
        %2460 = vmatmul.mubr.bf16.gmra.mrb[0].mxu0 %v1143
        %v2461 = vpop.f32.mrb[0].mxu0
        %v2462 = vadd.f32 0.0, %v2461
        %v2463 = vpop.f32.mrb[0].mxu0
        %v2464 = vadd.f32 0.0, %v2463
        %v2465 = vpop.f32.mrb[0].mxu0
        %v2466 = vadd.f32 0.0, %v2465
        %v2467 = vpop.f32.mrb[0].mxu0
        %v2468 = vadd.f32 0.0, %v2467
        %2469 = vmatprep.mubr.bf16.mxu0 %v1146
        %2470 = vmatmul.mubr.bf16.gmra.mrb[0].mxu0 %v1145
        %v2471 = vpop.f32.mrb[0].mxu0
        %v2472 = vadd.f32 0.0, %v2471
        %v2473 = vpop.f32.mrb[0].mxu0
        %v2474 = vadd.f32 0.0, %v2473
        %v2475 = vpop.f32.mrb[0].mxu0
        %v2476 = vadd.f32 0.0, %v2475
        %v2477 = vpop.f32.mrb[0].mxu0
        %v2478 = vadd.f32 0.0, %v2477
        %2479 = vmatprep.mubr.bf16.mxu0 %v1148
        %2480 = vmatmul.mubr.bf16.gmra.mrb[0].mxu0 %v1147
        %v2481 = vpop.f32.mrb[0].mxu0
        %v2482 = vadd.f32 0.0, %v2481
        %v2483 = vpop.f32.mrb[0].mxu0
        %v2484 = vadd.f32 0.0, %v2483
        %v2485 = vpop.f32.mrb[0].mxu0
        %v2486 = vadd.f32 0.0, %v2485
        %v2487 = vpop.f32.mrb[0].mxu0
        %v2488 = vadd.f32 0.0, %v2487
        %2489 = vmatprep.mubr.bf16.mxu0 %v1150
        %2490 = vmatmul.mubr.bf16.gmra.mrb[0].mxu0 %v1149
        %v2491 = vpop.f32.mrb[0].mxu0
        %v2492 = vadd.f32 0.0, %v2491
        %v2493 = vpop.f32.mrb[0].mxu0
        %v2494 = vadd.f32 0.0, %v2493
        %v2495 = vpop.f32.mrb[0].mxu0
        %v2496 = vadd.f32 0.0, %v2495
        %v2497 = vpop.f32.mrb[0].mxu0
        %v2498 = vadd.f32 0.0, %v2497
        %2499 = vmatprep.mubr.bf16.mxu0 %v1152
        %2500 = vmatmul.mubr.bf16.gmra.mrb[0].mxu0 %v1151
        %v2501 = vpop.f32.mrb[0].mxu0
        %v2502 = vadd.f32 0.0, %v2501
        %v2503 = vpop.f32.mrb[0].mxu0
        %v2504 = vadd.f32 0.0, %v2503
        %v2505 = vpop.f32.mrb[0].mxu0
        %v2506 = vadd.f32 0.0, %v2505
        %v2507 = vpop.f32.mrb[0].mxu0
        %v2508 = vadd.f32 0.0, %v2507
        %2509 = vmatprep.mubr.bf16.mxu0 %v1154
        %2510 = vmatmul.mubr.bf16.gmra.mrb[0].mxu0 %v1153
        %v2511 = vpop.f32.mrb[0].mxu0
        %v2512 = vadd.f32 0.0, %v2511
        %v2513 = vpop.f32.mrb[0].mxu0
        %v2514 = vadd.f32 0.0, %v2513
        %v2515 = vpop.f32.mrb[0].mxu0
        %v2516 = vadd.f32 0.0, %v2515
        %v2517 = vpop.f32.mrb[0].mxu0
        %v2518 = vadd.f32 0.0, %v2517
        %2519 = vmatprep.mubr.bf16.mxu0 %v1156
        %2520 = vmatmul.mubr.bf16.gmra.mrb[0].mxu0 %v1155
        %v2521 = vpop.f32.mrb[0].mxu0
        %v2522 = vadd.f32 0.0, %v2521
        %v2523 = vpop.f32.mrb[0].mxu0
        %v2524 = vadd.f32 0.0, %v2523
        %v2525 = vpop.f32.mrb[0].mxu0
        %v2526 = vadd.f32 0.0, %v2525
        %v2527 = vpop.f32.mrb[0].mxu0
        %v2528 = vadd.f32 0.0, %v2527
        %2529 = vmatprep.mubr.bf16.mxu0 %v1158
        %2530 = vmatmul.mubr.bf16.gmra.mrb[0].mxu0 %v1157
        %v2531 = vpop.f32.mrb[0].mxu0
        %v2532 = vadd.f32 0.0, %v2531
        %v2533 = vpop.f32.mrb[0].mxu0
        %v2534 = vadd.f32 0.0, %v2533
        %v2535 = vpop.f32.mrb[0].mxu0
        %v2536 = vadd.f32 0.0, %v2535
        %v2537 = vpop.f32.mrb[0].mxu0
        %v2538 = vadd.f32 0.0, %v2537
        %2539 = vmatprep.mubr.bf16.mxu0 %v1160
        %2540 = vmatmul.mubr.bf16.gmra.mrb[0].mxu0 %v1159
        %v2541 = vpop.f32.mrb[0].mxu0
        %v2542 = vadd.f32 0.0, %v2541
        %v2543 = vpop.f32.mrb[0].mxu0
        %v2544 = vadd.f32 0.0, %v2543
        %v2545 = vpop.f32.mrb[0].mxu0
        %v2546 = vadd.f32 0.0, %v2545
        %v2547 = vpop.f32.mrb[0].mxu0
        %v2548 = vadd.f32 0.0, %v2547
        %2549 = vmatprep.mubr.bf16.mxu0 %v1162
        %2550 = vmatmul.mubr.bf16.gmra.mrb[0].mxu0 %v1161
        %v2551 = vpop.f32.mrb[0].mxu0
        %v2552 = vadd.f32 0.0, %v2551
        %v2553 = vpop.f32.mrb[0].mxu0
        %v2554 = vadd.f32 0.0, %v2553
        %v2555 = vpop.f32.mrb[0].mxu0
        %v2556 = vadd.f32 0.0, %v2555
        %v2557 = vpop.f32.mrb[0].mxu0
        %v2558 = vadd.f32 0.0, %v2557
        %2559 = vmatprep.mubr.bf16.mxu0 %v1164
        %2560 = vmatmul.mubr.bf16.gmra.mrb[0].mxu0 %v1163
        %v2561 = vpop.f32.mrb[0].mxu0
        %v2562 = vadd.f32 0.0, %v2561
        %v2563 = vpop.f32.mrb[0].mxu0
        %v2564 = vadd.f32 0.0, %v2563
        %v2565 = vpop.f32.mrb[0].mxu0
        %v2566 = vadd.f32 0.0, %v2565
        %v2567 = vpop.f32.mrb[0].mxu0
        %v2568 = vadd.f32 0.0, %v2567
        %2569 = vmatprep.mubr.bf16.mxu0 %v1166
        %2570 = vmatmul.mubr.bf16.gmra.mrb[0].mxu0 %v1165
        %v2571 = vpop.f32.mrb[0].mxu0
        %v2572 = vadd.f32 0.0, %v2571
        %v2573 = vpop.f32.mrb[0].mxu0
        %v2574 = vadd.f32 0.0, %v2573
        %v2575 = vpop.f32.mrb[0].mxu0
        %v2576 = vadd.f32 0.0, %v2575
        %v2577 = vpop.f32.mrb[0].mxu0
        %v2578 = vadd.f32 0.0, %v2577
        %2579 = vmatprep.mubr.bf16.mxu0 %v1168
        %2580 = vmatmul.mubr.bf16.gmra.mrb[0].mxu0 %v1167
        %v2581 = vpop.f32.mrb[0].mxu0
        %v2582 = vadd.f32 0.0, %v2581
        %v2583 = vpop.f32.mrb[0].mxu0
        %v2584 = vadd.f32 0.0, %v2583
        %v2585 = vpop.f32.mrb[0].mxu0
        %v2586 = vadd.f32 0.0, %v2585
        %v2587 = vpop.f32.mrb[0].mxu0
        %v2588 = vadd.f32 0.0, %v2587
        %2589 = vmatprep.mubr.bf16.mxu0 %v1170
        %2590 = vmatmul.mubr.bf16.gmra.mrb[0].mxu0 %v1169
        %v2591 = vpop.f32.mrb[0].mxu0
        %v2592 = vadd.f32 0.0, %v2591
        %v2593 = vpop.f32.mrb[0].mxu0
        %v2594 = vadd.f32 0.0, %v2593
        %v2595 = vpop.f32.mrb[0].mxu0
        %v2596 = vadd.f32 0.0, %v2595
        %v2597 = vpop.f32.mrb[0].mxu0
        %v2598 = vadd.f32 0.0, %v2597
        %2599 = vmatprep.mubr.bf16.mxu0 %v1172
        %2600 = vmatmul.mubr.bf16.gmra.mrb[0].mxu0 %v1171
        %v2601 = vpop.f32.mrb[0].mxu0
        %v2602 = vadd.f32 0.0, %v2601
        %v2603 = vpop.f32.mrb[0].mxu0
        %v2604 = vadd.f32 0.0, %v2603
        %v2605 = vpop.f32.mrb[0].mxu0
        %v2606 = vadd.f32 0.0, %v2605
        %v2607 = vpop.f32.mrb[0].mxu0
        %v2608 = vadd.f32 0.0, %v2607
        %2609 = vdwg.mxu0
        %2610 = vmatprep.subr.bf16.mxu0 %v1692
        %2611 = vmatpush1.bf16.msra.mxu0 %v1691
        %2612 = vmatprep.subr.bf16.mxu0 %v1700
        %2613 = vmatpush1.bf16.msra.mxu0 %v1699
        %2614 = vmatprep.subr.bf16.mxu0 %v1708
        %2615 = vmatpush1.bf16.msra.mxu0 %v1707
        %2616 = vmatprep.subr.bf16.mxu0 %v1716
        %2617 = vmatpush1.bf16.msra.mxu0 %v1715
        %2618 = vmatprep.subr.bf16.mxu0 %v1724
        %2619 = vmatpush1.bf16.msra.mxu0 %v1723
        %2620 = vmatprep.subr.bf16.mxu0 %v1732
        %2621 = vmatpush1.bf16.msra.mxu0 %v1731
        %2622 = vmatprep.subr.bf16.mxu0 %v1740
        %2623 = vmatpush1.bf16.msra.mxu0 %v1739
        %2624 = vmatprep.subr.bf16.mxu0 %v1748
        %2625 = vmatpush1.bf16.msra.mxu0 %v1747
        %2626 = vmatprep.subr.bf16.mxu0 %v1756
        %2627 = vmatpush1.bf16.msra.mxu0 %v1755
        %2628 = vmatprep.subr.bf16.mxu0 %v1764
        %2629 = vmatpush1.bf16.msra.mxu0 %v1763
        %2630 = vmatprep.subr.bf16.mxu0 %v1772
        %2631 = vmatpush1.bf16.msra.mxu0 %v1771
        %2632 = vmatprep.subr.bf16.mxu0 %v1780
        %2633 = vmatpush1.bf16.msra.mxu0 %v1779
        %2634 = vmatprep.subr.bf16.mxu0 %v1788
        %2635 = vmatpush1.bf16.msra.mxu0 %v1787
        %2636 = vmatprep.subr.bf16.mxu0 %v1796
        %2637 = vmatpush1.bf16.msra.mxu0 %v1795
        %2638 = vmatprep.subr.bf16.mxu0 %v1804
        %2639 = vmatpush1.bf16.msra.mxu0 %v1803
        %2640 = vmatprep.subr.bf16.mxu0 %v1812
        %2641 = vmatpush1.bf16.msra.mxu0 %v1811
        %2642 = vmatprep.mubr.bf16.mxu0 %v1136
        %2643 = vmatmul.mubr.bf16.gmra.mrb[0].mxu0 %v1135
        %v2644 = vpop.f32.mrb[0].mxu0
        %v2645 = vadd.f32 0.0, %v2644
        %v2646 = vpop.f32.mrb[0].mxu0
        %v2647 = vadd.f32 0.0, %v2646
        %v2648 = vpop.f32.mrb[0].mxu0
        %v2649 = vadd.f32 0.0, %v2648
        %v2650 = vpop.f32.mrb[0].mxu0
        %v2651 = vadd.f32 0.0, %v2650
        %2652 = vmatprep.mubr.bf16.mxu0 %v1138
        %2653 = vmatmul.mubr.bf16.gmra.mrb[0].mxu0 %v1137
        %v2654 = vpop.f32.mrb[0].mxu0
        %v2655 = vadd.f32 0.0, %v2654
        %v2656 = vpop.f32.mrb[0].mxu0
        %v2657 = vadd.f32 0.0, %v2656
        %v2658 = vpop.f32.mrb[0].mxu0
        %v2659 = vadd.f32 0.0, %v2658
        %v2660 = vpop.f32.mrb[0].mxu0
        %v2661 = vadd.f32 0.0, %v2660
        %2662 = vmatprep.mubr.bf16.mxu0 %v1140
        %2663 = vmatmul.mubr.bf16.gmra.mrb[0].mxu0 %v1139
        %v2664 = vpop.f32.mrb[0].mxu0
        %v2665 = vadd.f32 0.0, %v2664
        %v2666 = vpop.f32.mrb[0].mxu0
        %v2667 = vadd.f32 0.0, %v2666
        %v2668 = vpop.f32.mrb[0].mxu0
        %v2669 = vadd.f32 0.0, %v2668
        %v2670 = vpop.f32.mrb[0].mxu0
        %v2671 = vadd.f32 0.0, %v2670
        %2672 = vmatprep.mubr.bf16.mxu0 %v1142
        %2673 = vmatmul.mubr.bf16.gmra.mrb[0].mxu0 %v1141
        %v2674 = vpop.f32.mrb[0].mxu0
        %v2675 = vadd.f32 0.0, %v2674
        %v2676 = vpop.f32.mrb[0].mxu0
        %v2677 = vadd.f32 0.0, %v2676
        %v2678 = vpop.f32.mrb[0].mxu0
        %v2679 = vadd.f32 0.0, %v2678
        %v2680 = vpop.f32.mrb[0].mxu0
        %v2681 = vadd.f32 0.0, %v2680
        %2682 = vmatprep.mubr.bf16.mxu0 %v1144
        %2683 = vmatmul.mubr.bf16.gmra.mrb[0].mxu0 %v1143
        %v2684 = vpop.f32.mrb[0].mxu0
        %v2685 = vadd.f32 0.0, %v2684
        %v2686 = vpop.f32.mrb[0].mxu0
        %v2687 = vadd.f32 0.0, %v2686
        %v2688 = vpop.f32.mrb[0].mxu0
        %v2689 = vadd.f32 0.0, %v2688
        %v2690 = vpop.f32.mrb[0].mxu0
        %v2691 = vadd.f32 0.0, %v2690
        %2692 = vmatprep.mubr.bf16.mxu0 %v1146
        %2693 = vmatmul.mubr.bf16.gmra.mrb[0].mxu0 %v1145
        %v2694 = vpop.f32.mrb[0].mxu0
        %v2695 = vadd.f32 0.0, %v2694
        %v2696 = vpop.f32.mrb[0].mxu0
        %v2697 = vadd.f32 0.0, %v2696
        %v2698 = vpop.f32.mrb[0].mxu0
        %v2699 = vadd.f32 0.0, %v2698
        %v2700 = vpop.f32.mrb[0].mxu0
        %v2701 = vadd.f32 0.0, %v2700
        %2702 = vmatprep.mubr.bf16.mxu0 %v1148
        %2703 = vmatmul.mubr.bf16.gmra.mrb[0].mxu0 %v1147
        %v2704 = vpop.f32.mrb[0].mxu0
        %v2705 = vadd.f32 0.0, %v2704
        %v2706 = vpop.f32.mrb[0].mxu0
        %v2707 = vadd.f32 0.0, %v2706
        %v2708 = vpop.f32.mrb[0].mxu0
        %v2709 = vadd.f32 0.0, %v2708
        %v2710 = vpop.f32.mrb[0].mxu0
        %v2711 = vadd.f32 0.0, %v2710
        %2712 = vmatprep.mubr.bf16.mxu0 %v1150
        %2713 = vmatmul.mubr.bf16.gmra.mrb[0].mxu0 %v1149
        %v2714 = vpop.f32.mrb[0].mxu0
        %v2715 = vadd.f32 0.0, %v2714
        %v2716 = vpop.f32.mrb[0].mxu0
        %v2717 = vadd.f32 0.0, %v2716
        %v2718 = vpop.f32.mrb[0].mxu0
        %v2719 = vadd.f32 0.0, %v2718
        %v2720 = vpop.f32.mrb[0].mxu0
        %v2721 = vadd.f32 0.0, %v2720
        %2722 = vmatprep.mubr.bf16.mxu0 %v1152
        %2723 = vmatmul.mubr.bf16.gmra.mrb[0].mxu0 %v1151
        %v2724 = vpop.f32.mrb[0].mxu0
        %v2725 = vadd.f32 0.0, %v2724
        %v2726 = vpop.f32.mrb[0].mxu0
        %v2727 = vadd.f32 0.0, %v2726
        %v2728 = vpop.f32.mrb[0].mxu0
        %v2729 = vadd.f32 0.0, %v2728
        %v2730 = vpop.f32.mrb[0].mxu0
        %v2731 = vadd.f32 0.0, %v2730
        %2732 = vmatprep.mubr.bf16.mxu0 %v1154
        %2733 = vmatmul.mubr.bf16.gmra.mrb[0].mxu0 %v1153
        %v2734 = vpop.f32.mrb[0].mxu0
        %v2735 = vadd.f32 0.0, %v2734
        %v2736 = vpop.f32.mrb[0].mxu0
        %v2737 = vadd.f32 0.0, %v2736
        %v2738 = vpop.f32.mrb[0].mxu0
        %v2739 = vadd.f32 0.0, %v2738
        %v2740 = vpop.f32.mrb[0].mxu0
        %v2741 = vadd.f32 0.0, %v2740
        %2742 = vmatprep.mubr.bf16.mxu0 %v1156
        %2743 = vmatmul.mubr.bf16.gmra.mrb[0].mxu0 %v1155
        %v2744 = vpop.f32.mrb[0].mxu0
        %v2745 = vadd.f32 0.0, %v2744
        %v2746 = vpop.f32.mrb[0].mxu0
        %v2747 = vadd.f32 0.0, %v2746
        %v2748 = vpop.f32.mrb[0].mxu0
        %v2749 = vadd.f32 0.0, %v2748
        %v2750 = vpop.f32.mrb[0].mxu0
        %v2751 = vadd.f32 0.0, %v2750
        %2752 = vmatprep.mubr.bf16.mxu0 %v1158
        %2753 = vmatmul.mubr.bf16.gmra.mrb[0].mxu0 %v1157
        %v2754 = vpop.f32.mrb[0].mxu0
        %v2755 = vadd.f32 0.0, %v2754
        %v2756 = vpop.f32.mrb[0].mxu0
        %v2757 = vadd.f32 0.0, %v2756
        %v2758 = vpop.f32.mrb[0].mxu0
        %v2759 = vadd.f32 0.0, %v2758
        %v2760 = vpop.f32.mrb[0].mxu0
        %v2761 = vadd.f32 0.0, %v2760
        %2762 = vmatprep.mubr.bf16.mxu0 %v1160
        %2763 = vmatmul.mubr.bf16.gmra.mrb[0].mxu0 %v1159
        %v2764 = vpop.f32.mrb[0].mxu0
        %v2765 = vadd.f32 0.0, %v2764
        %v2766 = vpop.f32.mrb[0].mxu0
        %v2767 = vadd.f32 0.0, %v2766
        %v2768 = vpop.f32.mrb[0].mxu0
        %v2769 = vadd.f32 0.0, %v2768
        %v2770 = vpop.f32.mrb[0].mxu0
        %v2771 = vadd.f32 0.0, %v2770
        %2772 = vmatprep.mubr.bf16.mxu0 %v1162
        %2773 = vmatmul.mubr.bf16.gmra.mrb[0].mxu0 %v1161
        %v2774 = vpop.f32.mrb[0].mxu0
        %v2775 = vadd.f32 0.0, %v2774
        %v2776 = vpop.f32.mrb[0].mxu0
        %v2777 = vadd.f32 0.0, %v2776
        %v2778 = vpop.f32.mrb[0].mxu0
        %v2779 = vadd.f32 0.0, %v2778
        %v2780 = vpop.f32.mrb[0].mxu0
        %v2781 = vadd.f32 0.0, %v2780
        %2782 = vmatprep.mubr.bf16.mxu0 %v1164
        %2783 = vmatmul.mubr.bf16.gmra.mrb[0].mxu0 %v1163
        %v2784 = vpop.f32.mrb[0].mxu0
        %v2785 = vadd.f32 0.0, %v2784
        %v2786 = vpop.f32.mrb[0].mxu0
        %v2787 = vadd.f32 0.0, %v2786
        %v2788 = vpop.f32.mrb[0].mxu0
        %v2789 = vadd.f32 0.0, %v2788
        %v2790 = vpop.f32.mrb[0].mxu0
        %v2791 = vadd.f32 0.0, %v2790
        %2792 = vmatprep.mubr.bf16.mxu0 %v1166
        %2793 = vmatmul.mubr.bf16.gmra.mrb[0].mxu0 %v1165
        %v2794 = vpop.f32.mrb[0].mxu0
        %v2795 = vadd.f32 0.0, %v2794
        %v2796 = vpop.f32.mrb[0].mxu0
        %v2797 = vadd.f32 0.0, %v2796
        %v2798 = vpop.f32.mrb[0].mxu0
        %v2799 = vadd.f32 0.0, %v2798
        %v2800 = vpop.f32.mrb[0].mxu0
        %v2801 = vadd.f32 0.0, %v2800
        %2802 = vmatprep.mubr.bf16.mxu0 %v1168
        %2803 = vmatmul.mubr.bf16.gmra.mrb[0].mxu0 %v1167
        %v2804 = vpop.f32.mrb[0].mxu0
        %v2805 = vadd.f32 0.0, %v2804
        %v2806 = vpop.f32.mrb[0].mxu0
        %v2807 = vadd.f32 0.0, %v2806
        %v2808 = vpop.f32.mrb[0].mxu0
        %v2809 = vadd.f32 0.0, %v2808
        %v2810 = vpop.f32.mrb[0].mxu0
        %v2811 = vadd.f32 0.0, %v2810
        %2812 = vmatprep.mubr.bf16.mxu0 %v1170
        %2813 = vmatmul.mubr.bf16.gmra.mrb[0].mxu0 %v1169
        %v2814 = vpop.f32.mrb[0].mxu0
        %v2815 = vadd.f32 0.0, %v2814
        %v2816 = vpop.f32.mrb[0].mxu0
        %v2817 = vadd.f32 0.0, %v2816
        %v2818 = vpop.f32.mrb[0].mxu0
        %v2819 = vadd.f32 0.0, %v2818
        %v2820 = vpop.f32.mrb[0].mxu0
        %v2821 = vadd.f32 0.0, %v2820
        %2822 = vmatprep.mubr.bf16.mxu0 %v1172
        %2823 = vmatmul.mubr.bf16.gmra.mrb[0].mxu0 %v1171
        %v2824 = vpop.f32.mrb[0].mxu0
        %v2825 = vadd.f32 0.0, %v2824
        %v2826 = vpop.f32.mrb[0].mxu0
        %v2827 = vadd.f32 0.0, %v2826
        %v2828 = vpop.f32.mrb[0].mxu0
        %v2829 = vadd.f32 0.0, %v2828
        %v2830 = vpop.f32.mrb[0].mxu0
        %v2831 = vadd.f32 0.0, %v2830
        %2832 = vdwg.mxu0
        %v2833 = vadd.f32 %v755, %v1976
        %v2834 = vadd.f32 %v756, %v1978
        %v2835 = vadd.f32 %v757, %v2199
        %v2836 = vadd.f32 %v758, %v2201
        %v2837 = vadd.f32 %v759, %v2422
        %v2838 = vadd.f32 %v760, %v2424
        %v2839 = vadd.f32 %v761, %v2645
        %v2840 = vadd.f32 %v762, %v2647
        %v2841 = vadd.f32 %v763, %v1980
        %v2842 = vadd.f32 %v764, %v1982
        %v2843 = vadd.f32 %v765, %v2203
        %v2844 = vadd.f32 %v766, %v2205
        %v2845 = vadd.f32 %v767, %v2426
        %v2846 = vadd.f32 %v768, %v2428
        %v2847 = vadd.f32 %v769, %v2649
        %v2848 = vadd.f32 %v770, %v2651
        %v2849 = vadd.f32 %v771, %v1986
        %v2850 = vadd.f32 %v772, %v1988
        %v2851 = vadd.f32 %v773, %v2209
        %v2852 = vadd.f32 %v774, %v2211
        %v2853 = vadd.f32 %v775, %v2432
        %v2854 = vadd.f32 %v776, %v2434
        %v2855 = vadd.f32 %v777, %v2655
        %v2856 = vadd.f32 %v778, %v2657
        %v2857 = vadd.f32 %v779, %v1990
        %v2858 = vadd.f32 %v780, %v1992
        %v2859 = vadd.f32 %v781, %v2213
        %v2860 = vadd.f32 %v782, %v2215
        %v2861 = vadd.f32 %v783, %v2436
        %v2862 = vadd.f32 %v784, %v2438
        %v2863 = vadd.f32 %v785, %v2659
        %v2864 = vadd.f32 %v786, %v2661
        %v2865 = vadd.f32 %v787, %v1996
        %v2866 = vadd.f32 %v788, %v1998
        %v2867 = vadd.f32 %v789, %v2219
        %v2868 = vadd.f32 %v790, %v2221
        %v2869 = vadd.f32 %v791, %v2442
        %v2870 = vadd.f32 %v792, %v2444
        %v2871 = vadd.f32 %v793, %v2665
        %v2872 = vadd.f32 %v794, %v2667
        %v2873 = vadd.f32 %v795, %v2000
        %v2874 = vadd.f32 %v796, %v2002
        %v2875 = vadd.f32 %v797, %v2223
        %v2876 = vadd.f32 %v798, %v2225
        %v2877 = vadd.f32 %v799, %v2446
        %v2878 = vadd.f32 %v800, %v2448
        %v2879 = vadd.f32 %v801, %v2669
        %v2880 = vadd.f32 %v802, %v2671
        %v2881 = vadd.f32 %v803, %v2006
        %v2882 = vadd.f32 %v804, %v2008
        %v2883 = vadd.f32 %v805, %v2229
        %v2884 = vadd.f32 %v806, %v2231
        %v2885 = vadd.f32 %v807, %v2452
        %v2886 = vadd.f32 %v808, %v2454
        %v2887 = vadd.f32 %v809, %v2675
        %v2888 = vadd.f32 %v810, %v2677
        %v2889 = vadd.f32 %v811, %v2010
        %v2890 = vadd.f32 %v812, %v2012
        %v2891 = vadd.f32 %v813, %v2233
        %v2892 = vadd.f32 %v814, %v2235
        %v2893 = vadd.f32 %v815, %v2456
        %v2894 = vadd.f32 %v816, %v2458
        %v2895 = vadd.f32 %v817, %v2679
        %v2896 = vadd.f32 %v818, %v2681
        %v2897 = vadd.f32 %v819, %v2016
        %v2898 = vadd.f32 %v820, %v2018
        %v2899 = vadd.f32 %v821, %v2239
        %v2900 = vadd.f32 %v822, %v2241
        %v2901 = vadd.f32 %v823, %v2462
        %v2902 = vadd.f32 %v824, %v2464
        %v2903 = vadd.f32 %v825, %v2685
        %v2904 = vadd.f32 %v826, %v2687
        %v2905 = vadd.f32 %v827, %v2020
        %v2906 = vadd.f32 %v828, %v2022
        %v2907 = vadd.f32 %v829, %v2243
        %v2908 = vadd.f32 %v830, %v2245
        %v2909 = vadd.f32 %v831, %v2466
        %v2910 = vadd.f32 %v832, %v2468
        %v2911 = vadd.f32 %v833, %v2689
        %v2912 = vadd.f32 %v834, %v2691
        %v2913 = vadd.f32 %v835, %v2026
        %v2914 = vadd.f32 %v836, %v2028
        %v2915 = vadd.f32 %v837, %v2249
        %v2916 = vadd.f32 %v838, %v2251
        %v2917 = vadd.f32 %v839, %v2472
        %v2918 = vadd.f32 %v840, %v2474
        %v2919 = vadd.f32 %v841, %v2695
        %v2920 = vadd.f32 %v842, %v2697
        %v2921 = vadd.f32 %v843, %v2030
        %v2922 = vadd.f32 %v844, %v2032
        %v2923 = vadd.f32 %v845, %v2253
        %v2924 = vadd.f32 %v846, %v2255
        %v2925 = vadd.f32 %v847, %v2476
        %v2926 = vadd.f32 %v848, %v2478
        %v2927 = vadd.f32 %v849, %v2699
        %v2928 = vadd.f32 %v850, %v2701
        %v2929 = vadd.f32 %v851, %v2036
        %v2930 = vadd.f32 %v852, %v2038
        %v2931 = vadd.f32 %v853, %v2259
        %v2932 = vadd.f32 %v854, %v2261
        %v2933 = vadd.f32 %v855, %v2482
        %v2934 = vadd.f32 %v856, %v2484
        %v2935 = vadd.f32 %v857, %v2705
        %v2936 = vadd.f32 %v858, %v2707
        %v2937 = vadd.f32 %v859, %v2040
        %v2938 = vadd.f32 %v860, %v2042
        %v2939 = vadd.f32 %v861, %v2263
        %v2940 = vadd.f32 %v862, %v2265
        %v2941 = vadd.f32 %v863, %v2486
        %v2942 = vadd.f32 %v864, %v2488
        %v2943 = vadd.f32 %v865, %v2709
        %v2944 = vadd.f32 %v866, %v2711
        %v2945 = vadd.f32 %v867, %v2046
        %v2946 = vadd.f32 %v868, %v2048
        %v2947 = vadd.f32 %v869, %v2269
        %v2948 = vadd.f32 %v870, %v2271
        %v2949 = vadd.f32 %v871, %v2492
        %v2950 = vadd.f32 %v872, %v2494
        %v2951 = vadd.f32 %v873, %v2715
        %v2952 = vadd.f32 %v874, %v2717
        %v2953 = vadd.f32 %v875, %v2050
        %v2954 = vadd.f32 %v876, %v2052
        %v2955 = vadd.f32 %v877, %v2273
        %v2956 = vadd.f32 %v878, %v2275
        %v2957 = vadd.f32 %v879, %v2496
        %v2958 = vadd.f32 %v880, %v2498
        %v2959 = vadd.f32 %v881, %v2719
        %v2960 = vadd.f32 %v882, %v2721
        %v2961 = vadd.f32 %v883, %v2056
        %v2962 = vadd.f32 %v884, %v2058
        %v2963 = vadd.f32 %v885, %v2279
        %v2964 = vadd.f32 %v886, %v2281
        %v2965 = vadd.f32 %v887, %v2502
        %v2966 = vadd.f32 %v888, %v2504
        %v2967 = vadd.f32 %v889, %v2725
        %v2968 = vadd.f32 %v890, %v2727
        %v2969 = vadd.f32 %v891, %v2060
        %v2970 = vadd.f32 %v892, %v2062
        %v2971 = vadd.f32 %v893, %v2283
        %v2972 = vadd.f32 %v894, %v2285
        %v2973 = vadd.f32 %v895, %v2506
        %v2974 = vadd.f32 %v896, %v2508
        %v2975 = vadd.f32 %v897, %v2729
        %v2976 = vadd.f32 %v898, %v2731
        %v2977 = vadd.f32 %v899, %v2066
        %v2978 = vadd.f32 %v900, %v2068
        %v2979 = vadd.f32 %v901, %v2289
        %v2980 = vadd.f32 %v902, %v2291
        %v2981 = vadd.f32 %v903, %v2512
        %v2982 = vadd.f32 %v904, %v2514
        %v2983 = vadd.f32 %v905, %v2735
        %v2984 = vadd.f32 %v906, %v2737
        %v2985 = vadd.f32 %v907, %v2070
        %v2986 = vadd.f32 %v908, %v2072
        %v2987 = vadd.f32 %v909, %v2293
        %v2988 = vadd.f32 %v910, %v2295
        %v2989 = vadd.f32 %v911, %v2516
        %v2990 = vadd.f32 %v912, %v2518
        %v2991 = vadd.f32 %v913, %v2739
        %v2992 = vadd.f32 %v914, %v2741
        %v2993 = vadd.f32 %v915, %v2076
        %v2994 = vadd.f32 %v916, %v2078
        %v2995 = vadd.f32 %v917, %v2299
        %v2996 = vadd.f32 %v918, %v2301
        %v2997 = vadd.f32 %v919, %v2522
        %v2998 = vadd.f32 %v920, %v2524
        %v2999 = vadd.f32 %v921, %v2745
        %v3000 = vadd.f32 %v922, %v2747
        %v3001 = vadd.f32 %v923, %v2080
        %v3002 = vadd.f32 %v924, %v2082
        %v3003 = vadd.f32 %v925, %v2303
        %v3004 = vadd.f32 %v926, %v2305
        %v3005 = vadd.f32 %v927, %v2526
        %v3006 = vadd.f32 %v928, %v2528
        %v3007 = vadd.f32 %v929, %v2749
        %v3008 = vadd.f32 %v930, %v2751
        %v3009 = vadd.f32 %v931, %v2086
        %v3010 = vadd.f32 %v932, %v2088
        %v3011 = vadd.f32 %v933, %v2309
        %v3012 = vadd.f32 %v934, %v2311
        %v3013 = vadd.f32 %v935, %v2532
        %v3014 = vadd.f32 %v936, %v2534
        %v3015 = vadd.f32 %v937, %v2755
        %v3016 = vadd.f32 %v938, %v2757
        %v3017 = vadd.f32 %v939, %v2090
        %v3018 = vadd.f32 %v940, %v2092
        %v3019 = vadd.f32 %v941, %v2313
        %v3020 = vadd.f32 %v942, %v2315
        %v3021 = vadd.f32 %v943, %v2536
        %v3022 = vadd.f32 %v944, %v2538
        %v3023 = vadd.f32 %v945, %v2759
        %v3024 = vadd.f32 %v946, %v2761
        %v3025 = vadd.f32 %v947, %v2096
        %v3026 = vadd.f32 %v948, %v2098
        %v3027 = vadd.f32 %v949, %v2319
        %v3028 = vadd.f32 %v950, %v2321
        %v3029 = vadd.f32 %v951, %v2542
        %v3030 = vadd.f32 %v952, %v2544
        %v3031 = vadd.f32 %v953, %v2765
        %v3032 = vadd.f32 %v954, %v2767
        %v3033 = vadd.f32 %v955, %v2100
        %v3034 = vadd.f32 %v956, %v2102
        %v3035 = vadd.f32 %v957, %v2323
        %v3036 = vadd.f32 %v958, %v2325
        %v3037 = vadd.f32 %v959, %v2546
        %v3038 = vadd.f32 %v960, %v2548
        %v3039 = vadd.f32 %v961, %v2769
        %v3040 = vadd.f32 %v962, %v2771
        %v3041 = vadd.f32 %v963, %v2106
        %v3042 = vadd.f32 %v964, %v2108
        %v3043 = vadd.f32 %v965, %v2329
        %v3044 = vadd.f32 %v966, %v2331
        %v3045 = vadd.f32 %v967, %v2552
        %v3046 = vadd.f32 %v968, %v2554
        %v3047 = vadd.f32 %v969, %v2775
        %v3048 = vadd.f32 %v970, %v2777
        %v3049 = vadd.f32 %v971, %v2110
        %v3050 = vadd.f32 %v972, %v2112
        %v3051 = vadd.f32 %v973, %v2333
        %v3052 = vadd.f32 %v974, %v2335
        %v3053 = vadd.f32 %v975, %v2556
        %v3054 = vadd.f32 %v976, %v2558
        %v3055 = vadd.f32 %v977, %v2779
        %v3056 = vadd.f32 %v978, %v2781
        %v3057 = vadd.f32 %v979, %v2116
        %v3058 = vadd.f32 %v980, %v2118
        %v3059 = vadd.f32 %v981, %v2339
        %v3060 = vadd.f32 %v982, %v2341
        %v3061 = vadd.f32 %v983, %v2562
        %v3062 = vadd.f32 %v984, %v2564
        %v3063 = vadd.f32 %v985, %v2785
        %v3064 = vadd.f32 %v986, %v2787
        %v3065 = vadd.f32 %v987, %v2120
        %v3066 = vadd.f32 %v988, %v2122
        %v3067 = vadd.f32 %v989, %v2343
        %v3068 = vadd.f32 %v990, %v2345
        %v3069 = vadd.f32 %v991, %v2566
        %v3070 = vadd.f32 %v992, %v2568
        %v3071 = vadd.f32 %v993, %v2789
        %v3072 = vadd.f32 %v994, %v2791
        %v3073 = vadd.f32 %v995, %v2126
        %v3074 = vadd.f32 %v996, %v2128
        %v3075 = vadd.f32 %v997, %v2349
        %v3076 = vadd.f32 %v998, %v2351
        %v3077 = vadd.f32 %v999, %v2572
        %v3078 = vadd.f32 %v1000, %v2574
        %v3079 = vadd.f32 %v1001, %v2795
        %v3080 = vadd.f32 %v1002, %v2797
        %v3081 = vadd.f32 %v1003, %v2130
        %v3082 = vadd.f32 %v1004, %v2132
        %v3083 = vadd.f32 %v1005, %v2353
        %v3084 = vadd.f32 %v1006, %v2355
        %v3085 = vadd.f32 %v1007, %v2576
        %v3086 = vadd.f32 %v1008, %v2578
        %v3087 = vadd.f32 %v1009, %v2799
        %v3088 = vadd.f32 %v1010, %v2801
        %v3089 = vadd.f32 %v1011, %v2136
        %v3090 = vadd.f32 %v1012, %v2138
        %v3091 = vadd.f32 %v1013, %v2359
        %v3092 = vadd.f32 %v1014, %v2361
        %v3093 = vadd.f32 %v1015, %v2582
        %v3094 = vadd.f32 %v1016, %v2584
        %v3095 = vadd.f32 %v1017, %v2805
        %v3096 = vadd.f32 %v1018, %v2807
        %v3097 = vadd.f32 %v1019, %v2140
        %v3098 = vadd.f32 %v1020, %v2142
        %v3099 = vadd.f32 %v1021, %v2363
        %v3100 = vadd.f32 %v1022, %v2365
        %v3101 = vadd.f32 %v1023, %v2586
        %v3102 = vadd.f32 %v1024, %v2588
        %v3103 = vadd.f32 %v1025, %v2809
        %v3104 = vadd.f32 %v1026, %v2811
        %v3105 = vadd.f32 %v1027, %v2146
        %v3106 = vadd.f32 %v1028, %v2148
        %v3107 = vadd.f32 %v1029, %v2369
        %v3108 = vadd.f32 %v1030, %v2371
        %v3109 = vadd.f32 %v1031, %v2592
        %v3110 = vadd.f32 %v1032, %v2594
        %v3111 = vadd.f32 %v1033, %v2815
        %v3112 = vadd.f32 %v1034, %v2817
        %v3113 = vadd.f32 %v1035, %v2150
        %v3114 = vadd.f32 %v1036, %v2152
        %v3115 = vadd.f32 %v1037, %v2373
        %v3116 = vadd.f32 %v1038, %v2375
        %v3117 = vadd.f32 %v1039, %v2596
        %v3118 = vadd.f32 %v1040, %v2598
        %v3119 = vadd.f32 %v1041, %v2819
        %v3120 = vadd.f32 %v1042, %v2821
        %v3121 = vadd.f32 %v1043, %v2156
        %v3122 = vadd.f32 %v1044, %v2158
        %v3123 = vadd.f32 %v1045, %v2379
        %v3124 = vadd.f32 %v1046, %v2381
        %v3125 = vadd.f32 %v1047, %v2602
        %v3126 = vadd.f32 %v1048, %v2604
        %v3127 = vadd.f32 %v1049, %v2825
        %v3128 = vadd.f32 %v1050, %v2827
        %v3129 = vadd.f32 %v1051, %v2160
        %v3130 = vadd.f32 %v1052, %v2162
        %v3131 = vadd.f32 %v1053, %v2383
        %v3132 = vadd.f32 %v1054, %v2385
        %v3133 = vadd.f32 %v1055, %v2606
        %v3134 = vadd.f32 %v1056, %v2608
        %v3135 = vadd.f32 %v1057, %v2829
        %v3136 = vadd.f32 %v1058, %v2831
        %3137 = vst [vmem:[#allocation2] sm:$0xff] %v2833
        %3138 = vst [vmem:[#allocation2 + $0x8] sm:$0xff] %v2834
        %3139 = vst [vmem:[#allocation2 + $0x10] sm:$0xff] %v2835
        %3140 = vst [vmem:[#allocation2 + $0x18] sm:$0xff] %v2836
        %3141 = vst [vmem:[#allocation2 + $0x20] sm:$0xff] %v2837
        %3142 = vst [vmem:[#allocation2 + $0x28] sm:$0xff] %v2838
        %3143 = vst [vmem:[#allocation2 + $0x30] sm:$0xff] %v2839
        %3144 = vst [vmem:[#allocation2 + $0x38] sm:$0xff] %v2840
        %3145 = vst [vmem:[#allocation2 + $0x40] sm:$0xff] %v2841
        %3146 = vst [vmem:[#allocation2 + $0x48] sm:$0xff] %v2842
        %3147 = vst [vmem:[#allocation2 + $0x50] sm:$0xff] %v2843
        %3148 = vst [vmem:[#allocation2 + $0x58] sm:$0xff] %v2844
        %3149 = vst [vmem:[#allocation2 + $0x60] sm:$0xff] %v2845
        %3150 = vst [vmem:[#allocation2 + $0x68] sm:$0xff] %v2846
        %3151 = vst [vmem:[#allocation2 + $0x70] sm:$0xff] %v2847
        %3152 = vst [vmem:[#allocation2 + $0x78] sm:$0xff] %v2848
        %3153 = vst [vmem:[#allocation2 + $0x80] sm:$0xff] %v2849
        %3154 = vst [vmem:[#allocation2 + $0x88] sm:$0xff] %v2850
        %3155 = vst [vmem:[#allocation2 + $0x90] sm:$0xff] %v2851
        %3156 = vst [vmem:[#allocation2 + $0x98] sm:$0xff] %v2852
        %3157 = vst [vmem:[#allocation2 + $0xa0] sm:$0xff] %v2853
        %3158 = vst [vmem:[#allocation2 + $0xa8] sm:$0xff] %v2854
        %3159 = vst [vmem:[#allocation2 + $0xb0] sm:$0xff] %v2855
        %3160 = vst [vmem:[#allocation2 + $0xb8] sm:$0xff] %v2856
        %3161 = vst [vmem:[#allocation2 + $0xc0] sm:$0xff] %v2857
        %3162 = vst [vmem:[#allocation2 + $0xc8] sm:$0xff] %v2858
        %3163 = vst [vmem:[#allocation2 + $0xd0] sm:$0xff] %v2859
        %3164 = vst [vmem:[#allocation2 + $0xd8] sm:$0xff] %v2860
        %3165 = vst [vmem:[#allocation2 + $0xe0] sm:$0xff] %v2861
        %3166 = vst [vmem:[#allocation2 + $0xe8] sm:$0xff] %v2862
        %3167 = vst [vmem:[#allocation2 + $0xf0] sm:$0xff] %v2863
        %3168 = vst [vmem:[#allocation2 + $0xf8] sm:$0xff] %v2864
        %3169 = vst [vmem:[#allocation2 + $0x100] sm:$0xff] %v2865
        %3170 = vst [vmem:[#allocation2 + $0x108] sm:$0xff] %v2866
        %3171 = vst [vmem:[#allocation2 + $0x110] sm:$0xff] %v2867
        %3172 = vst [vmem:[#allocation2 + $0x118] sm:$0xff] %v2868
        %3173 = vst [vmem:[#allocation2 + $0x120] sm:$0xff] %v2869
        %3174 = vst [vmem:[#allocation2 + $0x128] sm:$0xff] %v2870
        %3175 = vst [vmem:[#allocation2 + $0x130] sm:$0xff] %v2871
        %3176 = vst [vmem:[#allocation2 + $0x138] sm:$0xff] %v2872
        %3177 = vst [vmem:[#allocation2 + $0x140] sm:$0xff] %v2873
        %3178 = vst [vmem:[#allocation2 + $0x148] sm:$0xff] %v2874
        %3179 = vst [vmem:[#allocation2 + $0x150] sm:$0xff] %v2875
        %3180 = vst [vmem:[#allocation2 + $0x158] sm:$0xff] %v2876
        %3181 = vst [vmem:[#allocation2 + $0x160] sm:$0xff] %v2877
        %3182 = vst [vmem:[#allocation2 + $0x168] sm:$0xff] %v2878
        %3183 = vst [vmem:[#allocation2 + $0x170] sm:$0xff] %v2879
        %3184 = vst [vmem:[#allocation2 + $0x178] sm:$0xff] %v2880
        %3185 = vst [vmem:[#allocation2 + $0x180] sm:$0xff] %v2881
        %3186 = vst [vmem:[#allocation2 + $0x188] sm:$0xff] %v2882
        %3187 = vst [vmem:[#allocation2 + $0x190] sm:$0xff] %v2883
        %3188 = vst [vmem:[#allocation2 + $0x198] sm:$0xff] %v2884
        %3189 = vst [vmem:[#allocation2 + $0x1a0] sm:$0xff] %v2885
        %3190 = vst [vmem:[#allocation2 + $0x1a8] sm:$0xff] %v2886
        %3191 = vst [vmem:[#allocation2 + $0x1b0] sm:$0xff] %v2887
        %3192 = vst [vmem:[#allocation2 + $0x1b8] sm:$0xff] %v2888
        %3193 = vst [vmem:[#allocation2 + $0x1c0] sm:$0xff] %v2889
        %3194 = vst [vmem:[#allocation2 + $0x1c8] sm:$0xff] %v2890
        %3195 = vst [vmem:[#allocation2 + $0x1d0] sm:$0xff] %v2891
        %3196 = vst [vmem:[#allocation2 + $0x1d8] sm:$0xff] %v2892
        %3197 = vst [vmem:[#allocation2 + $0x1e0] sm:$0xff] %v2893
        %3198 = vst [vmem:[#allocation2 + $0x1e8] sm:$0xff] %v2894
        %3199 = vst [vmem:[#allocation2 + $0x1f0] sm:$0xff] %v2895
        %3200 = vst [vmem:[#allocation2 + $0x1f8] sm:$0xff] %v2896
        %3201 = vst [vmem:[#allocation2 + $0x200] sm:$0xff] %v2897
        %3202 = vst [vmem:[#allocation2 + $0x208] sm:$0xff] %v2898
        %3203 = vst [vmem:[#allocation2 + $0x210] sm:$0xff] %v2899
        %3204 = vst [vmem:[#allocation2 + $0x218] sm:$0xff] %v2900
        %3205 = vst [vmem:[#allocation2 + $0x220] sm:$0xff] %v2901
        %3206 = vst [vmem:[#allocation2 + $0x228] sm:$0xff] %v2902
        %3207 = vst [vmem:[#allocation2 + $0x230] sm:$0xff] %v2903
        %3208 = vst [vmem:[#allocation2 + $0x238] sm:$0xff] %v2904
        %3209 = vst [vmem:[#allocation2 + $0x240] sm:$0xff] %v2905
        %3210 = vst [vmem:[#allocation2 + $0x248] sm:$0xff] %v2906
        %3211 = vst [vmem:[#allocation2 + $0x250] sm:$0xff] %v2907
        %3212 = vst [vmem:[#allocation2 + $0x258] sm:$0xff] %v2908
        %3213 = vst [vmem:[#allocation2 + $0x260] sm:$0xff] %v2909
        %3214 = vst [vmem:[#allocation2 + $0x268] sm:$0xff] %v2910
        %3215 = vst [vmem:[#allocation2 + $0x270] sm:$0xff] %v2911
        %3216 = vst [vmem:[#allocation2 + $0x278] sm:$0xff] %v2912
        %3217 = vst [vmem:[#allocation2 + $0x280] sm:$0xff] %v2913
        %3218 = vst [vmem:[#allocation2 + $0x288] sm:$0xff] %v2914
        %3219 = vst [vmem:[#allocation2 + $0x290] sm:$0xff] %v2915
        %3220 = vst [vmem:[#allocation2 + $0x298] sm:$0xff] %v2916
        %3221 = vst [vmem:[#allocation2 + $0x2a0] sm:$0xff] %v2917
        %3222 = vst [vmem:[#allocation2 + $0x2a8] sm:$0xff] %v2918
        %3223 = vst [vmem:[#allocation2 + $0x2b0] sm:$0xff] %v2919
        %3224 = vst [vmem:[#allocation2 + $0x2b8] sm:$0xff] %v2920
        %3225 = vst [vmem:[#allocation2 + $0x2c0] sm:$0xff] %v2921
        %3226 = vst [vmem:[#allocation2 + $0x2c8] sm:$0xff] %v2922
        %3227 = vst [vmem:[#allocation2 + $0x2d0] sm:$0xff] %v2923
        %3228 = vst [vmem:[#allocation2 + $0x2d8] sm:$0xff] %v2924
        %3229 = vst [vmem:[#allocation2 + $0x2e0] sm:$0xff] %v2925
        %3230 = vst [vmem:[#allocation2 + $0x2e8] sm:$0xff] %v2926
        %3231 = vst [vmem:[#allocation2 + $0x2f0] sm:$0xff] %v2927
        %3232 = vst [vmem:[#allocation2 + $0x2f8] sm:$0xff] %v2928
        %3233 = vst [vmem:[#allocation2 + $0x300] sm:$0xff] %v2929
        %3234 = vst [vmem:[#allocation2 + $0x308] sm:$0xff] %v2930
        %3235 = vst [vmem:[#allocation2 + $0x310] sm:$0xff] %v2931
        %3236 = vst [vmem:[#allocation2 + $0x318] sm:$0xff] %v2932
        %3237 = vst [vmem:[#allocation2 + $0x320] sm:$0xff] %v2933
        %3238 = vst [vmem:[#allocation2 + $0x328] sm:$0xff] %v2934
        %3239 = vst [vmem:[#allocation2 + $0x330] sm:$0xff] %v2935
        %3240 = vst [vmem:[#allocation2 + $0x338] sm:$0xff] %v2936
        %3241 = vst [vmem:[#allocation2 + $0x340] sm:$0xff] %v2937
        %3242 = vst [vmem:[#allocation2 + $0x348] sm:$0xff] %v2938
        %3243 = vst [vmem:[#allocation2 + $0x350] sm:$0xff] %v2939
        %3244 = vst [vmem:[#allocation2 + $0x358] sm:$0xff] %v2940
        %3245 = vst [vmem:[#allocation2 + $0x360] sm:$0xff] %v2941
        %3246 = vst [vmem:[#allocation2 + $0x368] sm:$0xff] %v2942
        %3247 = vst [vmem:[#allocation2 + $0x370] sm:$0xff] %v2943
        %3248 = vst [vmem:[#allocation2 + $0x378] sm:$0xff] %v2944
        %3249 = vst [vmem:[#allocation2 + $0x380] sm:$0xff] %v2945
        %3250 = vst [vmem:[#allocation2 + $0x388] sm:$0xff] %v2946
        %3251 = vst [vmem:[#allocation2 + $0x390] sm:$0xff] %v2947
        %3252 = vst [vmem:[#allocation2 + $0x398] sm:$0xff] %v2948
        %3253 = vst [vmem:[#allocation2 + $0x3a0] sm:$0xff] %v2949
        %3254 = vst [vmem:[#allocation2 + $0x3a8] sm:$0xff] %v2950
        %3255 = vst [vmem:[#allocation2 + $0x3b0] sm:$0xff] %v2951
        %3256 = vst [vmem:[#allocation2 + $0x3b8] sm:$0xff] %v2952
        %3257 = vst [vmem:[#allocation2 + $0x3c0] sm:$0xff] %v2953
        %3258 = vst [vmem:[#allocation2 + $0x3c8] sm:$0xff] %v2954
        %3259 = vst [vmem:[#allocation2 + $0x3d0] sm:$0xff] %v2955
        %3260 = vst [vmem:[#allocation2 + $0x3d8] sm:$0xff] %v2956
        %3261 = vst [vmem:[#allocation2 + $0x3e0] sm:$0xff] %v2957
        %3262 = vst [vmem:[#allocation2 + $0x3e8] sm:$0xff] %v2958
        %3263 = vst [vmem:[#allocation2 + $0x3f0] sm:$0xff] %v2959
        %3264 = vst [vmem:[#allocation2 + $0x3f8] sm:$0xff] %v2960
        %3265 = vst [vmem:[#allocation2 + $0x400] sm:$0xff] %v2961
        %3266 = vst [vmem:[#allocation2 + $0x408] sm:$0xff] %v2962
        %3267 = vst [vmem:[#allocation2 + $0x410] sm:$0xff] %v2963
        %3268 = vst [vmem:[#allocation2 + $0x418] sm:$0xff] %v2964
        %3269 = vst [vmem:[#allocation2 + $0x420] sm:$0xff] %v2965
        %3270 = vst [vmem:[#allocation2 + $0x428] sm:$0xff] %v2966
        %3271 = vst [vmem:[#allocation2 + $0x430] sm:$0xff] %v2967
        %3272 = vst [vmem:[#allocation2 + $0x438] sm:$0xff] %v2968
        %3273 = vst [vmem:[#allocation2 + $0x440] sm:$0xff] %v2969
        %3274 = vst [vmem:[#allocation2 + $0x448] sm:$0xff] %v2970
        %3275 = vst [vmem:[#allocation2 + $0x450] sm:$0xff] %v2971
        %3276 = vst [vmem:[#allocation2 + $0x458] sm:$0xff] %v2972
        %3277 = vst [vmem:[#allocation2 + $0x460] sm:$0xff] %v2973
        %3278 = vst [vmem:[#allocation2 + $0x468] sm:$0xff] %v2974
        %3279 = vst [vmem:[#allocation2 + $0x470] sm:$0xff] %v2975
        %3280 = vst [vmem:[#allocation2 + $0x478] sm:$0xff] %v2976
        %3281 = vst [vmem:[#allocation2 + $0x480] sm:$0xff] %v2977
        %3282 = vst [vmem:[#allocation2 + $0x488] sm:$0xff] %v2978
        %3283 = vst [vmem:[#allocation2 + $0x490] sm:$0xff] %v2979
        %3284 = vst [vmem:[#allocation2 + $0x498] sm:$0xff] %v2980
        %3285 = vst [vmem:[#allocation2 + $0x4a0] sm:$0xff] %v2981
        %3286 = vst [vmem:[#allocation2 + $0x4a8] sm:$0xff] %v2982
        %3287 = vst [vmem:[#allocation2 + $0x4b0] sm:$0xff] %v2983
        %3288 = vst [vmem:[#allocation2 + $0x4b8] sm:$0xff] %v2984
        %3289 = vst [vmem:[#allocation2 + $0x4c0] sm:$0xff] %v2985
        %3290 = vst [vmem:[#allocation2 + $0x4c8] sm:$0xff] %v2986
        %3291 = vst [vmem:[#allocation2 + $0x4d0] sm:$0xff] %v2987
        %3292 = vst [vmem:[#allocation2 + $0x4d8] sm:$0xff] %v2988
        %3293 = vst [vmem:[#allocation2 + $0x4e0] sm:$0xff] %v2989
        %3294 = vst [vmem:[#allocation2 + $0x4e8] sm:$0xff] %v2990
        %3295 = vst [vmem:[#allocation2 + $0x4f0] sm:$0xff] %v2991
        %3296 = vst [vmem:[#allocation2 + $0x4f8] sm:$0xff] %v2992
        %3297 = vst [vmem:[#allocation2 + $0x500] sm:$0xff] %v2993
        %3298 = vst [vmem:[#allocation2 + $0x508] sm:$0xff] %v2994
        %3299 = vst [vmem:[#allocation2 + $0x510] sm:$0xff] %v2995
        %3300 = vst [vmem:[#allocation2 + $0x518] sm:$0xff] %v2996
        %3301 = vst [vmem:[#allocation2 + $0x520] sm:$0xff] %v2997
        %3302 = vst [vmem:[#allocation2 + $0x528] sm:$0xff] %v2998
        %3303 = vst [vmem:[#allocation2 + $0x530] sm:$0xff] %v2999
        %3304 = vst [vmem:[#allocation2 + $0x538] sm:$0xff] %v3000
        %3305 = vst [vmem:[#allocation2 + $0x540] sm:$0xff] %v3001
        %3306 = vst [vmem:[#allocation2 + $0x548] sm:$0xff] %v3002
        %3307 = vst [vmem:[#allocation2 + $0x550] sm:$0xff] %v3003
        %3308 = vst [vmem:[#allocation2 + $0x558] sm:$0xff] %v3004
        %3309 = vst [vmem:[#allocation2 + $0x560] sm:$0xff] %v3005
        %3310 = vst [vmem:[#allocation2 + $0x568] sm:$0xff] %v3006
        %3311 = vst [vmem:[#allocation2 + $0x570] sm:$0xff] %v3007
        %3312 = vst [vmem:[#allocation2 + $0x578] sm:$0xff] %v3008
        %3313 = vst [vmem:[#allocation2 + $0x580] sm:$0xff] %v3009
        %3314 = vst [vmem:[#allocation2 + $0x588] sm:$0xff] %v3010
        %3315 = vst [vmem:[#allocation2 + $0x590] sm:$0xff] %v3011
        %3316 = vst [vmem:[#allocation2 + $0x598] sm:$0xff] %v3012
        %3317 = vst [vmem:[#allocation2 + $0x5a0] sm:$0xff] %v3013
        %3318 = vst [vmem:[#allocation2 + $0x5a8] sm:$0xff] %v3014
        %3319 = vst [vmem:[#allocation2 + $0x5b0] sm:$0xff] %v3015
        %3320 = vst [vmem:[#allocation2 + $0x5b8] sm:$0xff] %v3016
        %3321 = vst [vmem:[#allocation2 + $0x5c0] sm:$0xff] %v3017
        %3322 = vst [vmem:[#allocation2 + $0x5c8] sm:$0xff] %v3018
        %3323 = vst [vmem:[#allocation2 + $0x5d0] sm:$0xff] %v3019
        %3324 = vst [vmem:[#allocation2 + $0x5d8] sm:$0xff] %v3020
        %3325 = vst [vmem:[#allocation2 + $0x5e0] sm:$0xff] %v3021
        %3326 = vst [vmem:[#allocation2 + $0x5e8] sm:$0xff] %v3022
        %3327 = vst [vmem:[#allocation2 + $0x5f0] sm:$0xff] %v3023
        %3328 = vst [vmem:[#allocation2 + $0x5f8] sm:$0xff] %v3024
        %3329 = vst [vmem:[#allocation2 + $0x600] sm:$0xff] %v3025
        %3330 = vst [vmem:[#allocation2 + $0x608] sm:$0xff] %v3026
        %3331 = vst [vmem:[#allocation2 + $0x610] sm:$0xff] %v3027
        %3332 = vst [vmem:[#allocation2 + $0x618] sm:$0xff] %v3028
        %3333 = vst [vmem:[#allocation2 + $0x620] sm:$0xff] %v3029
        %3334 = vst [vmem:[#allocation2 + $0x628] sm:$0xff] %v3030
        %3335 = vst [vmem:[#allocation2 + $0x630] sm:$0xff] %v3031
        %3336 = vst [vmem:[#allocation2 + $0x638] sm:$0xff] %v3032
        %3337 = vst [vmem:[#allocation2 + $0x640] sm:$0xff] %v3033
        %3338 = vst [vmem:[#allocation2 + $0x648] sm:$0xff] %v3034
        %3339 = vst [vmem:[#allocation2 + $0x650] sm:$0xff] %v3035
        %3340 = vst [vmem:[#allocation2 + $0x658] sm:$0xff] %v3036
        %3341 = vst [vmem:[#allocation2 + $0x660] sm:$0xff] %v3037
        %3342 = vst [vmem:[#allocation2 + $0x668] sm:$0xff] %v3038
        %3343 = vst [vmem:[#allocation2 + $0x670] sm:$0xff] %v3039
        %3344 = vst [vmem:[#allocation2 + $0x678] sm:$0xff] %v3040
        %3345 = vst [vmem:[#allocation2 + $0x680] sm:$0xff] %v3041
        %3346 = vst [vmem:[#allocation2 + $0x688] sm:$0xff] %v3042
        %3347 = vst [vmem:[#allocation2 + $0x690] sm:$0xff] %v3043
        %3348 = vst [vmem:[#allocation2 + $0x698] sm:$0xff] %v3044
        %3349 = vst [vmem:[#allocation2 + $0x6a0] sm:$0xff] %v3045
        %3350 = vst [vmem:[#allocation2 + $0x6a8] sm:$0xff] %v3046
        %3351 = vst [vmem:[#allocation2 + $0x6b0] sm:$0xff] %v3047
        %3352 = vst [vmem:[#allocation2 + $0x6b8] sm:$0xff] %v3048
        %3353 = vst [vmem:[#allocation2 + $0x6c0] sm:$0xff] %v3049
        %3354 = vst [vmem:[#allocation2 + $0x6c8] sm:$0xff] %v3050
        %3355 = vst [vmem:[#allocation2 + $0x6d0] sm:$0xff] %v3051
        %3356 = vst [vmem:[#allocation2 + $0x6d8] sm:$0xff] %v3052
        %3357 = vst [vmem:[#allocation2 + $0x6e0] sm:$0xff] %v3053
        %3358 = vst [vmem:[#allocation2 + $0x6e8] sm:$0xff] %v3054
        %3359 = vst [vmem:[#allocation2 + $0x6f0] sm:$0xff] %v3055
        %3360 = vst [vmem:[#allocation2 + $0x6f8] sm:$0xff] %v3056
        %3361 = vst [vmem:[#allocation2 + $0x700] sm:$0xff] %v3057
        %3362 = vst [vmem:[#allocation2 + $0x708] sm:$0xff] %v3058
        %3363 = vst [vmem:[#allocation2 + $0x710] sm:$0xff] %v3059
        %3364 = vst [vmem:[#allocation2 + $0x718] sm:$0xff] %v3060
        %3365 = vst [vmem:[#allocation2 + $0x720] sm:$0xff] %v3061
        %3366 = vst [vmem:[#allocation2 + $0x728] sm:$0xff] %v3062
        %3367 = vst [vmem:[#allocation2 + $0x730] sm:$0xff] %v3063
        %3368 = vst [vmem:[#allocation2 + $0x738] sm:$0xff] %v3064
        %3369 = vst [vmem:[#allocation2 + $0x740] sm:$0xff] %v3065
        %3370 = vst [vmem:[#allocation2 + $0x748] sm:$0xff] %v3066
        %3371 = vst [vmem:[#allocation2 + $0x750] sm:$0xff] %v3067
        %3372 = vst [vmem:[#allocation2 + $0x758] sm:$0xff] %v3068
        %3373 = vst [vmem:[#allocation2 + $0x760] sm:$0xff] %v3069
        %3374 = vst [vmem:[#allocation2 + $0x768] sm:$0xff] %v3070
        %3375 = vst [vmem:[#allocation2 + $0x770] sm:$0xff] %v3071
        %3376 = vst [vmem:[#allocation2 + $0x778] sm:$0xff] %v3072
        %3377 = vst [vmem:[#allocation2 + $0x780] sm:$0xff] %v3073
        %3378 = vst [vmem:[#allocation2 + $0x788] sm:$0xff] %v3074
        %3379 = vst [vmem:[#allocation2 + $0x790] sm:$0xff] %v3075
        %3380 = vst [vmem:[#allocation2 + $0x798] sm:$0xff] %v3076
        %3381 = vst [vmem:[#allocation2 + $0x7a0] sm:$0xff] %v3077
        %3382 = vst [vmem:[#allocation2 + $0x7a8] sm:$0xff] %v3078
        %3383 = vst [vmem:[#allocation2 + $0x7b0] sm:$0xff] %v3079
        %3384 = vst [vmem:[#allocation2 + $0x7b8] sm:$0xff] %v3080
        %3385 = vst [vmem:[#allocation2 + $0x7c0] sm:$0xff] %v3081
        %3386 = vst [vmem:[#allocation2 + $0x7c8] sm:$0xff] %v3082
        %3387 = vst [vmem:[#allocation2 + $0x7d0] sm:$0xff] %v3083
        %3388 = vst [vmem:[#allocation2 + $0x7d8] sm:$0xff] %v3084
        %3389 = vst [vmem:[#allocation2 + $0x7e0] sm:$0xff] %v3085
        %3390 = vst [vmem:[#allocation2 + $0x7e8] sm:$0xff] %v3086
        %3391 = vst [vmem:[#allocation2 + $0x7f0] sm:$0xff] %v3087
        %3392 = vst [vmem:[#allocation2 + $0x7f8] sm:$0xff] %v3088
        %3393 = vst [vmem:[#allocation2 + $0x800] sm:$0xff] %v3089
        %3394 = vst [vmem:[#allocation2 + $0x808] sm:$0xff] %v3090
        %3395 = vst [vmem:[#allocation2 + $0x810] sm:$0xff] %v3091
        %3396 = vst [vmem:[#allocation2 + $0x818] sm:$0xff] %v3092
        %3397 = vst [vmem:[#allocation2 + $0x820] sm:$0xff] %v3093
        %3398 = vst [vmem:[#allocation2 + $0x828] sm:$0xff] %v3094
        %3399 = vst [vmem:[#allocation2 + $0x830] sm:$0xff] %v3095
        %3400 = vst [vmem:[#allocation2 + $0x838] sm:$0xff] %v3096
        %3401 = vst [vmem:[#allocation2 + $0x840] sm:$0xff] %v3097
        %3402 = vst [vmem:[#allocation2 + $0x848] sm:$0xff] %v3098
        %3403 = vst [vmem:[#allocation2 + $0x850] sm:$0xff] %v3099
        %3404 = vst [vmem:[#allocation2 + $0x858] sm:$0xff] %v3100
        %3405 = vst [vmem:[#allocation2 + $0x860] sm:$0xff] %v3101
        %3406 = vst [vmem:[#allocation2 + $0x868] sm:$0xff] %v3102
        %3407 = vst [vmem:[#allocation2 + $0x870] sm:$0xff] %v3103
        %3408 = vst [vmem:[#allocation2 + $0x878] sm:$0xff] %v3104
        %3409 = vst [vmem:[#allocation2 + $0x880] sm:$0xff] %v3105
        %3410 = vst [vmem:[#allocation2 + $0x888] sm:$0xff] %v3106
        %3411 = vst [vmem:[#allocation2 + $0x890] sm:$0xff] %v3107
        %3412 = vst [vmem:[#allocation2 + $0x898] sm:$0xff] %v3108
        %3413 = vst [vmem:[#allocation2 + $0x8a0] sm:$0xff] %v3109
        %3414 = vst [vmem:[#allocation2 + $0x8a8] sm:$0xff] %v3110
        %3415 = vst [vmem:[#allocation2 + $0x8b0] sm:$0xff] %v3111
        %3416 = vst [vmem:[#allocation2 + $0x8b8] sm:$0xff] %v3112
        %3417 = vst [vmem:[#allocation2 + $0x8c0] sm:$0xff] %v3113
        %3418 = vst [vmem:[#allocation2 + $0x8c8] sm:$0xff] %v3114
        %3419 = vst [vmem:[#allocation2 + $0x8d0] sm:$0xff] %v3115
        %3420 = vst [vmem:[#allocation2 + $0x8d8] sm:$0xff] %v3116
        %3421 = vst [vmem:[#allocation2 + $0x8e0] sm:$0xff] %v3117
        %3422 = vst [vmem:[#allocation2 + $0x8e8] sm:$0xff] %v3118
        %3423 = vst [vmem:[#allocation2 + $0x8f0] sm:$0xff] %v3119
        %3424 = vst [vmem:[#allocation2 + $0x8f8] sm:$0xff] %v3120
        %3425 = vst [vmem:[#allocation2 + $0x900] sm:$0xff] %v3121
        %3426 = vst [vmem:[#allocation2 + $0x908] sm:$0xff] %v3122
        %3427 = vst [vmem:[#allocation2 + $0x910] sm:$0xff] %v3123
        %3428 = vst [vmem:[#allocation2 + $0x918] sm:$0xff] %v3124
        %3429 = vst [vmem:[#allocation2 + $0x920] sm:$0xff] %v3125
        %3430 = vst [vmem:[#allocation2 + $0x928] sm:$0xff] %v3126
        %3431 = vst [vmem:[#allocation2 + $0x930] sm:$0xff] %v3127
        %3432 = vst [vmem:[#allocation2 + $0x938] sm:$0xff] %v3128
        %3433 = vst [vmem:[#allocation2 + $0x940] sm:$0xff] %v3129
        %3434 = vst [vmem:[#allocation2 + $0x948] sm:$0xff] %v3130
        %3435 = vst [vmem:[#allocation2 + $0x950] sm:$0xff] %v3131
        %3436 = vst [vmem:[#allocation2 + $0x958] sm:$0xff] %v3132
        %3437 = vst [vmem:[#allocation2 + $0x960] sm:$0xff] %v3133
        %3438 = vst [vmem:[#allocation2 + $0x968] sm:$0xff] %v3134
        %3439 = vst [vmem:[#allocation2 + $0x970] sm:$0xff] %v3135
        %3440 = vst [vmem:[#allocation2 + $0x978] sm:$0xff] %v3136
        %p3441 = scmp.eq.s32.totalorder %s36, 2
        // Predicated region
        $region73: #{tpu_custom_call.1} parent=43 // pred_check
          %p3442 = pneg %p3441
        $region74: #{tpu_custom_call.1} parent=43 // pred_check_branch
          %3444 = sbr.rel (%p3442) target = $region76
        $region75: #{tpu_custom_call.1} parent=43 // pred_region
          %v3445 = vld [vmem:[#allocation3] sm:$0xff]
          %v3446 = vld [vmem:[#allocation3 + $0x8] sm:$0xff]
          %v3447 = vld [vmem:[#allocation9] sm:$0x3f]
          %v3448 = vld [vmem:[#allocation2] sm:$0xff]
          %v3449 = vld [vmem:[#allocation2 + $0x8] sm:$0xff]
          %v3450 = vld [vmem:[#allocation2 + $0x10] sm:$0xff]
          %v3451 = vld [vmem:[#allocation2 + $0x18] sm:$0xff]
          %v3452 = vld [vmem:[#allocation2 + $0x20] sm:$0xff]
          %v3453 = vld [vmem:[#allocation2 + $0x28] sm:$0xff]
          %v3454 = vld [vmem:[#allocation2 + $0x30] sm:$0xff]
          %v3455 = vld [vmem:[#allocation2 + $0x38] sm:$0xff]
          %v3456 = vld [vmem:[#allocation2 + $0x40] sm:$0xff]
          %v3457 = vld [vmem:[#allocation2 + $0x48] sm:$0xff]
          %v3458 = vld [vmem:[#allocation2 + $0x50] sm:$0xff]
          %v3459 = vld [vmem:[#allocation2 + $0x58] sm:$0xff]
          %v3460 = vld [vmem:[#allocation2 + $0x60] sm:$0xff]
          %v3461 = vld [vmem:[#allocation2 + $0x68] sm:$0xff]
          %v3462 = vld [vmem:[#allocation2 + $0x70] sm:$0xff]
          %v3463 = vld [vmem:[#allocation2 + $0x78] sm:$0xff]
          %v3464 = vld [vmem:[#allocation2 + $0x80] sm:$0xff]
          %v3465 = vld [vmem:[#allocation2 + $0x88] sm:$0xff]
          %v3466 = vld [vmem:[#allocation2 + $0x90] sm:$0xff]
          %v3467 = vld [vmem:[#allocation2 + $0x98] sm:$0xff]
          %v3468 = vld [vmem:[#allocation2 + $0xa0] sm:$0xff]
          %v3469 = vld [vmem:[#allocation2 + $0xa8] sm:$0xff]
          %v3470 = vld [vmem:[#allocation2 + $0xb0] sm:$0xff]
          %v3471 = vld [vmem:[#allocation2 + $0xb8] sm:$0xff]
          %v3472 = vld [vmem:[#allocation2 + $0xc0] sm:$0xff]
          %v3473 = vld [vmem:[#allocation2 + $0xc8] sm:$0xff]
          %v3474 = vld [vmem:[#allocation2 + $0xd0] sm:$0xff]
          %v3475 = vld [vmem:[#allocation2 + $0xd8] sm:$0xff]
          %v3476 = vld [vmem:[#allocation2 + $0xe0] sm:$0xff]
          %v3477 = vld [vmem:[#allocation2 + $0xe8] sm:$0xff]
          %v3478 = vld [vmem:[#allocation2 + $0xf0] sm:$0xff]
          %v3479 = vld [vmem:[#allocation2 + $0xf8] sm:$0xff]
          %v3480 = vld [vmem:[#allocation2 + $0x100] sm:$0xff]
          %v3481 = vld [vmem:[#allocation2 + $0x108] sm:$0xff]
          %v3482 = vld [vmem:[#allocation2 + $0x110] sm:$0xff]
          %v3483 = vld [vmem:[#allocation2 + $0x118] sm:$0xff]
          %v3484 = vld [vmem:[#allocation2 + $0x120] sm:$0xff]
          %v3485 = vld [vmem:[#allocation2 + $0x128] sm:$0xff]
          %v3486 = vld [vmem:[#allocation2 + $0x130] sm:$0xff]
          %v3487 = vld [vmem:[#allocation2 + $0x138] sm:$0xff]
          %v3488 = vld [vmem:[#allocation2 + $0x140] sm:$0xff]
          %v3489 = vld [vmem:[#allocation2 + $0x148] sm:$0xff]
          %v3490 = vld [vmem:[#allocation2 + $0x150] sm:$0xff]
          %v3491 = vld [vmem:[#allocation2 + $0x158] sm:$0xff]
          %v3492 = vld [vmem:[#allocation2 + $0x160] sm:$0xff]
          %v3493 = vld [vmem:[#allocation2 + $0x168] sm:$0xff]
          %v3494 = vld [vmem:[#allocation2 + $0x170] sm:$0xff]
          %v3495 = vld [vmem:[#allocation2 + $0x178] sm:$0xff]
          %v3496 = vld [vmem:[#allocation2 + $0x180] sm:$0xff]
          %v3497 = vld [vmem:[#allocation2 + $0x188] sm:$0xff]
          %v3498 = vld [vmem:[#allocation2 + $0x190] sm:$0xff]
          %v3499 = vld [vmem:[#allocation2 + $0x198] sm:$0xff]
          %v3500 = vld [vmem:[#allocation2 + $0x1a0] sm:$0xff]
          %v3501 = vld [vmem:[#allocation2 + $0x1a8] sm:$0xff]
          %v3502 = vld [vmem:[#allocation2 + $0x1b0] sm:$0xff]
          %v3503 = vld [vmem:[#allocation2 + $0x1b8] sm:$0xff]
          %v3504 = vld [vmem:[#allocation2 + $0x1c0] sm:$0xff]
          %v3505 = vld [vmem:[#allocation2 + $0x1c8] sm:$0xff]
          %v3506 = vld [vmem:[#allocation2 + $0x1d0] sm:$0xff]
          %v3507 = vld [vmem:[#allocation2 + $0x1d8] sm:$0xff]
          %v3508 = vld [vmem:[#allocation2 + $0x1e0] sm:$0xff]
          %v3509 = vld [vmem:[#allocation2 + $0x1e8] sm:$0xff]
          %v3510 = vld [vmem:[#allocation2 + $0x1f0] sm:$0xff]
          %v3511 = vld [vmem:[#allocation2 + $0x1f8] sm:$0xff]
          %v3512 = vld [vmem:[#allocation2 + $0x200] sm:$0xff]
          %v3513 = vld [vmem:[#allocation2 + $0x208] sm:$0xff]
          %v3514 = vld [vmem:[#allocation2 + $0x210] sm:$0xff]
          %v3515 = vld [vmem:[#allocation2 + $0x218] sm:$0xff]
          %v3516 = vld [vmem:[#allocation2 + $0x220] sm:$0xff]
          %v3517 = vld [vmem:[#allocation2 + $0x228] sm:$0xff]
          %v3518 = vld [vmem:[#allocation2 + $0x230] sm:$0xff]
          %v3519 = vld [vmem:[#allocation2 + $0x238] sm:$0xff]
          %v3520 = vld [vmem:[#allocation2 + $0x240] sm:$0xff]
          %v3521 = vld [vmem:[#allocation2 + $0x248] sm:$0xff]
          %v3522 = vld [vmem:[#allocation2 + $0x250] sm:$0xff]
          %v3523 = vld [vmem:[#allocation2 + $0x258] sm:$0xff]
          %v3524 = vld [vmem:[#allocation2 + $0x260] sm:$0xff]
          %v3525 = vld [vmem:[#allocation2 + $0x268] sm:$0xff]
          %v3526 = vld [vmem:[#allocation2 + $0x270] sm:$0xff]
          %v3527 = vld [vmem:[#allocation2 + $0x278] sm:$0xff]
          %v3528 = vld [vmem:[#allocation2 + $0x280] sm:$0xff]
          %v3529 = vld [vmem:[#allocation2 + $0x288] sm:$0xff]
          %v3530 = vld [vmem:[#allocation2 + $0x290] sm:$0xff]
          %v3531 = vld [vmem:[#allocation2 + $0x298] sm:$0xff]
          %v3532 = vld [vmem:[#allocation2 + $0x2a0] sm:$0xff]
          %v3533 = vld [vmem:[#allocation2 + $0x2a8] sm:$0xff]
          %v3534 = vld [vmem:[#allocation2 + $0x2b0] sm:$0xff]
          %v3535 = vld [vmem:[#allocation2 + $0x2b8] sm:$0xff]
          %v3536 = vld [vmem:[#allocation2 + $0x2c0] sm:$0xff]
          %v3537 = vld [vmem:[#allocation2 + $0x2c8] sm:$0xff]
          %v3538 = vld [vmem:[#allocation2 + $0x2d0] sm:$0xff]
          %v3539 = vld [vmem:[#allocation2 + $0x2d8] sm:$0xff]
          %v3540 = vld [vmem:[#allocation2 + $0x2e0] sm:$0xff]
          %v3541 = vld [vmem:[#allocation2 + $0x2e8] sm:$0xff]
          %v3542 = vld [vmem:[#allocation2 + $0x2f0] sm:$0xff]
          %v3543 = vld [vmem:[#allocation2 + $0x2f8] sm:$0xff]
          %v3544 = vld [vmem:[#allocation2 + $0x300] sm:$0xff]
          %v3545 = vld [vmem:[#allocation2 + $0x308] sm:$0xff]
          %v3546 = vld [vmem:[#allocation2 + $0x310] sm:$0xff]
          %v3547 = vld [vmem:[#allocation2 + $0x318] sm:$0xff]
          %v3548 = vld [vmem:[#allocation2 + $0x320] sm:$0xff]
          %v3549 = vld [vmem:[#allocation2 + $0x328] sm:$0xff]
          %v3550 = vld [vmem:[#allocation2 + $0x330] sm:$0xff]
          %v3551 = vld [vmem:[#allocation2 + $0x338] sm:$0xff]
          %v3552 = vld [vmem:[#allocation2 + $0x340] sm:$0xff]
          %v3553 = vld [vmem:[#allocation2 + $0x348] sm:$0xff]
          %v3554 = vld [vmem:[#allocation2 + $0x350] sm:$0xff]
          %v3555 = vld [vmem:[#allocation2 + $0x358] sm:$0xff]
          %v3556 = vld [vmem:[#allocation2 + $0x360] sm:$0xff]
          %v3557 = vld [vmem:[#allocation2 + $0x368] sm:$0xff]
          %v3558 = vld [vmem:[#allocation2 + $0x370] sm:$0xff]
          %v3559 = vld [vmem:[#allocation2 + $0x378] sm:$0xff]
          %v3560 = vld [vmem:[#allocation2 + $0x380] sm:$0xff]
          %v3561 = vld [vmem:[#allocation2 + $0x388] sm:$0xff]
          %v3562 = vld [vmem:[#allocation2 + $0x390] sm:$0xff]
          %v3563 = vld [vmem:[#allocation2 + $0x398] sm:$0xff]
          %v3564 = vld [vmem:[#allocation2 + $0x3a0] sm:$0xff]
          %v3565 = vld [vmem:[#allocation2 + $0x3a8] sm:$0xff]
          %v3566 = vld [vmem:[#allocation2 + $0x3b0] sm:$0xff]
          %v3567 = vld [vmem:[#allocation2 + $0x3b8] sm:$0xff]
          %v3568 = vld [vmem:[#allocation2 + $0x3c0] sm:$0xff]
          %v3569 = vld [vmem:[#allocation2 + $0x3c8] sm:$0xff]
          %v3570 = vld [vmem:[#allocation2 + $0x3d0] sm:$0xff]
          %v3571 = vld [vmem:[#allocation2 + $0x3d8] sm:$0xff]
          %v3572 = vld [vmem:[#allocation2 + $0x3e0] sm:$0xff]
          %v3573 = vld [vmem:[#allocation2 + $0x3e8] sm:$0xff]
          %v3574 = vld [vmem:[#allocation2 + $0x3f0] sm:$0xff]
          %v3575 = vld [vmem:[#allocation2 + $0x3f8] sm:$0xff]
          %v3576 = vld [vmem:[#allocation2 + $0x400] sm:$0xff]
          %v3577 = vld [vmem:[#allocation2 + $0x408] sm:$0xff]
          %v3578 = vld [vmem:[#allocation2 + $0x410] sm:$0xff]
          %v3579 = vld [vmem:[#allocation2 + $0x418] sm:$0xff]
          %v3580 = vld [vmem:[#allocation2 + $0x420] sm:$0xff]
          %v3581 = vld [vmem:[#allocation2 + $0x428] sm:$0xff]
          %v3582 = vld [vmem:[#allocation2 + $0x430] sm:$0xff]
          %v3583 = vld [vmem:[#allocation2 + $0x438] sm:$0xff]
          %v3584 = vld [vmem:[#allocation2 + $0x440] sm:$0xff]
          %v3585 = vld [vmem:[#allocation2 + $0x448] sm:$0xff]
          %v3586 = vld [vmem:[#allocation2 + $0x450] sm:$0xff]
          %v3587 = vld [vmem:[#allocation2 + $0x458] sm:$0xff]
          %v3588 = vld [vmem:[#allocation2 + $0x460] sm:$0xff]
          %v3589 = vld [vmem:[#allocation2 + $0x468] sm:$0xff]
          %v3590 = vld [vmem:[#allocation2 + $0x470] sm:$0xff]
          %v3591 = vld [vmem:[#allocation2 + $0x478] sm:$0xff]
          %v3592 = vld [vmem:[#allocation2 + $0x480] sm:$0xff]
          %v3593 = vld [vmem:[#allocation2 + $0x488] sm:$0xff]
          %v3594 = vld [vmem:[#allocation2 + $0x490] sm:$0xff]
          %v3595 = vld [vmem:[#allocation2 + $0x498] sm:$0xff]
          %v3596 = vld [vmem:[#allocation2 + $0x4a0] sm:$0xff]
          %v3597 = vld [vmem:[#allocation2 + $0x4a8] sm:$0xff]
          %v3598 = vld [vmem:[#allocation2 + $0x4b0] sm:$0xff]
          %v3599 = vld [vmem:[#allocation2 + $0x4b8] sm:$0xff]
          %v3600 = vld [vmem:[#allocation2 + $0x4c0] sm:$0xff]
          %v3601 = vld [vmem:[#allocation2 + $0x4c8] sm:$0xff]
          %v3602 = vld [vmem:[#allocation2 + $0x4d0] sm:$0xff]
          %v3603 = vld [vmem:[#allocation2 + $0x4d8] sm:$0xff]
          %v3604 = vld [vmem:[#allocation2 + $0x4e0] sm:$0xff]
          %v3605 = vld [vmem:[#allocation2 + $0x4e8] sm:$0xff]
          %v3606 = vld [vmem:[#allocation2 + $0x4f0] sm:$0xff]
          %v3607 = vld [vmem:[#allocation2 + $0x4f8] sm:$0xff]
          %v3608 = vld [vmem:[#allocation2 + $0x500] sm:$0xff]
          %v3609 = vld [vmem:[#allocation2 + $0x508] sm:$0xff]
          %v3610 = vld [vmem:[#allocation2 + $0x510] sm:$0xff]
          %v3611 = vld [vmem:[#allocation2 + $0x518] sm:$0xff]
          %v3612 = vld [vmem:[#allocation2 + $0x520] sm:$0xff]
          %v3613 = vld [vmem:[#allocation2 + $0x528] sm:$0xff]
          %v3614 = vld [vmem:[#allocation2 + $0x530] sm:$0xff]
          %v3615 = vld [vmem:[#allocation2 + $0x538] sm:$0xff]
          %v3616 = vld [vmem:[#allocation2 + $0x540] sm:$0xff]
          %v3617 = vld [vmem:[#allocation2 + $0x548] sm:$0xff]
          %v3618 = vld [vmem:[#allocation2 + $0x550] sm:$0xff]
          %v3619 = vld [vmem:[#allocation2 + $0x558] sm:$0xff]
          %v3620 = vld [vmem:[#allocation2 + $0x560] sm:$0xff]
          %v3621 = vld [vmem:[#allocation2 + $0x568] sm:$0xff]
          %v3622 = vld [vmem:[#allocation2 + $0x570] sm:$0xff]
          %v3623 = vld [vmem:[#allocation2 + $0x578] sm:$0xff]
          %v3624 = vld [vmem:[#allocation2 + $0x580] sm:$0xff]
          %v3625 = vld [vmem:[#allocation2 + $0x588] sm:$0xff]
          %v3626 = vld [vmem:[#allocation2 + $0x590] sm:$0xff]
          %v3627 = vld [vmem:[#allocation2 + $0x598] sm:$0xff]
          %v3628 = vld [vmem:[#allocation2 + $0x5a0] sm:$0xff]
          %v3629 = vld [vmem:[#allocation2 + $0x5a8] sm:$0xff]
          %v3630 = vld [vmem:[#allocation2 + $0x5b0] sm:$0xff]
          %v3631 = vld [vmem:[#allocation2 + $0x5b8] sm:$0xff]
          %v3632 = vld [vmem:[#allocation2 + $0x5c0] sm:$0xff]
          %v3633 = vld [vmem:[#allocation2 + $0x5c8] sm:$0xff]
          %v3634 = vld [vmem:[#allocation2 + $0x5d0] sm:$0xff]
          %v3635 = vld [vmem:[#allocation2 + $0x5d8] sm:$0xff]
          %v3636 = vld [vmem:[#allocation2 + $0x5e0] sm:$0xff]
          %v3637 = vld [vmem:[#allocation2 + $0x5e8] sm:$0xff]
          %v3638 = vld [vmem:[#allocation2 + $0x5f0] sm:$0xff]
          %v3639 = vld [vmem:[#allocation2 + $0x5f8] sm:$0xff]
          %v3640 = vld [vmem:[#allocation2 + $0x600] sm:$0xff]
          %v3641 = vld [vmem:[#allocation2 + $0x608] sm:$0xff]
          %v3642 = vld [vmem:[#allocation2 + $0x610] sm:$0xff]
          %v3643 = vld [vmem:[#allocation2 + $0x618] sm:$0xff]
          %v3644 = vld [vmem:[#allocation2 + $0x620] sm:$0xff]
          %v3645 = vld [vmem:[#allocation2 + $0x628] sm:$0xff]
          %v3646 = vld [vmem:[#allocation2 + $0x630] sm:$0xff]
          %v3647 = vld [vmem:[#allocation2 + $0x638] sm:$0xff]
          %v3648 = vld [vmem:[#allocation2 + $0x640] sm:$0xff]
          %v3649 = vld [vmem:[#allocation2 + $0x648] sm:$0xff]
          %v3650 = vld [vmem:[#allocation2 + $0x650] sm:$0xff]
          %v3651 = vld [vmem:[#allocation2 + $0x658] sm:$0xff]
          %v3652 = vld [vmem:[#allocation2 + $0x660] sm:$0xff]
          %v3653 = vld [vmem:[#allocation2 + $0x668] sm:$0xff]
          %v3654 = vld [vmem:[#allocation2 + $0x670] sm:$0xff]
          %v3655 = vld [vmem:[#allocation2 + $0x678] sm:$0xff]
          %v3656 = vld [vmem:[#allocation2 + $0x680] sm:$0xff]
          %v3657 = vld [vmem:[#allocation2 + $0x688] sm:$0xff]
          %v3658 = vld [vmem:[#allocation2 + $0x690] sm:$0xff]
          %v3659 = vld [vmem:[#allocation2 + $0x698] sm:$0xff]
          %v3660 = vld [vmem:[#allocation2 + $0x6a0] sm:$0xff]
          %v3661 = vld [vmem:[#allocation2 + $0x6a8] sm:$0xff]
          %v3662 = vld [vmem:[#allocation2 + $0x6b0] sm:$0xff]
          %v3663 = vld [vmem:[#allocation2 + $0x6b8] sm:$0xff]
          %v3664 = vld [vmem:[#allocation2 + $0x6c0] sm:$0xff]
          %v3665 = vld [vmem:[#allocation2 + $0x6c8] sm:$0xff]
          %v3666 = vld [vmem:[#allocation2 + $0x6d0] sm:$0xff]
          %v3667 = vld [vmem:[#allocation2 + $0x6d8] sm:$0xff]
          %v3668 = vld [vmem:[#allocation2 + $0x6e0] sm:$0xff]
          %v3669 = vld [vmem:[#allocation2 + $0x6e8] sm:$0xff]
          %v3670 = vld [vmem:[#allocation2 + $0x6f0] sm:$0xff]
          %v3671 = vld [vmem:[#allocation2 + $0x6f8] sm:$0xff]
          %v3672 = vld [vmem:[#allocation2 + $0x700] sm:$0xff]
          %v3673 = vld [vmem:[#allocation2 + $0x708] sm:$0xff]
          %v3674 = vld [vmem:[#allocation2 + $0x710] sm:$0xff]
          %v3675 = vld [vmem:[#allocation2 + $0x718] sm:$0xff]
          %v3676 = vld [vmem:[#allocation2 + $0x720] sm:$0xff]
          %v3677 = vld [vmem:[#allocation2 + $0x728] sm:$0xff]
          %v3678 = vld [vmem:[#allocation2 + $0x730] sm:$0xff]
          %v3679 = vld [vmem:[#allocation2 + $0x738] sm:$0xff]
          %v3680 = vld [vmem:[#allocation2 + $0x740] sm:$0xff]
          %v3681 = vld [vmem:[#allocation2 + $0x748] sm:$0xff]
          %v3682 = vld [vmem:[#allocation2 + $0x750] sm:$0xff]
          %v3683 = vld [vmem:[#allocation2 + $0x758] sm:$0xff]
          %v3684 = vld [vmem:[#allocation2 + $0x760] sm:$0xff]
          %v3685 = vld [vmem:[#allocation2 + $0x768] sm:$0xff]
          %v3686 = vld [vmem:[#allocation2 + $0x770] sm:$0xff]
          %v3687 = vld [vmem:[#allocation2 + $0x778] sm:$0xff]
          %v3688 = vld [vmem:[#allocation2 + $0x780] sm:$0xff]
          %v3689 = vld [vmem:[#allocation2 + $0x788] sm:$0xff]
          %v3690 = vld [vmem:[#allocation2 + $0x790] sm:$0xff]
          %v3691 = vld [vmem:[#allocation2 + $0x798] sm:$0xff]
          %v3692 = vld [vmem:[#allocation2 + $0x7a0] sm:$0xff]
          %v3693 = vld [vmem:[#allocation2 + $0x7a8] sm:$0xff]
          %v3694 = vld [vmem:[#allocation2 + $0x7b0] sm:$0xff]
          %v3695 = vld [vmem:[#allocation2 + $0x7b8] sm:$0xff]
          %v3696 = vld [vmem:[#allocation2 + $0x7c0] sm:$0xff]
          %v3697 = vld [vmem:[#allocation2 + $0x7c8] sm:$0xff]
          %v3698 = vld [vmem:[#allocation2 + $0x7d0] sm:$0xff]
          %v3699 = vld [vmem:[#allocation2 + $0x7d8] sm:$0xff]
          %v3700 = vld [vmem:[#allocation2 + $0x7e0] sm:$0xff]
          %v3701 = vld [vmem:[#allocation2 + $0x7e8] sm:$0xff]
          %v3702 = vld [vmem:[#allocation2 + $0x7f0] sm:$0xff]
          %v3703 = vld [vmem:[#allocation2 + $0x7f8] sm:$0xff]
          %v3704 = vld [vmem:[#allocation2 + $0x800] sm:$0xff]
          %v3705 = vld [vmem:[#allocation2 + $0x808] sm:$0xff]
          %v3706 = vld [vmem:[#allocation2 + $0x810] sm:$0xff]
          %v3707 = vld [vmem:[#allocation2 + $0x818] sm:$0xff]
          %v3708 = vld [vmem:[#allocation2 + $0x820] sm:$0xff]
          %v3709 = vld [vmem:[#allocation2 + $0x828] sm:$0xff]
          %v3710 = vld [vmem:[#allocation2 + $0x830] sm:$0xff]
          %v3711 = vld [vmem:[#allocation2 + $0x838] sm:$0xff]
          %v3712 = vld [vmem:[#allocation2 + $0x840] sm:$0xff]
          %v3713 = vld [vmem:[#allocation2 + $0x848] sm:$0xff]
          %v3714 = vld [vmem:[#allocation2 + $0x850] sm:$0xff]
          %v3715 = vld [vmem:[#allocation2 + $0x858] sm:$0xff]
          %v3716 = vld [vmem:[#allocation2 + $0x860] sm:$0xff]
          %v3717 = vld [vmem:[#allocation2 + $0x868] sm:$0xff]
          %v3718 = vld [vmem:[#allocation2 + $0x870] sm:$0xff]
          %v3719 = vld [vmem:[#allocation2 + $0x878] sm:$0xff]
          %v3720 = vld [vmem:[#allocation2 + $0x880] sm:$0xff]
          %v3721 = vld [vmem:[#allocation2 + $0x888] sm:$0xff]
          %v3722 = vld [vmem:[#allocation2 + $0x890] sm:$0xff]
          %v3723 = vld [vmem:[#allocation2 + $0x898] sm:$0xff]
          %v3724 = vld [vmem:[#allocation2 + $0x8a0] sm:$0xff]
          %v3725 = vld [vmem:[#allocation2 + $0x8a8] sm:$0xff]
          %v3726 = vld [vmem:[#allocation2 + $0x8b0] sm:$0xff]
          %v3727 = vld [vmem:[#allocation2 + $0x8b8] sm:$0xff]
          %v3728 = vld [vmem:[#allocation2 + $0x8c0] sm:$0xff]
          %v3729 = vld [vmem:[#allocation2 + $0x8c8] sm:$0xff]
          %v3730 = vld [vmem:[#allocation2 + $0x8d0] sm:$0xff]
          %v3731 = vld [vmem:[#allocation2 + $0x8d8] sm:$0xff]
          %v3732 = vld [vmem:[#allocation2 + $0x8e0] sm:$0xff]
          %v3733 = vld [vmem:[#allocation2 + $0x8e8] sm:$0xff]
          %v3734 = vld [vmem:[#allocation2 + $0x8f0] sm:$0xff]
          %v3735 = vld [vmem:[#allocation2 + $0x8f8] sm:$0xff]
          %v3736 = vld [vmem:[#allocation2 + $0x900] sm:$0xff]
          %v3737 = vld [vmem:[#allocation2 + $0x908] sm:$0xff]
          %v3738 = vld [vmem:[#allocation2 + $0x910] sm:$0xff]
          %v3739 = vld [vmem:[#allocation2 + $0x918] sm:$0xff]
          %v3740 = vld [vmem:[#allocation2 + $0x920] sm:$0xff]
          %v3741 = vld [vmem:[#allocation2 + $0x928] sm:$0xff]
          %v3742 = vld [vmem:[#allocation2 + $0x930] sm:$0xff]
          %v3743 = vld [vmem:[#allocation2 + $0x938] sm:$0xff]
          %v3744 = vld [vmem:[#allocation2 + $0x940] sm:$0xff]
          %v3745 = vld [vmem:[#allocation2 + $0x948] sm:$0xff]
          %v3746 = vld [vmem:[#allocation2 + $0x950] sm:$0xff]
          %v3747 = vld [vmem:[#allocation2 + $0x958] sm:$0xff]
          %v3748 = vld [vmem:[#allocation2 + $0x960] sm:$0xff]
          %v3749 = vld [vmem:[#allocation2 + $0x968] sm:$0xff]
          %v3750 = vld [vmem:[#allocation2 + $0x970] sm:$0xff]
          %v3751 = vld [vmem:[#allocation2 + $0x978] sm:$0xff]
          %v3752 = vmax.f32 %v3448, 0.0
          %v3753 = vmax.f32 %v3449, 0.0
          %v3754 = vmax.f32 %v3450, 0.0
          %v3755 = vmax.f32 %v3451, 0.0
          %v3756 = vmax.f32 %v3452, 0.0
          %v3757 = vmax.f32 %v3453, 0.0
          %v3758 = vmax.f32 %v3454, 0.0
          %v3759 = vmax.f32 %v3455, 0.0
          %v3760 = vmax.f32 %v3456, 0.0
          %v3761 = vmax.f32 %v3457, 0.0
          %v3762 = vmax.f32 %v3458, 0.0
          %v3763 = vmax.f32 %v3459, 0.0
          %v3764 = vmax.f32 %v3460, 0.0
          %v3765 = vmax.f32 %v3461, 0.0
          %v3766 = vmax.f32 %v3462, 0.0
          %v3767 = vmax.f32 %v3463, 0.0
          %v3768 = vmax.f32 %v3464, 0.0
          %v3769 = vmax.f32 %v3465, 0.0
          %v3770 = vmax.f32 %v3466, 0.0
          %v3771 = vmax.f32 %v3467, 0.0
          %v3772 = vmax.f32 %v3468, 0.0
          %v3773 = vmax.f32 %v3469, 0.0
          %v3774 = vmax.f32 %v3470, 0.0
          %v3775 = vmax.f32 %v3471, 0.0
          %v3776 = vmax.f32 %v3472, 0.0
          %v3777 = vmax.f32 %v3473, 0.0
          %v3778 = vmax.f32 %v3474, 0.0
          %v3779 = vmax.f32 %v3475, 0.0
          %v3780 = vmax.f32 %v3476, 0.0
          %v3781 = vmax.f32 %v3477, 0.0
          %v3782 = vmax.f32 %v3478, 0.0
          %v3783 = vmax.f32 %v3479, 0.0
          %v3784 = vmax.f32 %v3480, 0.0
          %v3785 = vmax.f32 %v3481, 0.0
          %v3786 = vmax.f32 %v3482, 0.0
          %v3787 = vmax.f32 %v3483, 0.0
          %v3788 = vmax.f32 %v3484, 0.0
          %v3789 = vmax.f32 %v3485, 0.0
          %v3790 = vmax.f32 %v3486, 0.0
          %v3791 = vmax.f32 %v3487, 0.0
          %v3792 = vmax.f32 %v3488, 0.0
          %v3793 = vmax.f32 %v3489, 0.0
          %v3794 = vmax.f32 %v3490, 0.0
          %v3795 = vmax.f32 %v3491, 0.0
          %v3796 = vmax.f32 %v3492, 0.0
          %v3797 = vmax.f32 %v3493, 0.0
          %v3798 = vmax.f32 %v3494, 0.0
          %v3799 = vmax.f32 %v3495, 0.0
          %v3800 = vmax.f32 %v3496, 0.0
          %v3801 = vmax.f32 %v3497, 0.0
          %v3802 = vmax.f32 %v3498, 0.0
          %v3803 = vmax.f32 %v3499, 0.0
          %v3804 = vmax.f32 %v3500, 0.0
          %v3805 = vmax.f32 %v3501, 0.0
          %v3806 = vmax.f32 %v3502, 0.0
          %v3807 = vmax.f32 %v3503, 0.0
          %v3808 = vmax.f32 %v3504, 0.0
          %v3809 = vmax.f32 %v3505, 0.0
          %v3810 = vmax.f32 %v3506, 0.0
          %v3811 = vmax.f32 %v3507, 0.0
          %v3812 = vmax.f32 %v3508, 0.0
          %v3813 = vmax.f32 %v3509, 0.0
          %v3814 = vmax.f32 %v3510, 0.0
          %v3815 = vmax.f32 %v3511, 0.0
          %v3816 = vmax.f32 %v3512, 0.0
          %v3817 = vmax.f32 %v3513, 0.0
          %v3818 = vmax.f32 %v3514, 0.0
          %v3819 = vmax.f32 %v3515, 0.0
          %v3820 = vmax.f32 %v3516, 0.0
          %v3821 = vmax.f32 %v3517, 0.0
          %v3822 = vmax.f32 %v3518, 0.0
          %v3823 = vmax.f32 %v3519, 0.0
          %v3824 = vmax.f32 %v3520, 0.0
          %v3825 = vmax.f32 %v3521, 0.0
          %v3826 = vmax.f32 %v3522, 0.0
          %v3827 = vmax.f32 %v3523, 0.0
          %v3828 = vmax.f32 %v3524, 0.0
          %v3829 = vmax.f32 %v3525, 0.0
          %v3830 = vmax.f32 %v3526, 0.0
          %v3831 = vmax.f32 %v3527, 0.0
          %v3832 = vmax.f32 %v3528, 0.0
          %v3833 = vmax.f32 %v3529, 0.0
          %v3834 = vmax.f32 %v3530, 0.0
          %v3835 = vmax.f32 %v3531, 0.0
          %v3836 = vmax.f32 %v3532, 0.0
          %v3837 = vmax.f32 %v3533, 0.0
          %v3838 = vmax.f32 %v3534, 0.0
          %v3839 = vmax.f32 %v3535, 0.0
          %v3840 = vmax.f32 %v3536, 0.0
          %v3841 = vmax.f32 %v3537, 0.0
          %v3842 = vmax.f32 %v3538, 0.0
          %v3843 = vmax.f32 %v3539, 0.0
          %v3844 = vmax.f32 %v3540, 0.0
          %v3845 = vmax.f32 %v3541, 0.0
          %v3846 = vmax.f32 %v3542, 0.0
          %v3847 = vmax.f32 %v3543, 0.0
          %v3848 = vmax.f32 %v3544, 0.0
          %v3849 = vmax.f32 %v3545, 0.0
          %v3850 = vmax.f32 %v3546, 0.0
          %v3851 = vmax.f32 %v3547, 0.0
          %v3852 = vmax.f32 %v3548, 0.0
          %v3853 = vmax.f32 %v3549, 0.0
          %v3854 = vmax.f32 %v3550, 0.0
          %v3855 = vmax.f32 %v3551, 0.0
          %v3856 = vmax.f32 %v3552, 0.0
          %v3857 = vmax.f32 %v3553, 0.0
          %v3858 = vmax.f32 %v3554, 0.0
          %v3859 = vmax.f32 %v3555, 0.0
          %v3860 = vmax.f32 %v3556, 0.0
          %v3861 = vmax.f32 %v3557, 0.0
          %v3862 = vmax.f32 %v3558, 0.0
          %v3863 = vmax.f32 %v3559, 0.0
          %v3864 = vmax.f32 %v3560, 0.0
          %v3865 = vmax.f32 %v3561, 0.0
          %v3866 = vmax.f32 %v3562, 0.0
          %v3867 = vmax.f32 %v3563, 0.0
          %v3868 = vmax.f32 %v3564, 0.0
          %v3869 = vmax.f32 %v3565, 0.0
          %v3870 = vmax.f32 %v3566, 0.0
          %v3871 = vmax.f32 %v3567, 0.0
          %v3872 = vmax.f32 %v3568, 0.0
          %v3873 = vmax.f32 %v3569, 0.0
          %v3874 = vmax.f32 %v3570, 0.0
          %v3875 = vmax.f32 %v3571, 0.0
          %v3876 = vmax.f32 %v3572, 0.0
          %v3877 = vmax.f32 %v3573, 0.0
          %v3878 = vmax.f32 %v3574, 0.0
          %v3879 = vmax.f32 %v3575, 0.0
          %v3880 = vmax.f32 %v3576, 0.0
          %v3881 = vmax.f32 %v3577, 0.0
          %v3882 = vmax.f32 %v3578, 0.0
          %v3883 = vmax.f32 %v3579, 0.0
          %v3884 = vmax.f32 %v3580, 0.0
          %v3885 = vmax.f32 %v3581, 0.0
          %v3886 = vmax.f32 %v3582, 0.0
          %v3887 = vmax.f32 %v3583, 0.0
          %v3888 = vmax.f32 %v3584, 0.0
          %v3889 = vmax.f32 %v3585, 0.0
          %v3890 = vmax.f32 %v3586, 0.0
          %v3891 = vmax.f32 %v3587, 0.0
          %v3892 = vmax.f32 %v3588, 0.0
          %v3893 = vmax.f32 %v3589, 0.0
          %v3894 = vmax.f32 %v3590, 0.0
          %v3895 = vmax.f32 %v3591, 0.0
          %v3896 = vmax.f32 %v3592, 0.0
          %v3897 = vmax.f32 %v3593, 0.0
          %v3898 = vmax.f32 %v3594, 0.0
          %v3899 = vmax.f32 %v3595, 0.0
          %v3900 = vmax.f32 %v3596, 0.0
          %v3901 = vmax.f32 %v3597, 0.0
          %v3902 = vmax.f32 %v3598, 0.0
          %v3903 = vmax.f32 %v3599, 0.0
          %v3904 = vmax.f32 %v3600, 0.0
          %v3905 = vmax.f32 %v3601, 0.0
          %v3906 = vmax.f32 %v3602, 0.0
          %v3907 = vmax.f32 %v3603, 0.0
          %v3908 = vmax.f32 %v3604, 0.0
          %v3909 = vmax.f32 %v3605, 0.0
          %v3910 = vmax.f32 %v3606, 0.0
          %v3911 = vmax.f32 %v3607, 0.0
          %v3912 = vmax.f32 %v3608, 0.0
          %v3913 = vmax.f32 %v3609, 0.0
          %v3914 = vmax.f32 %v3610, 0.0
          %v3915 = vmax.f32 %v3611, 0.0
          %v3916 = vmax.f32 %v3612, 0.0
          %v3917 = vmax.f32 %v3613, 0.0
          %v3918 = vmax.f32 %v3614, 0.0
          %v3919 = vmax.f32 %v3615, 0.0
          %v3920 = vmax.f32 %v3616, 0.0
          %v3921 = vmax.f32 %v3617, 0.0
          %v3922 = vmax.f32 %v3618, 0.0
          %v3923 = vmax.f32 %v3619, 0.0
          %v3924 = vmax.f32 %v3620, 0.0
          %v3925 = vmax.f32 %v3621, 0.0
          %v3926 = vmax.f32 %v3622, 0.0
          %v3927 = vmax.f32 %v3623, 0.0
          %v3928 = vmax.f32 %v3624, 0.0
          %v3929 = vmax.f32 %v3625, 0.0
          %v3930 = vmax.f32 %v3626, 0.0
          %v3931 = vmax.f32 %v3627, 0.0
          %v3932 = vmax.f32 %v3628, 0.0
          %v3933 = vmax.f32 %v3629, 0.0
          %v3934 = vmax.f32 %v3630, 0.0
          %v3935 = vmax.f32 %v3631, 0.0
          %v3936 = vmax.f32 %v3632, 0.0
          %v3937 = vmax.f32 %v3633, 0.0
          %v3938 = vmax.f32 %v3634, 0.0
          %v3939 = vmax.f32 %v3635, 0.0
          %v3940 = vmax.f32 %v3636, 0.0
          %v3941 = vmax.f32 %v3637, 0.0
          %v3942 = vmax.f32 %v3638, 0.0
          %v3943 = vmax.f32 %v3639, 0.0
          %v3944 = vmax.f32 %v3640, 0.0
          %v3945 = vmax.f32 %v3641, 0.0
          %v3946 = vmax.f32 %v3642, 0.0
          %v3947 = vmax.f32 %v3643, 0.0
          %v3948 = vmax.f32 %v3644, 0.0
          %v3949 = vmax.f32 %v3645, 0.0
          %v3950 = vmax.f32 %v3646, 0.0
          %v3951 = vmax.f32 %v3647, 0.0
          %v3952 = vmax.f32 %v3648, 0.0
          %v3953 = vmax.f32 %v3649, 0.0
          %v3954 = vmax.f32 %v3650, 0.0
          %v3955 = vmax.f32 %v3651, 0.0
          %v3956 = vmax.f32 %v3652, 0.0
          %v3957 = vmax.f32 %v3653, 0.0
          %v3958 = vmax.f32 %v3654, 0.0
          %v3959 = vmax.f32 %v3655, 0.0
          %v3960 = vmax.f32 %v3656, 0.0
          %v3961 = vmax.f32 %v3657, 0.0
          %v3962 = vmax.f32 %v3658, 0.0
          %v3963 = vmax.f32 %v3659, 0.0
          %v3964 = vmax.f32 %v3660, 0.0
          %v3965 = vmax.f32 %v3661, 0.0
          %v3966 = vmax.f32 %v3662, 0.0
          %v3967 = vmax.f32 %v3663, 0.0
          %v3968 = vmax.f32 %v3664, 0.0
          %v3969 = vmax.f32 %v3665, 0.0
          %v3970 = vmax.f32 %v3666, 0.0
          %v3971 = vmax.f32 %v3667, 0.0
          %v3972 = vmax.f32 %v3668, 0.0
          %v3973 = vmax.f32 %v3669, 0.0
          %v3974 = vmax.f32 %v3670, 0.0
          %v3975 = vmax.f32 %v3671, 0.0
          %v3976 = vmax.f32 %v3672, 0.0
          %v3977 = vmax.f32 %v3673, 0.0
          %v3978 = vmax.f32 %v3674, 0.0
          %v3979 = vmax.f32 %v3675, 0.0
          %v3980 = vmax.f32 %v3676, 0.0
          %v3981 = vmax.f32 %v3677, 0.0
          %v3982 = vmax.f32 %v3678, 0.0
          %v3983 = vmax.f32 %v3679, 0.0
          %v3984 = vmax.f32 %v3680, 0.0
          %v3985 = vmax.f32 %v3681, 0.0
          %v3986 = vmax.f32 %v3682, 0.0
          %v3987 = vmax.f32 %v3683, 0.0
          %v3988 = vmax.f32 %v3684, 0.0
          %v3989 = vmax.f32 %v3685, 0.0
          %v3990 = vmax.f32 %v3686, 0.0
          %v3991 = vmax.f32 %v3687, 0.0
          %v3992 = vmax.f32 %v3688, 0.0
          %v3993 = vmax.f32 %v3689, 0.0
          %v3994 = vmax.f32 %v3690, 0.0
          %v3995 = vmax.f32 %v3691, 0.0
          %v3996 = vmax.f32 %v3692, 0.0
          %v3997 = vmax.f32 %v3693, 0.0
          %v3998 = vmax.f32 %v3694, 0.0
          %v3999 = vmax.f32 %v3695, 0.0
          %v4000 = vmax.f32 %v3696, 0.0
          %v4001 = vmax.f32 %v3697, 0.0
          %v4002 = vmax.f32 %v3698, 0.0
          %v4003 = vmax.f32 %v3699, 0.0
          %v4004 = vmax.f32 %v3700, 0.0
          %v4005 = vmax.f32 %v3701, 0.0
          %v4006 = vmax.f32 %v3702, 0.0
          %v4007 = vmax.f32 %v3703, 0.0
          %v4008 = vmax.f32 %v3704, 0.0
          %v4009 = vmax.f32 %v3705, 0.0
          %v4010 = vmax.f32 %v3706, 0.0
          %v4011 = vmax.f32 %v3707, 0.0
          %v4012 = vmax.f32 %v3708, 0.0
          %v4013 = vmax.f32 %v3709, 0.0
          %v4014 = vmax.f32 %v3710, 0.0
          %v4015 = vmax.f32 %v3711, 0.0
          %v4016 = vmax.f32 %v3712, 0.0
          %v4017 = vmax.f32 %v3713, 0.0
          %v4018 = vmax.f32 %v3714, 0.0
          %v4019 = vmax.f32 %v3715, 0.0
          %v4020 = vmax.f32 %v3716, 0.0
          %v4021 = vmax.f32 %v3717, 0.0
          %v4022 = vmax.f32 %v3718, 0.0
          %v4023 = vmax.f32 %v3719, 0.0
          %v4024 = vmax.f32 %v3720, 0.0
          %v4025 = vmax.f32 %v3721, 0.0
          %v4026 = vmax.f32 %v3722, 0.0
          %v4027 = vmax.f32 %v3723, 0.0
          %v4028 = vmax.f32 %v3724, 0.0
          %v4029 = vmax.f32 %v3725, 0.0
          %v4030 = vmax.f32 %v3726, 0.0
          %v4031 = vmax.f32 %v3727, 0.0
          %v4032 = vmax.f32 %v3728, 0.0
          %v4033 = vmax.f32 %v3729, 0.0
          %v4034 = vmax.f32 %v3730, 0.0
          %v4035 = vmax.f32 %v3731, 0.0
          %v4036 = vmax.f32 %v3732, 0.0
          %v4037 = vmax.f32 %v3733, 0.0
          %v4038 = vmax.f32 %v3734, 0.0
          %v4039 = vmax.f32 %v3735, 0.0
          %v4040 = vmax.f32 %v3736, 0.0
          %v4041 = vmax.f32 %v3737, 0.0
          %v4042 = vmax.f32 %v3738, 0.0
          %v4043 = vmax.f32 %v3739, 0.0
          %v4044 = vmax.f32 %v3740, 0.0
          %v4045 = vmax.f32 %v3741, 0.0
          %v4046 = vmax.f32 %v3742, 0.0
          %v4047 = vmax.f32 %v3743, 0.0
          %v4048 = vmax.f32 %v3744, 0.0
          %v4049 = vmax.f32 %v3745, 0.0
          %v4050 = vmax.f32 %v3746, 0.0
          %v4051 = vmax.f32 %v3747, 0.0
          %v4052 = vmax.f32 %v3748, 0.0
          %v4053 = vmax.f32 %v3749, 0.0
          %v4054 = vmax.f32 %v3750, 0.0
          %v4055 = vmax.f32 %v3751, 0.0
          %v4057 = vcombine.high %v3447, %v3447
          %v4059 = vunpack.c.l.s4 1983009808
          %v4060 = vunpack.c.0.s8 %v4059
          %v4061 = vlaneseq
          %v4062 = vshrl.u32 %v4061, 7
          %v4063 = vsub.s32 %v4060, %v4062
          %v4064 = vrot.slane %v3447, %v4063
          %v4066 = vunpack.c.l.s4 1983009808
          %v4067 = vunpack.c.0.s8 %v4066
          %v4068 = vlaneseq
          %v4069 = vshrl.u32 %v4068, 7
          %v4070 = vsub.s32 %v4067, %v4069
          %v4071 = vrot.slane %v4057, %v4070
          %v4072 = vcombine.high %v4064, %v4064
          %vm4075 = vcmask 392192
          %v4076 = vsel %vm4075, %v4071, 0
          %4078 = vmatprep.subr.mxu0 %v3753
          %4079 = vmatpush1.msra.mxu0 %v3752
          %4080 = vmatprep.subr.mxu0 %v3761
          %4081 = vmatpush1.msra.mxu0 %v3760
          %4082 = vmatprep.subr.mxu0 %v3769
          %4083 = vmatpush1.msra.mxu0 %v3768
          %4084 = vmatprep.subr.mxu0 %v3777
          %4085 = vmatpush1.msra.mxu0 %v3776
          %4086 = vmatprep.subr.mxu0 %v3785
          %4087 = vmatpush1.msra.mxu0 %v3784
          %4088 = vmatprep.subr.mxu0 %v3793
          %4089 = vmatpush1.msra.mxu0 %v3792
          %4090 = vmatprep.subr.mxu0 %v3801
          %4091 = vmatpush1.msra.mxu0 %v3800
          %4092 = vmatprep.subr.mxu0 %v3809
          %4093 = vmatpush1.msra.mxu0 %v3808
          %4094 = vmatprep.subr.mxu0 %v3817
          %4095 = vmatpush1.msra.mxu0 %v3816
          %4096 = vmatprep.subr.mxu0 %v3825
          %4097 = vmatpush1.msra.mxu0 %v3824
          %4098 = vmatprep.subr.mxu0 %v3833
          %4099 = vmatpush1.msra.mxu0 %v3832
          %4100 = vmatprep.subr.mxu0 %v3841
          %4101 = vmatpush1.msra.mxu0 %v3840
          %4102 = vmatprep.subr.mxu0 %v3849
          %4103 = vmatpush1.msra.mxu0 %v3848
          %4104 = vmatprep.subr.mxu0 %v3857
          %4105 = vmatpush1.msra.mxu0 %v3856
          %4106 = vmatprep.subr.mxu0 %v3865
          %4107 = vmatpush1.msra.mxu0 %v3864
          %4108 = vmatprep.subr.mxu0 %v3873
          %4109 = vmatpush1.msra.mxu0 %v3872
          %4110 = vmatprep.subr.mxu0 %v3881
          %4111 = vmatpush1.msra.mxu0 %v3880
          %4112 = vmatprep.subr.mxu0 %v3889
          %4113 = vmatpush1.msra.mxu0 %v3888
          %4114 = vmatprep.subr.mxu0 %v3897
          %4115 = vmatpush1.msra.mxu0 %v3896
          %4116 = vmatprep.subr.mxu0 %v3905
          %4117 = vmatpush1.msra.mxu0 %v3904
          %4118 = vmatprep.subr.mxu0 %v3913
          %4119 = vmatpush1.msra.mxu0 %v3912
          %4120 = vmatprep.subr.mxu0 %v3921
          %4121 = vmatpush1.msra.mxu0 %v3920
          %4122 = vmatprep.subr.mxu0 %v3929
          %4123 = vmatpush1.msra.mxu0 %v3928
          %4124 = vmatprep.subr.mxu0 %v3937
          %4125 = vmatpush1.msra.mxu0 %v3936
          %4126 = vmatprep.subr.mxu0 %v3945
          %4127 = vmatpush1.msra.mxu0 %v3944
          %4128 = vmatprep.subr.mxu0 %v3953
          %4129 = vmatpush1.msra.mxu0 %v3952
          %4130 = vmatprep.subr.mxu0 %v3961
          %4131 = vmatpush1.msra.mxu0 %v3960
          %4132 = vmatprep.subr.mxu0 %v3969
          %4133 = vmatpush1.msra.mxu0 %v3968
          %4134 = vmatprep.subr.mxu0 %v3977
          %4135 = vmatpush1.msra.mxu0 %v3976
          %4136 = vmatprep.subr.mxu0 %v3985
          %4137 = vmatpush1.msra.mxu0 %v3984
          %4138 = vmatprep.subr.mxu0 %v3993
          %4139 = vmatpush1.msra.mxu0 %v3992
          %4140 = vmatprep.subr.mxu0 %v4001
          %4141 = vmatpush1.msra.mxu0 %v4000
          %4142 = vmatprep.mubr.f32.mxu0 %v4072
          %4143 = vmatmul.mubr.f32.gmra.mrb[0].mxu0 %v4064
          %v4144 = vpop.f32.mrb[0].mxu0
          %v4145 = vadd.f32 0.0, %v4144
          %v4146 = vpop.f32.mrb[0].mxu0
          %v4147 = vadd.f32 0.0, %v4146
          %4148 = vdwg.mxu0
          %4149 = vmatprep.subr.mxu0 %v4009
          %4150 = vmatpush1.msra.mxu0 %v4008
          %4151 = vmatprep.subr.mxu0 %v4017
          %4152 = vmatpush1.msra.mxu0 %v4016
          %4153 = vmatprep.subr.mxu0 %v4025
          %4154 = vmatpush1.msra.mxu0 %v4024
          %4155 = vmatprep.subr.mxu0 %v4033
          %4156 = vmatpush1.msra.mxu0 %v4032
          %4157 = vmatprep.subr.mxu0 %v4041
          %4158 = vmatpush1.msra.mxu0 %v4040
          %4159 = vmatprep.subr.mxu0 %v4049
          %4160 = vmatpush1.msra.mxu0 %v4048
          %4161 = vmatprep.subr.mxu0 0.0
          %4162 = vmatpush1.msra.mxu0 0.0
          %4163 = vmatprep.subr.mxu0 0.0
          %4164 = vmatpush1.msra.mxu0 0.0
          %4165 = vmatprep.subr.mxu0 0.0
          %4166 = vmatpush1.msra.mxu0 0.0
          %4167 = vmatprep.subr.mxu0 0.0
          %4168 = vmatpush1.msra.mxu0 0.0
          %4169 = vmatprep.subr.mxu0 0.0
          %4170 = vmatpush1.msra.mxu0 0.0
          %4171 = vmatprep.subr.mxu0 0.0
          %4172 = vmatpush1.msra.mxu0 0.0
          %4173 = vmatprep.subr.mxu0 0.0
          %4174 = vmatpush1.msra.mxu0 0.0
          %4175 = vmatprep.subr.mxu0 0.0
          %4176 = vmatpush1.msra.mxu0 0.0
          %4177 = vmatprep.subr.mxu0 0.0
          %4178 = vmatpush1.msra.mxu0 0.0
          %4179 = vmatprep.subr.mxu0 0.0
          %4180 = vmatpush1.msra.mxu0 0.0
          %4181 = vmatprep.subr.mxu0 0.0
          %4182 = vmatpush1.msra.mxu0 0.0
          %4183 = vmatprep.subr.mxu0 0.0
          %4184 = vmatpush1.msra.mxu0 0.0
          %4185 = vmatprep.subr.mxu0 0.0
          %4186 = vmatpush1.msra.mxu0 0.0
          %4187 = vmatprep.subr.mxu0 0.0
          %4188 = vmatpush1.msra.mxu0 0.0
          %4189 = vmatprep.subr.mxu0 0.0
          %4190 = vmatpush1.msra.mxu0 0.0
          %4191 = vmatprep.subr.mxu0 0.0
          %4192 = vmatpush1.msra.mxu0 0.0
          %4193 = vmatprep.subr.mxu0 0.0
          %4194 = vmatpush1.msra.mxu0 0.0
          %4195 = vmatprep.subr.mxu0 0.0
          %4196 = vmatpush1.msra.mxu0 0.0
          %4197 = vmatprep.subr.mxu0 0.0
          %4198 = vmatpush1.msra.mxu0 0.0
          %4199 = vmatprep.subr.mxu0 0.0
          %4200 = vmatpush1.msra.mxu0 0.0
          %4201 = vmatprep.subr.mxu0 0.0
          %4202 = vmatpush1.msra.mxu0 0.0
          %4203 = vmatprep.subr.mxu0 0.0
          %4204 = vmatpush1.msra.mxu0 0.0
          %4205 = vmatprep.subr.mxu0 0.0
          %4206 = vmatpush1.msra.mxu0 0.0
          %4207 = vmatprep.subr.mxu0 0.0
          %4208 = vmatpush1.msra.mxu0 0.0
          %4209 = vmatprep.subr.mxu0 0.0
          %4210 = vmatpush1.msra.mxu0 0.0
          %4211 = vmatprep.subr.mxu0 0.0
          %4212 = vmatpush1.msra.mxu0 0.0
          %4213 = vmatprep.mubr.f32.mxu0 0.0
          %4214 = vmatmul.mubr.f32.gmra.mrb[0].mxu0 %v4076
          %v4215 = vpop.f32.mrb[0].mxu0
          %v4216 = vadd.f32 %v4145, %v4215
          %v4217 = vpop.f32.mrb[0].mxu0
          %v4218 = vadd.f32 %v4147, %v4217
          %4219 = vdwg.mxu0
          %4220 = vmatprep.subr.mxu0 %v3755
          %4221 = vmatpush1.msra.mxu0 %v3754
          %4222 = vmatprep.subr.mxu0 %v3763
          %4223 = vmatpush1.msra.mxu0 %v3762
          %4224 = vmatprep.subr.mxu0 %v3771
          %4225 = vmatpush1.msra.mxu0 %v3770
          %4226 = vmatprep.subr.mxu0 %v3779
          %4227 = vmatpush1.msra.mxu0 %v3778
          %4228 = vmatprep.subr.mxu0 %v3787
          %4229 = vmatpush1.msra.mxu0 %v3786
          %4230 = vmatprep.subr.mxu0 %v3795
          %4231 = vmatpush1.msra.mxu0 %v3794
          %4232 = vmatprep.subr.mxu0 %v3803
          %4233 = vmatpush1.msra.mxu0 %v3802
          %4234 = vmatprep.subr.mxu0 %v3811
          %4235 = vmatpush1.msra.mxu0 %v3810
          %4236 = vmatprep.subr.mxu0 %v3819
          %4237 = vmatpush1.msra.mxu0 %v3818
          %4238 = vmatprep.subr.mxu0 %v3827
          %4239 = vmatpush1.msra.mxu0 %v3826
          %4240 = vmatprep.subr.mxu0 %v3835
          %4241 = vmatpush1.msra.mxu0 %v3834
          %4242 = vmatprep.subr.mxu0 %v3843
          %4243 = vmatpush1.msra.mxu0 %v3842
          %4244 = vmatprep.subr.mxu0 %v3851
          %4245 = vmatpush1.msra.mxu0 %v3850
          %4246 = vmatprep.subr.mxu0 %v3859
          %4247 = vmatpush1.msra.mxu0 %v3858
          %4248 = vmatprep.subr.mxu0 %v3867
          %4249 = vmatpush1.msra.mxu0 %v3866
          %4250 = vmatprep.subr.mxu0 %v3875
          %4251 = vmatpush1.msra.mxu0 %v3874
          %4252 = vmatprep.subr.mxu0 %v3883
          %4253 = vmatpush1.msra.mxu0 %v3882
          %4254 = vmatprep.subr.mxu0 %v3891
          %4255 = vmatpush1.msra.mxu0 %v3890
          %4256 = vmatprep.subr.mxu0 %v3899
          %4257 = vmatpush1.msra.mxu0 %v3898
          %4258 = vmatprep.subr.mxu0 %v3907
          %4259 = vmatpush1.msra.mxu0 %v3906
          %4260 = vmatprep.subr.mxu0 %v3915
          %4261 = vmatpush1.msra.mxu0 %v3914
          %4262 = vmatprep.subr.mxu0 %v3923
          %4263 = vmatpush1.msra.mxu0 %v3922
          %4264 = vmatprep.subr.mxu0 %v3931
          %4265 = vmatpush1.msra.mxu0 %v3930
          %4266 = vmatprep.subr.mxu0 %v3939
          %4267 = vmatpush1.msra.mxu0 %v3938
          %4268 = vmatprep.subr.mxu0 %v3947
          %4269 = vmatpush1.msra.mxu0 %v3946
          %4270 = vmatprep.subr.mxu0 %v3955
          %4271 = vmatpush1.msra.mxu0 %v3954
          %4272 = vmatprep.subr.mxu0 %v3963
          %4273 = vmatpush1.msra.mxu0 %v3962
          %4274 = vmatprep.subr.mxu0 %v3971
          %4275 = vmatpush1.msra.mxu0 %v3970
          %4276 = vmatprep.subr.mxu0 %v3979
          %4277 = vmatpush1.msra.mxu0 %v3978
          %4278 = vmatprep.subr.mxu0 %v3987
          %4279 = vmatpush1.msra.mxu0 %v3986
          %4280 = vmatprep.subr.mxu0 %v3995
          %4281 = vmatpush1.msra.mxu0 %v3994
          %4282 = vmatprep.subr.mxu0 %v4003
          %4283 = vmatpush1.msra.mxu0 %v4002
          %4284 = vmatprep.mubr.f32.mxu0 %v4072
          %4285 = vmatmul.mubr.f32.gmra.mrb[0].mxu0 %v4064
          %v4286 = vpop.f32.mrb[0].mxu0
          %v4287 = vadd.f32 0.0, %v4286
          %v4288 = vpop.f32.mrb[0].mxu0
          %v4289 = vadd.f32 0.0, %v4288
          %4290 = vdwg.mxu0
          %4291 = vmatprep.subr.mxu0 %v4011
          %4292 = vmatpush1.msra.mxu0 %v4010
          %4293 = vmatprep.subr.mxu0 %v4019
          %4294 = vmatpush1.msra.mxu0 %v4018
          %4295 = vmatprep.subr.mxu0 %v4027
          %4296 = vmatpush1.msra.mxu0 %v4026
          %4297 = vmatprep.subr.mxu0 %v4035
          %4298 = vmatpush1.msra.mxu0 %v4034
          %4299 = vmatprep.subr.mxu0 %v4043
          %4300 = vmatpush1.msra.mxu0 %v4042
          %4301 = vmatprep.subr.mxu0 %v4051
          %4302 = vmatpush1.msra.mxu0 %v4050
          %4303 = vmatprep.subr.mxu0 0.0
          %4304 = vmatpush1.msra.mxu0 0.0
          %4305 = vmatprep.subr.mxu0 0.0
          %4306 = vmatpush1.msra.mxu0 0.0
          %4307 = vmatprep.subr.mxu0 0.0
          %4308 = vmatpush1.msra.mxu0 0.0
          %4309 = vmatprep.subr.mxu0 0.0
          %4310 = vmatpush1.msra.mxu0 0.0
          %4311 = vmatprep.subr.mxu0 0.0
          %4312 = vmatpush1.msra.mxu0 0.0
          %4313 = vmatprep.subr.mxu0 0.0
          %4314 = vmatpush1.msra.mxu0 0.0
          %4315 = vmatprep.subr.mxu0 0.0
          %4316 = vmatpush1.msra.mxu0 0.0
          %4317 = vmatprep.subr.mxu0 0.0
          %4318 = vmatpush1.msra.mxu0 0.0
          %4319 = vmatprep.subr.mxu0 0.0
          %4320 = vmatpush1.msra.mxu0 0.0
          %4321 = vmatprep.subr.mxu0 0.0
          %4322 = vmatpush1.msra.mxu0 0.0
          %4323 = vmatprep.subr.mxu0 0.0
          %4324 = vmatpush1.msra.mxu0 0.0
          %4325 = vmatprep.subr.mxu0 0.0
          %4326 = vmatpush1.msra.mxu0 0.0
          %4327 = vmatprep.subr.mxu0 0.0
          %4328 = vmatpush1.msra.mxu0 0.0
          %4329 = vmatprep.subr.mxu0 0.0
          %4330 = vmatpush1.msra.mxu0 0.0
          %4331 = vmatprep.subr.mxu0 0.0
          %4332 = vmatpush1.msra.mxu0 0.0
          %4333 = vmatprep.subr.mxu0 0.0
          %4334 = vmatpush1.msra.mxu0 0.0
          %4335 = vmatprep.subr.mxu0 0.0
          %4336 = vmatpush1.msra.mxu0 0.0
          %4337 = vmatprep.subr.mxu0 0.0
          %4338 = vmatpush1.msra.mxu0 0.0
          %4339 = vmatprep.subr.mxu0 0.0
          %4340 = vmatpush1.msra.mxu0 0.0
          %4341 = vmatprep.subr.mxu0 0.0
          %4342 = vmatpush1.msra.mxu0 0.0
          %4343 = vmatprep.subr.mxu0 0.0
          %4344 = vmatpush1.msra.mxu0 0.0
          %4345 = vmatprep.subr.mxu0 0.0
          %4346 = vmatpush1.msra.mxu0 0.0
          %4347 = vmatprep.subr.mxu0 0.0
          %4348 = vmatpush1.msra.mxu0 0.0
          %4349 = vmatprep.subr.mxu0 0.0
          %4350 = vmatpush1.msra.mxu0 0.0
          %4351 = vmatprep.subr.mxu0 0.0
          %4352 = vmatpush1.msra.mxu0 0.0
          %4353 = vmatprep.subr.mxu0 0.0
          %4354 = vmatpush1.msra.mxu0 0.0
          %4355 = vmatprep.mubr.f32.mxu0 0.0
          %4356 = vmatmul.mubr.f32.gmra.mrb[0].mxu0 %v4076
          %v4357 = vpop.f32.mrb[0].mxu0
          %v4358 = vadd.f32 %v4287, %v4357
          %v4359 = vpop.f32.mrb[0].mxu0
          %v4360 = vadd.f32 %v4289, %v4359
          %4361 = vdwg.mxu0
          %4362 = vmatprep.subr.mxu0 %v3757
          %4363 = vmatpush1.msra.mxu0 %v3756
          %4364 = vmatprep.subr.mxu0 %v3765
          %4365 = vmatpush1.msra.mxu0 %v3764
          %4366 = vmatprep.subr.mxu0 %v3773
          %4367 = vmatpush1.msra.mxu0 %v3772
          %4368 = vmatprep.subr.mxu0 %v3781
          %4369 = vmatpush1.msra.mxu0 %v3780
          %4370 = vmatprep.subr.mxu0 %v3789
          %4371 = vmatpush1.msra.mxu0 %v3788
          %4372 = vmatprep.subr.mxu0 %v3797
          %4373 = vmatpush1.msra.mxu0 %v3796
          %4374 = vmatprep.subr.mxu0 %v3805
          %4375 = vmatpush1.msra.mxu0 %v3804
          %4376 = vmatprep.subr.mxu0 %v3813
          %4377 = vmatpush1.msra.mxu0 %v3812
          %4378 = vmatprep.subr.mxu0 %v3821
          %4379 = vmatpush1.msra.mxu0 %v3820
          %4380 = vmatprep.subr.mxu0 %v3829
          %4381 = vmatpush1.msra.mxu0 %v3828
          %4382 = vmatprep.subr.mxu0 %v3837
          %4383 = vmatpush1.msra.mxu0 %v3836
          %4384 = vmatprep.subr.mxu0 %v3845
          %4385 = vmatpush1.msra.mxu0 %v3844
          %4386 = vmatprep.subr.mxu0 %v3853
          %4387 = vmatpush1.msra.mxu0 %v3852
          %4388 = vmatprep.subr.mxu0 %v3861
          %4389 = vmatpush1.msra.mxu0 %v3860
          %4390 = vmatprep.subr.mxu0 %v3869
          %4391 = vmatpush1.msra.mxu0 %v3868
          %4392 = vmatprep.subr.mxu0 %v3877
          %4393 = vmatpush1.msra.mxu0 %v3876
          %4394 = vmatprep.subr.mxu0 %v3885
          %4395 = vmatpush1.msra.mxu0 %v3884
          %4396 = vmatprep.subr.mxu0 %v3893
          %4397 = vmatpush1.msra.mxu0 %v3892
          %4398 = vmatprep.subr.mxu0 %v3901
          %4399 = vmatpush1.msra.mxu0 %v3900
          %4400 = vmatprep.subr.mxu0 %v3909
          %4401 = vmatpush1.msra.mxu0 %v3908
          %4402 = vmatprep.subr.mxu0 %v3917
          %4403 = vmatpush1.msra.mxu0 %v3916
          %4404 = vmatprep.subr.mxu0 %v3925
          %4405 = vmatpush1.msra.mxu0 %v3924
          %4406 = vmatprep.subr.mxu0 %v3933
          %4407 = vmatpush1.msra.mxu0 %v3932
          %4408 = vmatprep.subr.mxu0 %v3941
          %4409 = vmatpush1.msra.mxu0 %v3940
          %4410 = vmatprep.subr.mxu0 %v3949
          %4411 = vmatpush1.msra.mxu0 %v3948
          %4412 = vmatprep.subr.mxu0 %v3957
          %4413 = vmatpush1.msra.mxu0 %v3956
          %4414 = vmatprep.subr.mxu0 %v3965
          %4415 = vmatpush1.msra.mxu0 %v3964
          %4416 = vmatprep.subr.mxu0 %v3973
          %4417 = vmatpush1.msra.mxu0 %v3972
          %4418 = vmatprep.subr.mxu0 %v3981
          %4419 = vmatpush1.msra.mxu0 %v3980
          %4420 = vmatprep.subr.mxu0 %v3989
          %4421 = vmatpush1.msra.mxu0 %v3988
          %4422 = vmatprep.subr.mxu0 %v3997
          %4423 = vmatpush1.msra.mxu0 %v3996
          %4424 = vmatprep.subr.mxu0 %v4005
          %4425 = vmatpush1.msra.mxu0 %v4004
          %4426 = vmatprep.mubr.f32.mxu0 %v4072
          %4427 = vmatmul.mubr.f32.gmra.mrb[0].mxu0 %v4064
          %v4428 = vpop.f32.mrb[0].mxu0
          %v4429 = vadd.f32 0.0, %v4428
          %v4430 = vpop.f32.mrb[0].mxu0
          %v4431 = vadd.f32 0.0, %v4430
          %4432 = vdwg.mxu0
          %4433 = vmatprep.subr.mxu0 %v4013
          %4434 = vmatpush1.msra.mxu0 %v4012
          %4435 = vmatprep.subr.mxu0 %v4021
          %4436 = vmatpush1.msra.mxu0 %v4020
          %4437 = vmatprep.subr.mxu0 %v4029
          %4438 = vmatpush1.msra.mxu0 %v4028
          %4439 = vmatprep.subr.mxu0 %v4037
          %4440 = vmatpush1.msra.mxu0 %v4036
          %4441 = vmatprep.subr.mxu0 %v4045
          %4442 = vmatpush1.msra.mxu0 %v4044
          %4443 = vmatprep.subr.mxu0 %v4053
          %4444 = vmatpush1.msra.mxu0 %v4052
          %4445 = vmatprep.subr.mxu0 0.0
          %4446 = vmatpush1.msra.mxu0 0.0
          %4447 = vmatprep.subr.mxu0 0.0
          %4448 = vmatpush1.msra.mxu0 0.0
          %4449 = vmatprep.subr.mxu0 0.0
          %4450 = vmatpush1.msra.mxu0 0.0
          %4451 = vmatprep.subr.mxu0 0.0
          %4452 = vmatpush1.msra.mxu0 0.0
          %4453 = vmatprep.subr.mxu0 0.0
          %4454 = vmatpush1.msra.mxu0 0.0
          %4455 = vmatprep.subr.mxu0 0.0
          %4456 = vmatpush1.msra.mxu0 0.0
          %4457 = vmatprep.subr.mxu0 0.0
          %4458 = vmatpush1.msra.mxu0 0.0
          %4459 = vmatprep.subr.mxu0 0.0
          %4460 = vmatpush1.msra.mxu0 0.0
          %4461 = vmatprep.subr.mxu0 0.0
          %4462 = vmatpush1.msra.mxu0 0.0
          %4463 = vmatprep.subr.mxu0 0.0
          %4464 = vmatpush1.msra.mxu0 0.0
          %4465 = vmatprep.subr.mxu0 0.0
          %4466 = vmatpush1.msra.mxu0 0.0
          %4467 = vmatprep.subr.mxu0 0.0
          %4468 = vmatpush1.msra.mxu0 0.0
          %4469 = vmatprep.subr.mxu0 0.0
          %4470 = vmatpush1.msra.mxu0 0.0
          %4471 = vmatprep.subr.mxu0 0.0
          %4472 = vmatpush1.msra.mxu0 0.0
          %4473 = vmatprep.subr.mxu0 0.0
          %4474 = vmatpush1.msra.mxu0 0.0
          %4475 = vmatprep.subr.mxu0 0.0
          %4476 = vmatpush1.msra.mxu0 0.0
          %4477 = vmatprep.subr.mxu0 0.0
          %4478 = vmatpush1.msra.mxu0 0.0
          %4479 = vmatprep.subr.mxu0 0.0
          %4480 = vmatpush1.msra.mxu0 0.0
          %4481 = vmatprep.subr.mxu0 0.0
          %4482 = vmatpush1.msra.mxu0 0.0
          %4483 = vmatprep.subr.mxu0 0.0
          %4484 = vmatpush1.msra.mxu0 0.0
          %4485 = vmatprep.subr.mxu0 0.0
          %4486 = vmatpush1.msra.mxu0 0.0
          %4487 = vmatprep.subr.mxu0 0.0
          %4488 = vmatpush1.msra.mxu0 0.0
          %4489 = vmatprep.subr.mxu0 0.0
          %4490 = vmatpush1.msra.mxu0 0.0
          %4491 = vmatprep.subr.mxu0 0.0
          %4492 = vmatpush1.msra.mxu0 0.0
          %4493 = vmatprep.subr.mxu0 0.0
          %4494 = vmatpush1.msra.mxu0 0.0
          %4495 = vmatprep.subr.mxu0 0.0
          %4496 = vmatpush1.msra.mxu0 0.0
          %4497 = vmatprep.mubr.f32.mxu0 0.0
          %4498 = vmatmul.mubr.f32.gmra.mrb[0].mxu0 %v4076
          %v4499 = vpop.f32.mrb[0].mxu0
          %v4500 = vadd.f32 %v4429, %v4499
          %v4501 = vpop.f32.mrb[0].mxu0
          %v4502 = vadd.f32 %v4431, %v4501
          %4503 = vdwg.mxu0
          %4504 = vmatprep.subr.mxu0 %v3759
          %4505 = vmatpush1.msra.mxu0 %v3758
          %4506 = vmatprep.subr.mxu0 %v3767
          %4507 = vmatpush1.msra.mxu0 %v3766
          %4508 = vmatprep.subr.mxu0 %v3775
          %4509 = vmatpush1.msra.mxu0 %v3774
          %4510 = vmatprep.subr.mxu0 %v3783
          %4511 = vmatpush1.msra.mxu0 %v3782
          %4512 = vmatprep.subr.mxu0 %v3791
          %4513 = vmatpush1.msra.mxu0 %v3790
          %4514 = vmatprep.subr.mxu0 %v3799
          %4515 = vmatpush1.msra.mxu0 %v3798
          %4516 = vmatprep.subr.mxu0 %v3807
          %4517 = vmatpush1.msra.mxu0 %v3806
          %4518 = vmatprep.subr.mxu0 %v3815
          %4519 = vmatpush1.msra.mxu0 %v3814
          %4520 = vmatprep.subr.mxu0 %v3823
          %4521 = vmatpush1.msra.mxu0 %v3822
          %4522 = vmatprep.subr.mxu0 %v3831
          %4523 = vmatpush1.msra.mxu0 %v3830
          %4524 = vmatprep.subr.mxu0 %v3839
          %4525 = vmatpush1.msra.mxu0 %v3838
          %4526 = vmatprep.subr.mxu0 %v3847
          %4527 = vmatpush1.msra.mxu0 %v3846
          %4528 = vmatprep.subr.mxu0 %v3855
          %4529 = vmatpush1.msra.mxu0 %v3854
          %4530 = vmatprep.subr.mxu0 %v3863
          %4531 = vmatpush1.msra.mxu0 %v3862
          %4532 = vmatprep.subr.mxu0 %v3871
          %4533 = vmatpush1.msra.mxu0 %v3870
          %4534 = vmatprep.subr.mxu0 %v3879
          %4535 = vmatpush1.msra.mxu0 %v3878
          %4536 = vmatprep.subr.mxu0 %v3887
          %4537 = vmatpush1.msra.mxu0 %v3886
          %4538 = vmatprep.subr.mxu0 %v3895
          %4539 = vmatpush1.msra.mxu0 %v3894
          %4540 = vmatprep.subr.mxu0 %v3903
          %4541 = vmatpush1.msra.mxu0 %v3902
          %4542 = vmatprep.subr.mxu0 %v3911
          %4543 = vmatpush1.msra.mxu0 %v3910
          %4544 = vmatprep.subr.mxu0 %v3919
          %4545 = vmatpush1.msra.mxu0 %v3918
          %4546 = vmatprep.subr.mxu0 %v3927
          %4547 = vmatpush1.msra.mxu0 %v3926
          %4548 = vmatprep.subr.mxu0 %v3935
          %4549 = vmatpush1.msra.mxu0 %v3934
          %4550 = vmatprep.subr.mxu0 %v3943
          %4551 = vmatpush1.msra.mxu0 %v3942
          %4552 = vmatprep.subr.mxu0 %v3951
          %4553 = vmatpush1.msra.mxu0 %v3950
          %4554 = vmatprep.subr.mxu0 %v3959
          %4555 = vmatpush1.msra.mxu0 %v3958
          %4556 = vmatprep.subr.mxu0 %v3967
          %4557 = vmatpush1.msra.mxu0 %v3966
          %4558 = vmatprep.subr.mxu0 %v3975
          %4559 = vmatpush1.msra.mxu0 %v3974
          %4560 = vmatprep.subr.mxu0 %v3983
          %4561 = vmatpush1.msra.mxu0 %v3982
          %4562 = vmatprep.subr.mxu0 %v3991
          %4563 = vmatpush1.msra.mxu0 %v3990
          %4564 = vmatprep.subr.mxu0 %v3999
          %4565 = vmatpush1.msra.mxu0 %v3998
          %4566 = vmatprep.subr.mxu0 %v4007
          %4567 = vmatpush1.msra.mxu0 %v4006
          %4568 = vmatprep.mubr.f32.mxu0 %v4072
          %4569 = vmatmul.mubr.f32.gmra.mrb[0].mxu0 %v4064
          %v4570 = vpop.f32.mrb[0].mxu0
          %v4571 = vadd.f32 0.0, %v4570
          %v4572 = vpop.f32.mrb[0].mxu0
          %v4573 = vadd.f32 0.0, %v4572
          %4574 = vdwg.mxu0
          %4575 = vmatprep.subr.mxu0 %v4015
          %4576 = vmatpush1.msra.mxu0 %v4014
          %4577 = vmatprep.subr.mxu0 %v4023
          %4578 = vmatpush1.msra.mxu0 %v4022
          %4579 = vmatprep.subr.mxu0 %v4031
          %4580 = vmatpush1.msra.mxu0 %v4030
          %4581 = vmatprep.subr.mxu0 %v4039
          %4582 = vmatpush1.msra.mxu0 %v4038
          %4583 = vmatprep.subr.mxu0 %v4047
          %4584 = vmatpush1.msra.mxu0 %v4046
          %4585 = vmatprep.subr.mxu0 %v4055
          %4586 = vmatpush1.msra.mxu0 %v4054
          %4587 = vmatprep.subr.mxu0 0.0
          %4588 = vmatpush1.msra.mxu0 0.0
          %4589 = vmatprep.subr.mxu0 0.0
          %4590 = vmatpush1.msra.mxu0 0.0
          %4591 = vmatprep.subr.mxu0 0.0
          %4592 = vmatpush1.msra.mxu0 0.0
          %4593 = vmatprep.subr.mxu0 0.0
          %4594 = vmatpush1.msra.mxu0 0.0
          %4595 = vmatprep.subr.mxu0 0.0
          %4596 = vmatpush1.msra.mxu0 0.0
          %4597 = vmatprep.subr.mxu0 0.0
          %4598 = vmatpush1.msra.mxu0 0.0
          %4599 = vmatprep.subr.mxu0 0.0
          %4600 = vmatpush1.msra.mxu0 0.0
          %4601 = vmatprep.subr.mxu0 0.0
          %4602 = vmatpush1.msra.mxu0 0.0
          %4603 = vmatprep.subr.mxu0 0.0
          %4604 = vmatpush1.msra.mxu0 0.0
          %4605 = vmatprep.subr.mxu0 0.0
          %4606 = vmatpush1.msra.mxu0 0.0
          %4607 = vmatprep.subr.mxu0 0.0
          %4608 = vmatpush1.msra.mxu0 0.0
          %4609 = vmatprep.subr.mxu0 0.0
          %4610 = vmatpush1.msra.mxu0 0.0
          %4611 = vmatprep.subr.mxu0 0.0
          %4612 = vmatpush1.msra.mxu0 0.0
          %4613 = vmatprep.subr.mxu0 0.0
          %4614 = vmatpush1.msra.mxu0 0.0
          %4615 = vmatprep.subr.mxu0 0.0
          %4616 = vmatpush1.msra.mxu0 0.0
          %4617 = vmatprep.subr.mxu0 0.0
          %4618 = vmatpush1.msra.mxu0 0.0
          %4619 = vmatprep.subr.mxu0 0.0
          %4620 = vmatpush1.msra.mxu0 0.0
          %4621 = vmatprep.subr.mxu0 0.0
          %4622 = vmatpush1.msra.mxu0 0.0
          %4623 = vmatprep.subr.mxu0 0.0
          %4624 = vmatpush1.msra.mxu0 0.0
          %4625 = vmatprep.subr.mxu0 0.0
          %4626 = vmatpush1.msra.mxu0 0.0
          %4627 = vmatprep.subr.mxu0 0.0
          %4628 = vmatpush1.msra.mxu0 0.0
          %4629 = vmatprep.subr.mxu0 0.0
          %4630 = vmatpush1.msra.mxu0 0.0
          %4631 = vmatprep.subr.mxu0 0.0
          %4632 = vmatpush1.msra.mxu0 0.0
          %4633 = vmatprep.subr.mxu0 0.0
          %4634 = vmatpush1.msra.mxu0 0.0
          %4635 = vmatprep.subr.mxu0 0.0
          %4636 = vmatpush1.msra.mxu0 0.0
          %4637 = vmatprep.subr.mxu0 0.0
          %4638 = vmatpush1.msra.mxu0 0.0
          %4639 = vmatprep.mubr.f32.mxu0 0.0
          %4640 = vmatmul.mubr.f32.gmra.mrb[0].mxu0 %v4076
          %v4641 = vpop.f32.mrb[0].mxu0
          %v4642 = vadd.f32 %v4571, %v4641
          %v4643 = vpop.f32.mrb[0].mxu0
          %v4644 = vadd.f32 %v4573, %v4643
          %4645 = vdwg.mxu0
          %v4654 = vcombine.low %v4216, %v4218
          %v4655 = vcombine.low %v4358, %v4360
          %v4657 = vunpack.c.l.s4 1983009808
          %v4658 = vunpack.c.0.s8 %v4657
          %v4659 = vlaneseq
          %v4660 = vshrl.u32 %v4659, 7
          %v4661 = vsub.s32 %v4658, %v4660
          %v4662 = vrot.slane %v4654, %v4661
          %v4664 = vunpack.c.l.s4 1983009808
          %v4665 = vunpack.c.0.s8 %v4664
          %v4666 = vlaneseq
          %v4667 = vshrl.u32 %v4666, 7
          %v4668 = vsub.s32 %v4665, %v4667
          %v4669 = vrot.slane %v4655, %v4668
          %v4670 = vcombine.low %v4662, %v4669
          %v4671 = vcombine.low %v4500, %v4502
          %v4672 = vcombine.low %v4642, %v4644
          %v4674 = vunpack.c.l.s4 1983009808
          %v4675 = vunpack.c.0.s8 %v4674
          %v4676 = vlaneseq
          %v4677 = vshrl.u32 %v4676, 7
          %v4678 = vsub.s32 %v4675, %v4677
          %v4679 = vrot.slane %v4671, %v4678
          %v4681 = vunpack.c.l.s4 1983009808
          %v4682 = vunpack.c.0.s8 %v4681
          %v4683 = vlaneseq
          %v4684 = vshrl.u32 %v4683, 7
          %v4685 = vsub.s32 %v4682, %v4684
          %v4686 = vrot.slane %v4672, %v4685
          %v4687 = vcombine.low %v4679, %v4686
          %v4690 = vadd.f32 %v3445, %v4670
          %v4691 = vadd.f32 %v3446, %v4687
          %4692 = vst [vmem:[#allocation3] sm:$0xff] %v4690
          %4693 = vst [vmem:[#allocation3 + $0x8] sm:$0xff] %v4691
        $region76: #{tpu_custom_call.1} parent=43 // pred_fallthru
          _
        %p4694 = pnand %p3441, %p440
        %p4695 = pneg %p4694
        // Predicated region
        $region77: #{tpu_custom_call.1} parent=43 // pred_check
          _
        $region78: #{tpu_custom_call.1} parent=43 // pred_check_branch
          %4697 = sbr.rel (%p4694) target = $region80
        $region79: #{tpu_custom_call.1} parent=43 // pred_region
          %v4698 = vld [vmem:[#allocation3] sm:$0xff]
          %v4699 = vld [vmem:[#allocation3 + $0x8] sm:$0xff]
          %v4700 = vld [vmem:[%s379] sm:$0xff]
          %v4702 = vlaneseq
          %v4703 = vshrl.u32 %v4702, 7
          %v4704 = vsub.s32 0, %v4703
          %v4705 = vrot.slane %v4700, %v4704
          %v4706 = vlaneseq
          %v4707 = vshrl.u32 %v4706, 7
          %v4708 = vsub.s32 1, %v4707
          %v4709 = vrot.slane %v4700, %v4708
          %v4710 = vlaneseq
          %v4711 = vshrl.u32 %v4710, 7
          %v4712 = vsub.s32 2, %v4711
          %v4713 = vrot.slane %v4700, %v4712
          %v4714 = vlaneseq
          %v4715 = vshrl.u32 %v4714, 7
          %v4716 = vsub.s32 3, %v4715
          %v4717 = vrot.slane %v4700, %v4716
          %v4718 = vlaneseq
          %v4719 = vshrl.u32 %v4718, 7
          %v4720 = vsub.s32 4, %v4719
          %v4721 = vrot.slane %v4700, %v4720
          %v4722 = vlaneseq
          %v4723 = vshrl.u32 %v4722, 7
          %v4724 = vsub.s32 5, %v4723
          %v4725 = vrot.slane %v4700, %v4724
          %v4726 = vlaneseq
          %v4727 = vshrl.u32 %v4726, 7
          %v4728 = vsub.s32 6, %v4727
          %v4729 = vrot.slane %v4700, %v4728
          %v4730 = vlaneseq
          %v4731 = vshrl.u32 %v4730, 7
          %v4732 = vsub.s32 7, %v4731
          %v4733 = vrot.slane %v4700, %v4732
          %v4734 = vcombine.low %v4705, %v4709
          %v4735 = vcombine.low %v4713, %v4717
          %v4737 = vunpack.c.l.s4 1983009808
          %v4738 = vunpack.c.0.s8 %v4737
          %v4739 = vlaneseq
          %v4740 = vshrl.u32 %v4739, 7
          %v4741 = vsub.s32 %v4738, %v4740
          %v4742 = vrot.slane %v4734, %v4741
          %v4744 = vunpack.c.l.s4 1983009808
          %v4745 = vunpack.c.0.s8 %v4744
          %v4746 = vlaneseq
          %v4747 = vshrl.u32 %v4746, 7
          %v4748 = vsub.s32 %v4745, %v4747
          %v4749 = vrot.slane %v4735, %v4748
          %v4750 = vcombine.low %v4742, %v4749
          %v4751 = vcombine.low %v4721, %v4725
          %v4752 = vcombine.low %v4729, %v4733
          %v4754 = vunpack.c.l.s4 1983009808
          %v4755 = vunpack.c.0.s8 %v4754
          %v4756 = vlaneseq
          %v4757 = vshrl.u32 %v4756, 7
          %v4758 = vsub.s32 %v4755, %v4757
          %v4759 = vrot.slane %v4751, %v4758
          %v4761 = vunpack.c.l.s4 1983009808
          %v4762 = vunpack.c.0.s8 %v4761
          %v4763 = vlaneseq
          %v4764 = vshrl.u32 %v4763, 7
          %v4765 = vsub.s32 %v4762, %v4764
          %v4766 = vrot.slane %v4752, %v4765
          %v4767 = vcombine.low %v4759, %v4766
          %v4770 = vmul.f32 %v4698, %v4750
          %v4771 = vmul.f32 %v4699, %v4767
          %v4772 = vld [vmem:[%s5] sm:$0x3]
          %v4773 = vld [vmem:[%s388] sm:$0xff]
          %4775 = vset.pattern.permute.xlu0 0
          %4776 = vperm.xlu0 %4775, %v4772
          %v4777 = vpop.permute.xlu0 %4776
          %v4780 = vlaneseq
          %v4781 = vshrl.u32 %v4780, 7
          %v4782 = vsub.s32 0, %v4781
          %v4783 = vrot.slane %v4773, %v4782
          %v4784 = vlaneseq
          %v4785 = vshrl.u32 %v4784, 7
          %v4786 = vsub.s32 1, %v4785
          %v4787 = vrot.slane %v4773, %v4786
          %v4788 = vlaneseq
          %v4789 = vshrl.u32 %v4788, 7
          %v4790 = vsub.s32 2, %v4789
          %v4791 = vrot.slane %v4773, %v4790
          %v4792 = vlaneseq
          %v4793 = vshrl.u32 %v4792, 7
          %v4794 = vsub.s32 3, %v4793
          %v4795 = vrot.slane %v4773, %v4794
          %v4796 = vlaneseq
          %v4797 = vshrl.u32 %v4796, 7
          %v4798 = vsub.s32 4, %v4797
          %v4799 = vrot.slane %v4773, %v4798
          %v4800 = vlaneseq
          %v4801 = vshrl.u32 %v4800, 7
          %v4802 = vsub.s32 5, %v4801
          %v4803 = vrot.slane %v4773, %v4802
          %v4804 = vlaneseq
          %v4805 = vshrl.u32 %v4804, 7
          %v4806 = vsub.s32 6, %v4805
          %v4807 = vrot.slane %v4773, %v4806
          %v4808 = vlaneseq
          %v4809 = vshrl.u32 %v4808, 7
          %v4810 = vsub.s32 7, %v4809
          %v4811 = vrot.slane %v4773, %v4810
          %v4820 = vmul.f32 %v4777, %v4783
          %v4821 = vmul.f32 %v4777, %v4787
          %v4822 = vmul.f32 %v4777, %v4791
          %v4823 = vmul.f32 %v4777, %v4795
          %v4824 = vmul.f32 %v4777, %v4799
          %v4825 = vmul.f32 %v4777, %v4803
          %v4826 = vmul.f32 %v4777, %v4807
          %v4827 = vmul.f32 %v4777, %v4811
          %v4836 = vcombine.low %v4820, %v4821
          %v4837 = vcombine.low %v4822, %v4823
          %v4839 = vunpack.c.l.s4 1983009808
          %v4840 = vunpack.c.0.s8 %v4839
          %v4841 = vlaneseq
          %v4842 = vshrl.u32 %v4841, 7
          %v4843 = vsub.s32 %v4840, %v4842
          %v4844 = vrot.slane %v4836, %v4843
          %v4846 = vunpack.c.l.s4 1983009808
          %v4847 = vunpack.c.0.s8 %v4846
          %v4848 = vlaneseq
          %v4849 = vshrl.u32 %v4848, 7
          %v4850 = vsub.s32 %v4847, %v4849
          %v4851 = vrot.slane %v4837, %v4850
          %v4852 = vcombine.low %v4844, %v4851
          %v4853 = vcombine.low %v4824, %v4825
          %v4854 = vcombine.low %v4826, %v4827
          %v4856 = vunpack.c.l.s4 1983009808
          %v4857 = vunpack.c.0.s8 %v4856
          %v4858 = vlaneseq
          %v4859 = vshrl.u32 %v4858, 7
          %v4860 = vsub.s32 %v4857, %v4859
          %v4861 = vrot.slane %v4853, %v4860
          %v4863 = vunpack.c.l.s4 1983009808
          %v4864 = vunpack.c.0.s8 %v4863
          %v4865 = vlaneseq
          %v4866 = vshrl.u32 %v4865, 7
          %v4867 = vsub.s32 %v4864, %v4866
          %v4868 = vrot.slane %v4854, %v4867
          %v4869 = vcombine.low %v4861, %v4868
          %v4872 = vadd.f32 %v4770, %v4852
          %v4873 = vadd.f32 %v4771, %v4869
          %4874 = vst [vmem:[%s431] sm:$0xff] %v4872
          %4875 = vst [vmem:[%s431 + $0x8] sm:$0xff] %v4873
        $region80: #{tpu_custom_call.1} parent=43 // pred_fallthru
          _
        %s4876 = sand.u32 %s211, 1
        %s4877 = scalar_lea.sflag [#allocation6], %s4876
        %s4878 = sand.u32 %s211, 1
        %s4879 = smul.addr %s4878, 16
        %s4880 = scalar_lea.vmem [#allocation13], %s4879
        // Predicated region
        $region81: #{tpu_custom_call.1} parent=43 // pred_check
          %p4881 = pneg %p221
        $region82: #{tpu_custom_call.1} parent=43 // pred_check_branch
          %4883 = sbr.rel (%p4881) target = $region84
        $region83: #{tpu_custom_call.1} parent=43 // pred_region
          %s4884 = smul.u32 8, %s34
          %s4886 = ssub.s32 256, 256
          %4887 = vsyncadd %s4877, %s4886
          %s4888 = smul.addr %s4884, 32
          %s4889 = scalar_lea.hbm %s6, %s4888
          %s4891 = sshll.u32 %s4880, 4
          %s4892 = int_to_ptr.vmem [resolvable:$true] %s4891
          %4894 = dma.vmem_to_hbm [thread:$0]  %s4892, 256, %s4889, %s4877
        $region84: #{tpu_custom_call.1} parent=43 // pred_fallthru
          _
      $region44: #{tpu_custom_call.1} parent=5 // pred_fallthru
        _
      %p4895 = scmp.le.s32.totalorder 2, %s24
      // Predicated region
      $region85: #{tpu_custom_call.1} parent=5 // pred_check
        %p4896 = pneg %p4895
      $region86: #{tpu_custom_call.1} parent=5 // pred_check_branch
        %4898 = sbr.rel (%p4896) target = $region88
      $region87: #{tpu_custom_call.1} parent=5 // pred_region
        %s4899 = ssub.s32 %s24, 2
        // Predicated region
        $region89: #{tpu_custom_call.1} parent=87 // pred_check
          %p4900 = pneg %p227
        $region90: #{tpu_custom_call.1} parent=87 // pred_check_branch
          %4902 = sbr.rel (%p4900) target = $region92
        $region91: #{tpu_custom_call.1} parent=87 // pred_region
          %s4903 = sand.u32 %s212, 1
          %s4904 = scalar_lea.sflag [#allocation6], %s4903
          %s4905 = sand.u32 %s212, 1
          %s4906 = smul.addr %s4905, 16
          %s4907 = scalar_lea.vmem [#allocation13], %s4906
          %4908 = dma.done %s4904, 256
        $region92: #{tpu_custom_call.1} parent=87 // pred_fallthru
          _
      $region88: #{tpu_custom_call.1} parent=5 // pred_fallthru
        _
    $region6: #{tpu_custom_call.1} parent=1 // loop_footer
      %s28 = sadd.s32 1, %s24
    $region7: #{tpu_custom_call.1} parent=1 // loop_footer_branch
      %23 = sbr.rel target = $region3
    $region8: #{tpu_custom_call.1} parent=1 // loop_exit
      _
    %4909 = vsyncpa [#allocation5], 1
    %s4910 = scalar_lea.sflag [#allocation5], 1
    %4911 = vsyncpa %s4910, 1
    %4912 = vsyncpa [#allocation8], 1
    %s4913 = scalar_lea.sflag [#allocation8], 1
    %4914 = vsyncpa %s4913, 1
    %4915 = vsyncpa [#allocation11], 1
    %s4916 = scalar_lea.sflag [#allocation11], 1
    %4917 = vsyncpa %s4916, 1
    %4918 = vsyncpa [#allocation6], 1
    %s4919 = scalar_lea.sflag [#allocation6], 1
    %4920 = vsyncpa %s4919, 1

</llo_original>
